<compile_context>
chip_gen: v5e
topology: v5e:2x2
jax: 0.10.0
libtpu: 0.0.40
codegen_flags: <defaults>
</compile_context>

<pallas_src>
import numpy as np
import jax
import jax.numpy as jnp
from jax.experimental import pallas as pl
from jax.experimental.pallas import tpu as pltpu

# ----------------------------- small config ---------------------------------
NUM_IMAGES  = 2
INSTANCES   = [9, 4]            # instances per image (pos_instances lengths)
R           = sum(INSTANCES)    # total ROI features
IN_CHANNELS = 4                 # ROI pooled channels
POOL_RES    = 8                 # pooler_resolution (H == W)
CONV_DIMS   = [8, 8]            # embed head conv dims
FC_DIM      = 32                # embed head fc dim == _output_size == channel_size
FC_PAD      = max(128, -(-FC_DIM // 128) * 128)   # lane-dense fc/output width
MAX_R_TILE  = 256               # upper bound on ROI rows per grid step


# --------------------------- fused Pallas kernel ------------------------------
def _qdtrack_head_kernel(x_ref, w1_ref, b1_ref, w2_ref, b2_ref,
                         wf_ref, bf_ref, wo_ref, bo_ref, o_ref):
    """Whole head for one R-tile: conv1 + conv2 + embed fc + track_out linear.

    x_ref : (Rt, Cin*H*W)  f32    NCHW-flattened ROI features (lane-dense)
    w1/w2 : bf16 dense conv matrices (Cin*H*W, C1*H*W), (C1*H*W, C2*H*W)
    b1/b2 : (1, C*H*W)     f32    per-pixel-tiled conv biases
    wf/bf : (C2*H*W, FC_PAD) bf16 / (1, FC_PAD) f32   embed-head fc (lane-padded)
    wo/bo : (FC_PAD, FC_PAD) bf16 / (1, FC_PAD) f32   track_out_layer (lane-padded)
    o_ref : (Rt, FC_PAD)   f32
    """
    # conv1 (3x3 SAME + bias + relu) as one MXU matmul: bf16 operands, f32 accum.
    h = jnp.dot(x_ref[...].astype(jnp.bfloat16), w1_ref[...],
                preferred_element_type=jnp.float32)
    h = jnp.maximum(h + b1_ref[...], 0.0)                       # (Rt, C1*H*W), f32
    # conv2
    h = jnp.dot(h.astype(jnp.bfloat16), w2_ref[...],
                preferred_element_type=jnp.float32)
    h = jnp.maximum(h + b2_ref[...], 0.0)                       # (Rt, C2*H*W), f32
    # embed-head fc + relu (the outer F.relu in forward() is idempotent)
    h = jnp.dot(h.astype(jnp.bfloat16), wf_ref[...],
                preferred_element_type=jnp.float32)
    h = jnp.maximum(h + bf_ref[...], 0.0)                       # (Rt, FC_PAD), f32
    # track_out_layer
    o_ref[...] = (jnp.dot(h.astype(jnp.bfloat16), wo_ref[...],
                          preferred_element_type=jnp.float32)
                  + bo_ref[...]).astype(o_ref.dtype)


# --------------------------- parameter init ----------------------------------
def _conv3x3_as_dense_nchw(w_oihw, b, H, W):
    """Fold a 3x3 SAME (zero-pad) conv into a dense bf16 matrix acting on
    NCHW-flattened activations: out_flat = in_flat @ Wd + bd.
    Both row and column orderings are NCHW-flat (c*H*W + h*W + w), matching
    torch's .flatten() convention after the convs."""
    K = np.asarray(w_oihw, np.float32)               # (Cout, Cin, 3, 3), torch layout
    Cout, Cin = K.shape[0], K.shape[1]
    Wd = np.zeros((Cin * H * W, Cout * H * W), np.float32)
    for h in range(H):
        for w in range(W):
            cols = np.arange(Cout) * H * W + h * W + w
            for dy in range(3):
                hs = h + dy - 1
                if not (0 <= hs < H):
                    continue
                for dx in range(3):
                    ws = w + dx - 1
                    if not (0 <= ws < W):
                        continue
                    rows = np.arange(Cin) * H * W + hs * W + ws
                    Wd[np.ix_(rows, cols)] = K[:, :, dy, dx].T   # (Cin, Cout)
    bd = np.repeat(np.asarray(b, np.float32), H * W).reshape(1, Cout * H * W)
    return jnp.asarray(Wd).astype(jnp.bfloat16), jnp.asarray(bd, dtype=jnp.float32)


def init_params(key):
    keys = jax.random.split(key, 2 * len(CONV_DIMS) + 4)
    params = {"convs": [], "convs_dense": []}
    cin = IN_CHANNELS
    for i, cout in enumerate(CONV_DIMS):
        w = jax.random.normal(keys[2 * i], (cout, cin, 3, 3), jnp.float32) / np.sqrt(9.0 * cin)
        b = 0.01 * jax.random.normal(keys[2 * i + 1], (cout,), jnp.float32)
        params["convs"].append((w, b))                     # torch OIHW layout (reference)
        params["convs_dense"].append(_conv3x3_as_dense_nchw(w, b, POOL_RES, POOL_RES))
        cin = cout

    # VMEM gate: bf16 dense fold grows as (H*W*C)^2 -> breaks v7x's 64 MiB first.
    dense_bytes = sum(int(np.prod(wd.shape)) * 2 for wd, _ in params["convs_dense"])
    # TODO(synk): switch the conv matmuls to im2col-on-activations (streams the raw
    #             3x3xCinxCout weights) before CONV_DIMS grow past this gate.
    assert dense_bytes <= 12 * 2**20, (
        f"dense conv fold needs {dense_bytes / 2**20:.1f} MiB of bf16 weights; "
        "use the im2col variant instead of scaling this fold (v7x VMEM = 64 MiB)")

    D = CONV_DIMS[-1] * POOL_RES * POOL_RES
    k = 2 * len(CONV_DIMS)
    fc_w  = jax.random.normal(keys[k + 0], (D, FC_DIM), jnp.float32) / np.sqrt(D)
    fc_b  = 0.01 * jax.random.normal(keys[k + 1], (FC_DIM,), jnp.float32)
    out_w = jax.random.normal(keys[k + 2], (FC_DIM, FC_DIM), jnp.float32) / np.sqrt(FC_DIM)
    out_b = 0.01 * jax.random.normal(keys[k + 3], (FC_DIM,), jnp.float32)
    # f32 unpadded copies for the pure-JAX reference.
    params["fc_w_f32"], params["fc_b"] = fc_w, fc_b
    params["out_w_f32"], params["out_b"] = out_w, out_b
    # Kernel copies: bf16, lane-padded FC_DIM -> FC_PAD (zero pad columns/rows).
    # TODO(synk): a real PyTorch checkpoint stores Linear weights as (out, in);
    #             transpose to (in, out) before this padding when loading one.
    params["fc_w"]  = (jnp.zeros((D, FC_PAD), jnp.bfloat16)
                       .at[:, :FC_DIM].set(fc_w.astype(jnp.bfloat16)))
    params["fc_bp"] = jnp.zeros((1, FC_PAD), jnp.float32).at[0, :FC_DIM].set(fc_b)
    params["out_w"] = (jnp.zeros((FC_PAD, FC_PAD), jnp.bfloat16)
                       .at[:FC_DIM, :FC_DIM].set(out_w.astype(jnp.bfloat16)))
    params["out_bp"] = jnp.zeros((1, FC_PAD), jnp.float32).at[0, :FC_DIM].set(out_b)
    return params


# ------------------------------ forward --------------------------------------
def _choose_r_tile(n_rows):
    """Rows per grid step: ~half the batch (>=2 steps so v7x's 2nd TC gets work
    once R > 8), rounded up to the f32 sublane multiple of 8, capped at 256."""
    half = -(-n_rows // 2)
    return int(max(8, min(MAX_R_TILE, ((half + 7) // 8) * 8)))


def qdtrack_head_forward(params, pos_features_nchw, num_instances):
    """Inference path of QDTrackHead.forward (neg_features=None, eval mode)."""
    # TODO(synk): training losses (loss_track / loss_track_aux are external builders,
    #             gt_ids not available) and forward_seq_test (track_seq_head /
    #             ins_pred_layer are never defined in __init__) are not implemented.
    Rr = pos_features_nchw.shape[0]
    # NCHW flatten goes straight into the kernel: the NCHW ordering is baked into
    # the dense conv-1 matrix rows, so no transpose / NHWC relayout is needed.
    x = pos_features_nchw.reshape(Rr, -1)

    r_tile = _choose_r_tile(Rr)
    n_tiles = pl.cdiv(Rr, r_tile)
    Rp = n_tiles * r_tile
    if Rp != Rr:
        # Padded rows produce bias+relu garbage; they are discarded by [:Rr] below.
        x = jnp.pad(x, ((0, Rp - Rr), (0, 0)))

    (w1d, b1d), (w2d, b2d) = params["convs_dense"]
    weights = (w1d, b1d, w2d, b2d,
               params["fc_w"], params["fc_bp"], params["out_w"], params["out_bp"])

    def run(single_buffer_weights):
        def rep(a):   # grid-invariant (whole-array) block; never re-fetched
            if single_buffer_weights:
                return pl.BlockSpec(a.shape, lambda i: (0, 0),
                                    pipeline_mode=pl.Buffered(1))
            return pl.BlockSpec(a.shape, lambda i: (0, 0))
        return pl.pallas_call(
            _qdtrack_head_kernel,
            grid=(n_tiles,),
            in_specs=[pl.BlockSpec((r_tile, x.shape[1]), lambda i: (i, 0))]
                     + [rep(a) for a in weights],
            out_specs=pl.BlockSpec((r_tile, FC_PAD), lambda i: (i, 0)),
            out_shape=jax.ShapeDtypeStruct((Rp, FC_PAD), jnp.float32),
            compiler_params=pltpu.CompilerParams(
                dimension_semantics=("parallel",),
                # Above the 16/32 MiB scoped defaults (for when CONV_DIMS scale),
                # comfortably below v7x's 64 MiB physical VMEM.
                vmem_limit_bytes=48 * 1024 * 1024),
        )(x, *weights)

    try:
        out = run(True)                       # single-buffer grid-invariant weights
    except Exception:
        # TODO(synk): pl.Buffered(1) rejected by this jax build; fall back to the
        #             default double-buffered weight specs (footprint is tiny here).
        out = run(False)

    track_embeds = out[:Rr, :FC_DIM]          # drop padded rows AND padded lanes
    # track_head_inference: split per-image and attach to instances (glue)
    splits = np.cumsum(num_instances)[:-1].tolist()
    return jnp.split(track_embeds, splits, axis=0)


def reference_forward(params, pos_features_nchw, num_instances):
    x = pos_features_nchw
    for (w, b) in params["convs"]:            # w: (Cout, Cin, 3, 3) torch layout
        x = jax.lax.conv_general_dilated(
            x, w, window_strides=(1, 1), padding="SAME",
            dimension_numbers=("NCHW", "OIHW", "NCHW"))
        x = jax.nn.relu(x + b[None, :, None, None])
    x = x.reshape(x.shape[0], -1)             # NCHW flatten, matching torch
    h = jax.nn.relu(x @ params["fc_w_f32"] + params["fc_b"])
    h = jax.nn.relu(h)                        # outer F.relu in forward()
    out = h @ params["out_w_f32"] + params["out_b"]
    splits = np.cumsum(num_instances)[:-1].tolist()
    return jnp.split(out, splits, axis=0)


# -------------------------------- main ----------------------------------------
if __name__ == "__main__":
    key = jax.random.PRNGKey(0)
    k_param, k_x = jax.random.split(key)
    params = init_params(k_param)

    # pos_features: pooled ROI features, NCHW like the PyTorch module would receive
    pos_features = jax.random.normal(
        k_x, (R, IN_CHANNELS, POOL_RES, POOL_RES), jnp.float32)

    outs = qdtrack_head_forward(params, pos_features, INSTANCES)
    outs = [jax.block_until_ready(o) for o in outs]

    refs = reference_forward(params, pos_features, INSTANCES)
    for o, r, n in zip(outs, refs, INSTANCES):
        assert o.shape == (n, FC_DIM), o.shape
        # bf16 weights vs f32 reference: loosened tolerance (review note).
        np.testing.assert_allclose(np.asarray(o), np.asarray(r), rtol=2e-2, atol=5e-2)

    print("KERNEL_OK")
</pallas_src>

<mosaic_0001>
module attributes {stable_mosaic.version = 11 : i64} {
  func.func @_qdtrack_head_kernel(%arg0: i32, %arg1: memref<8x256xf32, #tpu.memory_space<vmem>>, %arg2: memref<256x512xbf16, #tpu.memory_space<vmem>>, %arg3: memref<1x512xf32, #tpu.memory_space<vmem>>, %arg4: memref<512x512xbf16, #tpu.memory_space<vmem>>, %arg5: memref<1x512xf32, #tpu.memory_space<vmem>>, %arg6: memref<512x128xbf16, #tpu.memory_space<vmem>>, %arg7: memref<1x128xf32, #tpu.memory_space<vmem>>, %arg8: memref<128x128xbf16, #tpu.memory_space<vmem>>, %arg9: memref<1x128xf32, #tpu.memory_space<vmem>>, %arg10: memref<8x128xf32, #tpu.memory_space<vmem>>) attributes {dimension_semantics = [#tpu.dimension_semantics<parallel>], iteration_bounds = array<i64: 2>, scalar_prefetch = 0 : i64, scratch_operands = 0 : i64, tpu.core_type = #tpu.core_type<tc>, window_params = [{transform_indices = @transform_0, window_bounds = array<i64: 8, 256>}, {pipeline_mode = #tpu.pipeline_mode<synchronous>, transform_indices = @transform_1, window_bounds = array<i64: 256, 512>}, {pipeline_mode = #tpu.pipeline_mode<synchronous>, transform_indices = @transform_2, window_bounds = array<i64: 1, 512>}, {pipeline_mode = #tpu.pipeline_mode<synchronous>, transform_indices = @transform_3, window_bounds = array<i64: 512, 512>}, {pipeline_mode = #tpu.pipeline_mode<synchronous>, transform_indices = @transform_4, window_bounds = array<i64: 1, 512>}, {pipeline_mode = #tpu.pipeline_mode<synchronous>, transform_indices = @transform_5, window_bounds = array<i64: 512, 128>}, {pipeline_mode = #tpu.pipeline_mode<synchronous>, transform_indices = @transform_6, window_bounds = array<i64: 1, 128>}, {pipeline_mode = #tpu.pipeline_mode<synchronous>, transform_indices = @transform_7, window_bounds = array<i64: 128, 128>}, {pipeline_mode = #tpu.pipeline_mode<synchronous>, transform_indices = @transform_8, window_bounds = array<i64: 1, 128>}, {transform_indices = @transform_9, window_bounds = array<i64: 8, 128>}]} {
    %c0 = arith.constant 0 : index
    %c0_0 = arith.constant 0 : index
    %0 = vector.load %arg1[%c0, %c0_0] : memref<8x256xf32, #tpu.memory_space<vmem>>, vector<8x256xf32>
    %1 = arith.truncf %0 : vector<8x256xf32> to vector<8x256xbf16>
    %c0_1 = arith.constant 0 : index
    %c0_2 = arith.constant 0 : index
    %2 = vector.load %arg2[%c0_1, %c0_2] : memref<256x512xbf16, #tpu.memory_space<vmem>>, vector<256x512xbf16>
    %cst = arith.constant dense<0.000000e+00> : vector<8x512xf32>
    %3 = tpu.matmul %1, %2, %cst {dimension_numbers = #tpu.dot_dimension_numbers<[1], [0], [0], [1], [0, 0, 1, 1], [], []>} : vector<8x256xbf16>, vector<256x512xbf16>, vector<8x512xf32> -> vector<8x512xf32>
    %c0_3 = arith.constant 0 : index
    %c0_4 = arith.constant 0 : index
    %4 = vector.load %arg3[%c0_3, %c0_4] : memref<1x512xf32, #tpu.memory_space<vmem>>, vector<1x512xf32>
    %5 = vector.broadcast %4 : vector<1x512xf32> to vector<8x512xf32>
    %6 = arith.addf %3, %5 : vector<8x512xf32>
    %cst_5 = arith.constant 0.000000e+00 : f32
    %7 = vector.broadcast %cst_5 : f32 to vector<8x512xf32>
    %8 = arith.maximumf %6, %7 : vector<8x512xf32>
    %9 = arith.truncf %8 : vector<8x512xf32> to vector<8x512xbf16>
    %c0_6 = arith.constant 0 : index
    %c0_7 = arith.constant 0 : index
    %10 = vector.load %arg4[%c0_6, %c0_7] : memref<512x512xbf16, #tpu.memory_space<vmem>>, vector<512x512xbf16>
    %cst_8 = arith.constant dense<0.000000e+00> : vector<8x512xf32>
    %11 = tpu.matmul %9, %10, %cst_8 {dimension_numbers = #tpu.dot_dimension_numbers<[1], [0], [0], [1], [0, 0, 1, 1], [], []>} : vector<8x512xbf16>, vector<512x512xbf16>, vector<8x512xf32> -> vector<8x512xf32>
    %c0_9 = arith.constant 0 : index
    %c0_10 = arith.constant 0 : index
    %12 = vector.load %arg5[%c0_9, %c0_10] : memref<1x512xf32, #tpu.memory_space<vmem>>, vector<1x512xf32>
    %13 = vector.broadcast %12 : vector<1x512xf32> to vector<8x512xf32>
    %14 = arith.addf %11, %13 : vector<8x512xf32>
    %cst_11 = arith.constant 0.000000e+00 : f32
    %15 = vector.broadcast %cst_11 : f32 to vector<8x512xf32>
    %16 = arith.maximumf %14, %15 : vector<8x512xf32>
    %17 = arith.truncf %16 : vector<8x512xf32> to vector<8x512xbf16>
    %c0_12 = arith.constant 0 : index
    %c0_13 = arith.constant 0 : index
    %18 = vector.load %arg6[%c0_12, %c0_13] : memref<512x128xbf16, #tpu.memory_space<vmem>>, vector<512x128xbf16>
    %cst_14 = arith.constant dense<0.000000e+00> : vector<8x128xf32>
    %19 = tpu.matmul %17, %18, %cst_14 {dimension_numbers = #tpu.dot_dimension_numbers<[1], [0], [0], [1], [0, 0, 1, 1], [], []>} : vector<8x512xbf16>, vector<512x128xbf16>, vector<8x128xf32> -> vector<8x128xf32>
    %c0_15 = arith.constant 0 : index
    %c0_16 = arith.constant 0 : index
    %20 = vector.load %arg7[%c0_15, %c0_16] : memref<1x128xf32, #tpu.memory_space<vmem>>, vector<1x128xf32>
    %21 = vector.broadcast %20 : vector<1x128xf32> to vector<8x128xf32>
    %22 = arith.addf %19, %21 : vector<8x128xf32>
    %cst_17 = arith.constant 0.000000e+00 : f32
    %23 = vector.broadcast %cst_17 : f32 to vector<8x128xf32>
    %24 = arith.maximumf %22, %23 : vector<8x128xf32>
    %25 = arith.truncf %24 : vector<8x128xf32> to vector<8x128xbf16>
    %c0_18 = arith.constant 0 : index
    %c0_19 = arith.constant 0 : index
    %26 = vector.load %arg8[%c0_18, %c0_19] : memref<128x128xbf16, #tpu.memory_space<vmem>>, vector<128x128xbf16>
    %cst_20 = arith.constant dense<0.000000e+00> : vector<8x128xf32>
    %27 = tpu.matmul %25, %26, %cst_20 {dimension_numbers = #tpu.dot_dimension_numbers<[1], [0], [0], [1], [0, 0, 1, 1], [], []>} : vector<8x128xbf16>, vector<128x128xbf16>, vector<8x128xf32> -> vector<8x128xf32>
    %c0_21 = arith.constant 0 : index
    %c0_22 = arith.constant 0 : index
    %28 = vector.load %arg9[%c0_21, %c0_22] : memref<1x128xf32, #tpu.memory_space<vmem>>, vector<1x128xf32>
    %29 = vector.broadcast %28 : vector<1x128xf32> to vector<8x128xf32>
    %30 = arith.addf %27, %29 : vector<8x128xf32>
    %c0_23 = arith.constant 0 : index
    %c0_24 = arith.constant 0 : index
    %31 = vector.load %arg10[%c0_23, %c0_24] : memref<8x128xf32, #tpu.memory_space<vmem>>, vector<8x128xf32>
    tpu.vector_store %arg10[%c0_23, %c0_24], %30 {strides = array<i32>} : memref<8x128xf32, #tpu.memory_space<vmem>>, vector<8x128xf32>,
    return
  }
  func.func @transform_0(%arg0: i32) -> (i32, i32) {
    %c0_i32 = arith.constant 0 : i32
    %c0_i32_0 = arith.constant 0 : i32
    return %arg0, %c0_i32 : i32, i32
  }
  func.func @transform_1(%arg0: i32) -> (i32, i32) {
    %c0_i32 = arith.constant 0 : i32
    %c0_i32_0 = arith.constant 0 : i32
    %c0_i32_1 = arith.constant 0 : i32
    return %c0_i32, %c0_i32_0 : i32, i32
  }
  func.func @transform_2(%arg0: i32) -> (i32, i32) {
    %c0_i32 = arith.constant 0 : i32
    %c0_i32_0 = arith.constant 0 : i32
    %c0_i32_1 = arith.constant 0 : i32
    return %c0_i32, %c0_i32_0 : i32, i32
  }
  func.func @transform_3(%arg0: i32) -> (i32, i32) {
    %c0_i32 = arith.constant 0 : i32
    %c0_i32_0 = arith.constant 0 : i32
    %c0_i32_1 = arith.constant 0 : i32
    return %c0_i32, %c0_i32_0 : i32, i32
  }
  func.func @transform_4(%arg0: i32) -> (i32, i32) {
    %c0_i32 = arith.constant 0 : i32
    %c0_i32_0 = arith.constant 0 : i32
    %c0_i32_1 = arith.constant 0 : i32
    return %c0_i32, %c0_i32_0 : i32, i32
  }
  func.func @transform_5(%arg0: i32) -> (i32, i32) {
    %c0_i32 = arith.constant 0 : i32
    %c0_i32_0 = arith.constant 0 : i32
    %c0_i32_1 = arith.constant 0 : i32
    return %c0_i32, %c0_i32_0 : i32, i32
  }
  func.func @transform_6(%arg0: i32) -> (i32, i32) {
    %c0_i32 = arith.constant 0 : i32
    %c0_i32_0 = arith.constant 0 : i32
    %c0_i32_1 = arith.constant 0 : i32
    return %c0_i32, %c0_i32_0 : i32, i32
  }
  func.func @transform_7(%arg0: i32) -> (i32, i32) {
    %c0_i32 = arith.constant 0 : i32
    %c0_i32_0 = arith.constant 0 : i32
    %c0_i32_1 = arith.constant 0 : i32
    return %c0_i32, %c0_i32_0 : i32, i32
  }
  func.func @transform_8(%arg0: i32) -> (i32, i32) {
    %c0_i32 = arith.constant 0 : i32
    %c0_i32_0 = arith.constant 0 : i32
    %c0_i32_1 = arith.constant 0 : i32
    return %c0_i32, %c0_i32_0 : i32, i32
  }
  func.func @transform_9(%arg0: i32) -> (i32, i32) {
    %c0_i32 = arith.constant 0 : i32
    %c0_i32_0 = arith.constant 0 : i32
    return %arg0, %c0_i32 : i32, i32
  }
}

module attributes {stable_mosaic.version = 11 : i64} {
  func.func @_qdtrack_head_kernel(%arg0: i32, %arg1: memref<8x256xf32, #tpu.memory_space<vmem>>, %arg2: memref<256x512xbf16, #tpu.memory_space<vmem>>, %arg3: memref<1x512xf32, #tpu.memory_space<vmem>>, %arg4: memref<512x512xbf16, #tpu.memory_space<vmem>>, %arg5: memref<1x512xf32, #tpu.memory_space<vmem>>, %arg6: memref<512x128xbf16, #tpu.memory_space<vmem>>, %arg7: memref<1x128xf32, #tpu.memory_space<vmem>>, %arg8: memref<128x128xbf16, #tpu.memory_space<vmem>>, %arg9: memref<1x128xf32, #tpu.memory_space<vmem>>, %arg10: memref<8x128xf32, #tpu.memory_space<vmem>>) attributes {dimension_semantics = [#tpu.dimension_semantics<parallel>], iteration_bounds = array<i64: 2>, scalar_prefetch = 0 : i64, scratch_operands = 0 : i64, tpu.core_type = #tpu.core_type<tc>, window_params = [{transform_indices = @transform_0, window_bounds = array<i64: 8, 256>}, {pipeline_mode = #tpu.pipeline_mode<synchronous>, transform_indices = @transform_1, window_bounds = array<i64: 256, 512>}, {pipeline_mode = #tpu.pipeline_mode<synchronous>, transform_indices = @transform_2, window_bounds = array<i64: 1, 512>}, {pipeline_mode = #tpu.pipeline_mode<synchronous>, transform_indices = @transform_3, window_bounds = array<i64: 512, 512>}, {pipeline_mode = #tpu.pipeline_mode<synchronous>, transform_indices = @transform_4, window_bounds = array<i64: 1, 512>}, {pipeline_mode = #tpu.pipeline_mode<synchronous>, transform_indices = @transform_5, window_bounds = array<i64: 512, 128>}, {pipeline_mode = #tpu.pipeline_mode<synchronous>, transform_indices = @transform_6, window_bounds = array<i64: 1, 128>}, {pipeline_mode = #tpu.pipeline_mode<synchronous>, transform_indices = @transform_7, window_bounds = array<i64: 128, 128>}, {pipeline_mode = #tpu.pipeline_mode<synchronous>, transform_indices = @transform_8, window_bounds = array<i64: 1, 128>}, {transform_indices = @transform_9, window_bounds = array<i64: 8, 128>}]} {
    %c0 = arith.constant 0 : index
    %c0_0 = arith.constant 0 : index
    %0 = vector.load %arg1[%c0, %c0_0] : memref<8x256xf32, #tpu.memory_space<vmem>>, vector<8x256xf32>
    %1 = arith.truncf %0 : vector<8x256xf32> to vector<8x256xbf16>
    %c0_1 = arith.constant 0 : index
    %c0_2 = arith.constant 0 : index
    %2 = vector.load %arg2[%c0_1, %c0_2] : memref<256x512xbf16, #tpu.memory_space<vmem>>, vector<256x512xbf16>
    %cst = arith.constant dense<0.000000e+00> : vector<8x512xf32>
    %3 = tpu.matmul %1, %2, %cst {dimension_numbers = #tpu.dot_dimension_numbers<[1], [0], [0], [1], [0, 0, 1, 1], [], []>} : vector<8x256xbf16>, vector<256x512xbf16>, vector<8x512xf32> -> vector<8x512xf32>
    %c0_3 = arith.constant 0 : index
    %c0_4 = arith.constant 0 : index
    %4 = vector.load %arg3[%c0_3, %c0_4] : memref<1x512xf32, #tpu.memory_space<vmem>>, vector<1x512xf32>
    %5 = vector.broadcast %4 : vector<1x512xf32> to vector<8x512xf32>
    %6 = arith.addf %3, %5 : vector<8x512xf32>
    %cst_5 = arith.constant 0.000000e+00 : f32
    %7 = vector.broadcast %cst_5 : f32 to vector<8x512xf32>
    %8 = arith.maximumf %6, %7 : vector<8x512xf32>
    %9 = arith.truncf %8 : vector<8x512xf32> to vector<8x512xbf16>
    %c0_6 = arith.constant 0 : index
    %c0_7 = arith.constant 0 : index
    %10 = vector.load %arg4[%c0_6, %c0_7] : memref<512x512xbf16, #tpu.memory_space<vmem>>, vector<512x512xbf16>
    %cst_8 = arith.constant dense<0.000000e+00> : vector<8x512xf32>
    %11 = tpu.matmul %9, %10, %cst_8 {dimension_numbers = #tpu.dot_dimension_numbers<[1], [0], [0], [1], [0, 0, 1, 1], [], []>} : vector<8x512xbf16>, vector<512x512xbf16>, vector<8x512xf32> -> vector<8x512xf32>
    %c0_9 = arith.constant 0 : index
    %c0_10 = arith.constant 0 : index
    %12 = vector.load %arg5[%c0_9, %c0_10] : memref<1x512xf32, #tpu.memory_space<vmem>>, vector<1x512xf32>
    %13 = vector.broadcast %12 : vector<1x512xf32> to vector<8x512xf32>
    %14 = arith.addf %11, %13 : vector<8x512xf32>
    %cst_11 = arith.constant 0.000000e+00 : f32
    %15 = vector.broadcast %cst_11 : f32 to vector<8x512xf32>
    %16 = arith.maximumf %14, %15 : vector<8x512xf32>
    %17 = arith.truncf %16 : vector<8x512xf32> to vector<8x512xbf16>
    %c0_12 = arith.constant 0 : index
    %c0_13 = arith.constant 0 : index
    %18 = vector.load %arg6[%c0_12, %c0_13] : memref<512x128xbf16, #tpu.memory_space<vmem>>, vector<512x128xbf16>
    %cst_14 = arith.constant dense<0.000000e+00> : vector<8x128xf32>
    %19 = tpu.matmul %17, %18, %cst_14 {dimension_numbers = #tpu.dot_dimension_numbers<[1], [0], [0], [1], [0, 0, 1, 1], [], []>} : vector<8x512xbf16>, vector<512x128xbf16>, vector<8x128xf32> -> vector<8x128xf32>
    %c0_15 = arith.constant 0 : index
    %c0_16 = arith.constant 0 : index
    %20 = vector.load %arg7[%c0_15, %c0_16] : memref<1x128xf32, #tpu.memory_space<vmem>>, vector<1x128xf32>
    %21 = vector.broadcast %20 : vector<1x128xf32> to vector<8x128xf32>
    %22 = arith.addf %19, %21 : vector<8x128xf32>
    %cst_17 = arith.constant 0.000000e+00 : f32
    %23 = vector.broadcast %cst_17 : f32 to vector<8x128xf32>
    %24 = arith.maximumf %22, %23 : vector<8x128xf32>
    %25 = arith.truncf %24 : vector<8x128xf32> to vector<8x128xbf16>
    %c0_18 = arith.constant 0 : index
    %c0_19 = arith.constant 0 : index
    %26 = vector.load %arg8[%c0_18, %c0_19] : memref<128x128xbf16, #tpu.memory_space<vmem>>, vector<128x128xbf16>
    %cst_20 = arith.constant dense<0.000000e+00> : vector<8x128xf32>
    %27 = tpu.matmul %25, %26, %cst_20 {dimension_numbers = #tpu.dot_dimension_numbers<[1], [0], [0], [1], [0, 0, 1, 1], [], []>} : vector<8x128xbf16>, vector<128x128xbf16>, vector<8x128xf32> -> vector<8x128xf32>
    %c0_21 = arith.constant 0 : index
    %c0_22 = arith.constant 0 : index
    %28 = vector.load %arg9[%c0_21, %c0_22] : memref<1x128xf32, #tpu.memory_space<vmem>>, vector<1x128xf32>
    %29 = vector.broadcast %28 : vector<1x128xf32> to vector<8x128xf32>
    %30 = arith.addf %27, %29 : vector<8x128xf32>
    %c0_23 = arith.constant 0 : index
    %c0_24 = arith.constant 0 : index
    %31 = vector.load %arg10[%c0_23, %c0_24] : memref<8x128xf32, #tpu.memory_space<vmem>>, vector<8x128xf32>
    tpu.vector_store %arg10[%c0_23, %c0_24], %30 {strides = array<i32>} : memref<8x128xf32, #tpu.memory_space<vmem>>, vector<8x128xf32>,
    return
  }
  func.func @transform_0(%arg0: i32) -> (i32, i32) {
    %c0_i32 = arith.constant 0 : i32
    %c0_i32_0 = arith.constant 0 : i32
    return %arg0, %c0_i32 : i32, i32
  }
  func.func @transform_1(%arg0: i32) -> (i32, i32) {
    %c0_i32 = arith.constant 0 : i32
    %c0_i32_0 = arith.constant 0 : i32
    %c0_i32_1 = arith.constant 0 : i32
    return %c0_i32, %c0_i32_0 : i32, i32
  }
  func.func @transform_2(%arg0: i32) -> (i32, i32) {
    %c0_i32 = arith.constant 0 : i32
    %c0_i32_0 = arith.constant 0 : i32
    %c0_i32_1 = arith.constant 0 : i32
    return %c0_i32, %c0_i32_0 : i32, i32
  }
  func.func @transform_3(%arg0: i32) -> (i32, i32) {
    %c0_i32 = arith.constant 0 : i32
    %c0_i32_0 = arith.constant 0 : i32
    %c0_i32_1 = arith.constant 0 : i32
    return %c0_i32, %c0_i32_0 : i32, i32
  }
  func.func @transform_4(%arg0: i32) -> (i32, i32) {
    %c0_i32 = arith.constant 0 : i32
    %c0_i32_0 = arith.constant 0 : i32
    %c0_i32_1 = arith.constant 0 : i32
    return %c0_i32, %c0_i32_0 : i32, i32
  }
  func.func @transform_5(%arg0: i32) -> (i32, i32) {
    %c0_i32 = arith.constant 0 : i32
    %c0_i32_0 = arith.constant 0 : i32
    %c0_i32_1 = arith.constant 0 : i32
    return %c0_i32, %c0_i32_0 : i32, i32
  }
  func.func @transform_6(%arg0: i32) -> (i32, i32) {
    %c0_i32 = arith.constant 0 : i32
    %c0_i32_0 = arith.constant 0 : i32
    %c0_i32_1 = arith.constant 0 : i32
    return %c0_i32, %c0_i32_0 : i32, i32
  }
  func.func @transform_7(%arg0: i32) -> (i32, i32) {
    %c0_i32 = arith.constant 0 : i32
    %c0_i32_0 = arith.constant 0 : i32
    %c0_i32_1 = arith.constant 0 : i32
    return %c0_i32, %c0_i32_0 : i32, i32
  }
  func.func @transform_8(%arg0: i32) -> (i32, i32) {
    %c0_i32 = arith.constant 0 : i32
    %c0_i32_0 = arith.constant 0 : i32
    %c0_i32_1 = arith.constant 0 : i32
    return %c0_i32, %c0_i32_0 : i32, i32
  }
  func.func @transform_9(%arg0: i32) -> (i32, i32) {
    %c0_i32 = arith.constant 0 : i32
    %c0_i32_0 = arith.constant 0 : i32
    return %arg0, %c0_i32 : i32, i32
  }
}

</mosaic_0001>

<llo_original>
// kernel: tpu_custom_call.1
$region0: #{tpu_custom_call.1}
  #allocation0 [shape = 'u32[]', space=smem, size = 0x4, offset = 0x4, fixed_abs, tag = 'smem constant byte address 0x4 - core index']
  #allocation1 [shape = 'u32[72,128]{1,0:T(1,128)}', space=vmem, size = 0x9000, scoped, tag = 'internal scratch']
  %s0 = inlined_call_operand.hbm [shape: f32[16,256], index: 0, kind: input, shape index: {}]
  %s1 = inlined_call_operand.hbm [shape: bf16[256,512], index: 1, kind: input, shape index: {}]
  %s2 = inlined_call_operand.hbm [shape: f32[1,512], index: 2, kind: input, shape index: {}]
  %s3 = inlined_call_operand.hbm [shape: bf16[512,512], index: 3, kind: input, shape index: {}]
  %s4 = inlined_call_operand.hbm [shape: f32[1,512], index: 4, kind: input, shape index: {}]
  %s5 = inlined_call_operand.hbm [shape: bf16[512,128], index: 5, kind: input, shape index: {}]
  %s6 = inlined_call_operand.vmem [shape: f32[1,128], index: 6, kind: input, shape index: {}]
  %s7 = inlined_call_operand.hbm [shape: bf16[128,128], index: 7, kind: input, shape index: {}]
  %s8 = inlined_call_operand.vmem [shape: f32[1,128], index: 8, kind: input, shape index: {}]
  %s9 = inlined_call_operand.hbm [shape: f32[16,128], index: 9, kind: output, shape index: {}]
  %s10 = sld [smem:[#allocation0]]
  $region97: #{tpu_custom_call.1} parent=0
    _
  %s12 = ssub.s32 1, %s10
  %s13 = scalar_select 0, %s12, %s10
  $region1: #{tpu_custom_call.1} parent=0
    #allocation2 [shape = 'u8[16384]{0}', space=vmem, size = 0x4000, scoped, tag = 'input window, operand 0']
    #allocation3 [shape = 's32[2]{0}', space=sflag, size = 0x8, scoped, tag = 'scoped memory for tpu_custom_call.1']
    #allocation4 [shape = 's32[2]{0}', space=sflag, size = 0x8, scoped, tag = 'scoped memory for tpu_custom_call.1']
    #allocation5 [shape = 'u8[262144]{0}', space=vmem, size = 0x40000, scoped, tag = 'input window, operand 1, single buffered']
    #allocation6 [shape = 's32[1]{0}', space=sflag, size = 0x4, scoped, tag = 'scoped memory for tpu_custom_call.1']
    #allocation7 [shape = 'u8[2048]{0}', space=vmem, size = 0x800, scoped, tag = 'input window, operand 2, single buffered']
    #allocation8 [shape = 'u8[524288]{0}', space=vmem, size = 0x80000, scoped, tag = 'input window, operand 3, single buffered']
    #allocation9 [shape = 's32[1]{0}', space=sflag, size = 0x4, scoped, tag = 'scoped memory for tpu_custom_call.1']
    #allocation10 [shape = 'u8[2048]{0}', space=vmem, size = 0x800, scoped, tag = 'input window, operand 4, single buffered']
    #allocation11 [shape = 'u8[131072]{0}', space=vmem, size = 0x20000, scoped, tag = 'input window, operand 5, single buffered']
    #allocation12 [shape = 's32[1]{0}', space=sflag, size = 0x4, scoped, tag = 'scoped memory for tpu_custom_call.1']
    #allocation13 [shape = 'u8[32768]{0}', space=vmem, size = 0x8000, scoped, tag = 'input window, operand 7, single buffered']
    #allocation14 [shape = 'u8[8192]{0}', space=vmem, size = 0x2000, scoped, tag = 'output window, operand 0']
    %14 = vsyncpa [#allocation3], 0
    %s15 = scalar_lea.sflag [#allocation3], 1
    %16 = vsyncpa %s15, 0
    %17 = vsyncpa [#allocation6], 0
    %18 = vsyncpa [#allocation9], 0
    %19 = vsyncpa [#allocation12], 0
    %20 = vsyncpa [#allocation4], 0
    %s21 = scalar_lea.sflag [#allocation4], 1
    %22 = vsyncpa %s21, 0
    loop: start=0, step=1, limit=4
    $region2: #{tpu_custom_call.1} parent=1 // loop_pre_header
      _
    $region3: #{tpu_custom_call.1} parent=1 // loop_header
      %s24 = sphi 0, %s28
      %p25 = scmp.ge.s32.totalorder %s24, 4
      %s34 = sphi 0, %s36
      %s37 = sphi 0, %s34
      %s38 = sphi 0, %s37
      %s54 = sphi 0, %s38
      %s58 = sphi 0, %s58
      %s60 = sphi 0, %s58
      %s61 = sphi 0, %s60
      %s75 = sphi 0, %s61
      %s79 = sphi 0, %s79
      %s81 = sphi 0, %s79
      %s82 = sphi 0, %s81
      %s96 = sphi 0, %s82
      %s100 = sphi 0, %s100
      %s102 = sphi 0, %s100
      %s103 = sphi 0, %s102
      %s117 = sphi 0, %s103
      %s121 = sphi 0, %s121
      %s123 = sphi 0, %s121
      %s124 = sphi 0, %s123
      %s138 = sphi 0, %s124
      %s142 = sphi 0, %s142
      %s144 = sphi 0, %s142
      %s145 = sphi 0, %s144
      %s159 = sphi 0, %s145
      %s163 = sphi 0, %s163
      %s165 = sphi 0, %s163
      %s166 = sphi 0, %s165
      %s180 = sphi 0, %s166
      %s184 = sphi 0, %s184
      %s186 = sphi 0, %s184
      %s187 = sphi 0, %s186
      %s201 = sphi 0, %s187
      %s205 = sphi 0, %s205
      %s207 = sphi 0, %s205
      %s208 = sphi 0, %s207
      %s222 = sphi 0, %s208
      %s228 = sphi 0, %s230
      %s231 = sphi 0, %s228
      %s232 = sphi 0, %s231
      %s248 = sphi 0, %s232
    $region4: #{tpu_custom_call.1} parent=1 // loop_header_branch
      %27 = sbr.rel (%p25) target = $region8
    $region5: #{tpu_custom_call.1} parent=1 // loop_body
      %s29 = ssub.s32 %s24, 1
      %s30 = ssub.s32 %s24, 2
      %s31 = sadd.s32 %s24, 1
      %s32 = ssub.s32 %s24, %s31
      %p33 = scmp.eq.s32.totalorder %s32, 0
      %s35 = sadd.s32 %s34, 1
      %s36 = scalar_select %p33, %s34, %s35
      %p39 = pneg %p33
      %p40 = scmp.eq.s32.totalorder %s24, 1
      %p41 = por %p39, %p40
      %p42 = scmp.ne.s32.totalorder %s34, %s37
      %p43 = scmp.eq.s32.totalorder %s24, 0
      %p44 = por %p42, %p43
      %p45 = scmp.ne.s32.totalorder %s34, %s37
      %p46 = scmp.eq.s32.totalorder %s29, 1
      %p47 = por %p45, %p46
      %p48 = scmp.ne.s32.totalorder %s37, %s38
      %p49 = scmp.eq.s32.totalorder %s29, 0
      %p50 = por %p48, %p49
      %p51 = scmp.ne.s32.totalorder %s37, %s38
      %p52 = scmp.eq.s32.totalorder %s30, 1
      %p53 = por %p51, %p52
      %p55 = scmp.ne.s32.totalorder %s38, %s54
      %p56 = scmp.eq.s32.totalorder %s30, 0
      %p57 = por %p55, %p56
      %s59 = sadd.s32 %s58, 1
      %p62 = scmp.eq.s32.totalorder %s24, 1
      %p63 = scmp.ne.s32.totalorder %s58, %s60
      %p64 = scmp.eq.s32.totalorder %s24, 0
      %p65 = por %p63, %p64
      %p66 = scmp.ne.s32.totalorder %s58, %s60
      %p67 = scmp.eq.s32.totalorder %s29, 1
      %p68 = por %p66, %p67
      %p69 = scmp.ne.s32.totalorder %s60, %s61
      %p70 = scmp.eq.s32.totalorder %s29, 0
      %p71 = por %p69, %p70
      %p72 = scmp.ne.s32.totalorder %s60, %s61
      %p73 = scmp.eq.s32.totalorder %s30, 1
      %p74 = por %p72, %p73
      %p76 = scmp.ne.s32.totalorder %s61, %s75
      %p77 = scmp.eq.s32.totalorder %s30, 0
      %p78 = por %p76, %p77
      %s80 = sadd.s32 %s79, 1
      %p83 = scmp.eq.s32.totalorder %s24, 1
      %p84 = scmp.ne.s32.totalorder %s79, %s81
      %p85 = scmp.eq.s32.totalorder %s24, 0
      %p86 = por %p84, %p85
      %p87 = scmp.ne.s32.totalorder %s79, %s81
      %p88 = scmp.eq.s32.totalorder %s29, 1
      %p89 = por %p87, %p88
      %p90 = scmp.ne.s32.totalorder %s81, %s82
      %p91 = scmp.eq.s32.totalorder %s29, 0
      %p92 = por %p90, %p91
      %p93 = scmp.ne.s32.totalorder %s81, %s82
      %p94 = scmp.eq.s32.totalorder %s30, 1
      %p95 = por %p93, %p94
      %p97 = scmp.ne.s32.totalorder %s82, %s96
      %p98 = scmp.eq.s32.totalorder %s30, 0
      %p99 = por %p97, %p98
      %s101 = sadd.s32 %s100, 1
      %p104 = scmp.eq.s32.totalorder %s24, 1
      %p105 = scmp.ne.s32.totalorder %s100, %s102
      %p106 = scmp.eq.s32.totalorder %s24, 0
      %p107 = por %p105, %p106
      %p108 = scmp.ne.s32.totalorder %s100, %s102
      %p109 = scmp.eq.s32.totalorder %s29, 1
      %p110 = por %p108, %p109
      %p111 = scmp.ne.s32.totalorder %s102, %s103
      %p112 = scmp.eq.s32.totalorder %s29, 0
      %p113 = por %p111, %p112
      %p114 = scmp.ne.s32.totalorder %s102, %s103
      %p115 = scmp.eq.s32.totalorder %s30, 1
      %p116 = por %p114, %p115
      %p118 = scmp.ne.s32.totalorder %s103, %s117
      %p119 = scmp.eq.s32.totalorder %s30, 0
      %p120 = por %p118, %p119
      %s122 = sadd.s32 %s121, 1
      %p125 = scmp.eq.s32.totalorder %s24, 1
      %p126 = scmp.ne.s32.totalorder %s121, %s123
      %p127 = scmp.eq.s32.totalorder %s24, 0
      %p128 = por %p126, %p127
      %p129 = scmp.ne.s32.totalorder %s121, %s123
      %p130 = scmp.eq.s32.totalorder %s29, 1
      %p131 = por %p129, %p130
      %p132 = scmp.ne.s32.totalorder %s123, %s124
      %p133 = scmp.eq.s32.totalorder %s29, 0
      %p134 = por %p132, %p133
      %p135 = scmp.ne.s32.totalorder %s123, %s124
      %p136 = scmp.eq.s32.totalorder %s30, 1
      %p137 = por %p135, %p136
      %p139 = scmp.ne.s32.totalorder %s124, %s138
      %p140 = scmp.eq.s32.totalorder %s30, 0
      %p141 = por %p139, %p140
      %s143 = sadd.s32 %s142, 1
      %p146 = scmp.eq.s32.totalorder %s24, 1
      %p147 = scmp.ne.s32.totalorder %s142, %s144
      %p148 = scmp.eq.s32.totalorder %s24, 0
      %p149 = por %p147, %p148
      %p150 = scmp.ne.s32.totalorder %s142, %s144
      %p151 = scmp.eq.s32.totalorder %s29, 1
      %p152 = por %p150, %p151
      %p153 = scmp.ne.s32.totalorder %s144, %s145
      %p154 = scmp.eq.s32.totalorder %s29, 0
      %p155 = por %p153, %p154
      %p156 = scmp.ne.s32.totalorder %s144, %s145
      %p157 = scmp.eq.s32.totalorder %s30, 1
      %p158 = por %p156, %p157
      %p160 = scmp.ne.s32.totalorder %s145, %s159
      %p161 = scmp.eq.s32.totalorder %s30, 0
      %p162 = por %p160, %p161
      %s164 = sadd.s32 %s163, 1
      %p167 = scmp.eq.s32.totalorder %s24, 1
      %p168 = scmp.ne.s32.totalorder %s163, %s165
      %p169 = scmp.eq.s32.totalorder %s24, 0
      %p170 = por %p168, %p169
      %p171 = scmp.ne.s32.totalorder %s163, %s165
      %p172 = scmp.eq.s32.totalorder %s29, 1
      %p173 = por %p171, %p172
      %p174 = scmp.ne.s32.totalorder %s165, %s166
      %p175 = scmp.eq.s32.totalorder %s29, 0
      %p176 = por %p174, %p175
      %p177 = scmp.ne.s32.totalorder %s165, %s166
      %p178 = scmp.eq.s32.totalorder %s30, 1
      %p179 = por %p177, %p178
      %p181 = scmp.ne.s32.totalorder %s166, %s180
      %p182 = scmp.eq.s32.totalorder %s30, 0
      %p183 = por %p181, %p182
      %s185 = sadd.s32 %s184, 1
      %p188 = scmp.eq.s32.totalorder %s24, 1
      %p189 = scmp.ne.s32.totalorder %s184, %s186
      %p190 = scmp.eq.s32.totalorder %s24, 0
      %p191 = por %p189, %p190
      %p192 = scmp.ne.s32.totalorder %s184, %s186
      %p193 = scmp.eq.s32.totalorder %s29, 1
      %p194 = por %p192, %p193
      %p195 = scmp.ne.s32.totalorder %s186, %s187
      %p196 = scmp.eq.s32.totalorder %s29, 0
      %p197 = por %p195, %p196
      %p198 = scmp.ne.s32.totalorder %s186, %s187
      %p199 = scmp.eq.s32.totalorder %s30, 1
      %p200 = por %p198, %p199
      %p202 = scmp.ne.s32.totalorder %s187, %s201
      %p203 = scmp.eq.s32.totalorder %s30, 0
      %p204 = por %p202, %p203
      %s206 = sadd.s32 %s205, 1
      %p209 = scmp.eq.s32.totalorder %s24, 1
      %p210 = scmp.ne.s32.totalorder %s205, %s207
      %p211 = scmp.eq.s32.totalorder %s24, 0
      %p212 = por %p210, %p211
      %p213 = scmp.ne.s32.totalorder %s205, %s207
      %p214 = scmp.eq.s32.totalorder %s29, 1
      %p215 = por %p213, %p214
      %p216 = scmp.ne.s32.totalorder %s207, %s208
      %p217 = scmp.eq.s32.totalorder %s29, 0
      %p218 = por %p216, %p217
      %p219 = scmp.ne.s32.totalorder %s207, %s208
      %p220 = scmp.eq.s32.totalorder %s30, 1
      %p221 = por %p219, %p220
      %p223 = scmp.ne.s32.totalorder %s208, %s222
      %p224 = scmp.eq.s32.totalorder %s30, 0
      %p225 = por %p223, %p224
      %s226 = ssub.s32 %s24, %s31
      %p227 = scmp.eq.s32.totalorder %s226, 0
      %s229 = sadd.s32 %s228, 1
      %s230 = scalar_select %p227, %s228, %s229
      %p233 = pneg %p227
      %p234 = scmp.eq.s32.totalorder %s24, 1
      %p235 = por %p233, %p234
      %p236 = scmp.ne.s32.totalorder %s228, %s231
      %p237 = scmp.eq.s32.totalorder %s24, 0
      %p238 = por %p236, %p237
      %p239 = scmp.ne.s32.totalorder %s228, %s231
      %p240 = scmp.eq.s32.totalorder %s29, 1
      %p241 = por %p239, %p240
      %p242 = scmp.ne.s32.totalorder %s231, %s232
      %p243 = scmp.eq.s32.totalorder %s29, 0
      %p244 = por %p242, %p243
      %p245 = scmp.ne.s32.totalorder %s231, %s232
      %p246 = scmp.eq.s32.totalorder %s30, 1
      %p247 = por %p245, %p246
      %p249 = scmp.ne.s32.totalorder %s232, %s248
      %p250 = scmp.eq.s32.totalorder %s30, 0
      %p251 = por %p249, %p250
      %p252 = scmp.le.s32.totalorder 1, %s24
      %p253 = scmp.lt.s32.totalorder %s24, 3
      %p254 = pnand %p252, %p253
      %p255 = pneg %p254
      // Predicated region
      $region9: #{tpu_custom_call.1} parent=5 // pred_check
        _
      $region10: #{tpu_custom_call.1} parent=5 // pred_check_branch
        %257 = sbr.rel (%p254) target = $region12
      $region11: #{tpu_custom_call.1} parent=5 // pred_region
        %s258 = ssub.s32 %s24, 1
        // Predicated region
        $region13: #{tpu_custom_call.1} parent=11 // pred_check
          %p259 = pneg %p71
        $region14: #{tpu_custom_call.1} parent=11 // pred_check_branch
          %261 = sbr.rel (%p259) target = $region16
        $region15: #{tpu_custom_call.1} parent=11 // pred_region
          %263 = vsyncadd [#allocation6], 0
          %s264 = sshll.u32 %s1, 4
          %s265 = int_to_ptr.hbm [resolvable:$true] %s264
          %s266 = sshll.u32 [#allocation5], 4
          %s267 = int_to_ptr.vmem [resolvable:$true] %s266
          %272 = dma.hbm_to_vmem [thread:$0]  %s265, 8192, %s267, [#allocation6], 256, 256, 16
        $region16: #{tpu_custom_call.1} parent=11 // pred_fallthru
          _
        // Predicated region
        $region17: #{tpu_custom_call.1} parent=11 // pred_check
          %p273 = pneg %p92
        $region18: #{tpu_custom_call.1} parent=11 // pred_check_branch
          %275 = sbr.rel (%p273) target = $region20
        $region19: #{tpu_custom_call.1} parent=11 // pred_region
          %277 = vsyncadd [#allocation6], 0
          %s279 = sshll.u32 %s2, 4
          %s280 = int_to_ptr.hbm [resolvable:$true] %s279
          %s281 = sshll.u32 [#allocation7], 4
          %s282 = int_to_ptr.vmem [resolvable:$true] %s281
          %284 = dma.hbm_to_vmem [thread:$0]  %s280, 64, %s282, [#allocation6]
        $region20: #{tpu_custom_call.1} parent=11 // pred_fallthru
          _
        // Predicated region
        $region21: #{tpu_custom_call.1} parent=11 // pred_check
          %p285 = pneg %p113
        $region22: #{tpu_custom_call.1} parent=11 // pred_check_branch
          %287 = sbr.rel (%p285) target = $region24
        $region23: #{tpu_custom_call.1} parent=11 // pred_region
          %289 = vsyncadd [#allocation9], 0
          %s290 = sshll.u32 %s3, 4
          %s291 = int_to_ptr.hbm [resolvable:$true] %s290
          %s292 = sshll.u32 [#allocation8], 4
          %s293 = int_to_ptr.vmem [resolvable:$true] %s292
          %298 = dma.hbm_to_vmem [thread:$0]  %s291, 16384, %s293, [#allocation9], 256, 256, 16
        $region24: #{tpu_custom_call.1} parent=11 // pred_fallthru
          _
        // Predicated region
        $region25: #{tpu_custom_call.1} parent=11 // pred_check
          %p299 = pneg %p134
        $region26: #{tpu_custom_call.1} parent=11 // pred_check_branch
          %301 = sbr.rel (%p299) target = $region28
        $region27: #{tpu_custom_call.1} parent=11 // pred_region
          %303 = vsyncadd [#allocation9], 0
          %s305 = sshll.u32 %s4, 4
          %s306 = int_to_ptr.hbm [resolvable:$true] %s305
          %s307 = sshll.u32 [#allocation10], 4
          %s308 = int_to_ptr.vmem [resolvable:$true] %s307
          %310 = dma.hbm_to_vmem [thread:$0]  %s306, 64, %s308, [#allocation9]
        $region28: #{tpu_custom_call.1} parent=11 // pred_fallthru
          _
        // Predicated region
        $region29: #{tpu_custom_call.1} parent=11 // pred_check
          %p311 = pneg %p155
        $region30: #{tpu_custom_call.1} parent=11 // pred_check_branch
          %313 = sbr.rel (%p311) target = $region32
        $region31: #{tpu_custom_call.1} parent=11 // pred_region
          %315 = vsyncadd [#allocation12], 0
          %s316 = sshll.u32 %s5, 4
          %s317 = int_to_ptr.hbm [resolvable:$true] %s316
          %s318 = sshll.u32 [#allocation11], 4
          %s319 = int_to_ptr.vmem [resolvable:$true] %s318
          %324 = dma.hbm_to_vmem [thread:$0]  %s317, 4096, %s319, [#allocation12], 64, 64, 4
        $region32: #{tpu_custom_call.1} parent=11 // pred_fallthru
          _
        // Predicated region
        $region33: #{tpu_custom_call.1} parent=11 // pred_check
          %p325 = pneg %p176
        $region34: #{tpu_custom_call.1} parent=11 // pred_check_branch
          %327 = sbr.rel (%p325) target = $region36
        $region35: #{tpu_custom_call.1} parent=11 // pred_region
          _
        $region36: #{tpu_custom_call.1} parent=11 // pred_fallthru
          _
        // Predicated region
        $region37: #{tpu_custom_call.1} parent=11 // pred_check
          %p328 = pneg %p197
        $region38: #{tpu_custom_call.1} parent=11 // pred_check_branch
          %330 = sbr.rel (%p328) target = $region40
        $region39: #{tpu_custom_call.1} parent=11 // pred_region
          %332 = vsyncadd [#allocation12], 0
          %s333 = sshll.u32 %s7, 4
          %s334 = int_to_ptr.hbm [resolvable:$true] %s333
          %s335 = sshll.u32 [#allocation13], 4
          %s336 = int_to_ptr.vmem [resolvable:$true] %s335
          %341 = dma.hbm_to_vmem [thread:$0]  %s334, 1024, %s336, [#allocation12], 64, 64, 4
        $region40: #{tpu_custom_call.1} parent=11 // pred_fallthru
          _
        // Predicated region
        $region41: #{tpu_custom_call.1} parent=11 // pred_check
          %p342 = pneg %p218
        $region42: #{tpu_custom_call.1} parent=11 // pred_check_branch
          %344 = sbr.rel (%p342) target = $region44
        $region43: #{tpu_custom_call.1} parent=11 // pred_region
          _
        $region44: #{tpu_custom_call.1} parent=11 // pred_fallthru
          _
      $region12: #{tpu_custom_call.1} parent=5 // pred_fallthru
        _
      %p345 = scmp.lt.s32.totalorder %s24, 2
      // Predicated region
      $region45: #{tpu_custom_call.1} parent=5 // pred_check
        %p346 = pneg %p345
      $region46: #{tpu_custom_call.1} parent=5 // pred_check_branch
        %348 = sbr.rel (%p346) target = $region48
      $region47: #{tpu_custom_call.1} parent=5 // pred_region
        // Predicated region
        $region49: #{tpu_custom_call.1} parent=47 // pred_check
          %p349 = pneg %p44
        $region50: #{tpu_custom_call.1} parent=47 // pred_check_branch
          %351 = sbr.rel (%p349) target = $region52
        $region51: #{tpu_custom_call.1} parent=47 // pred_region
          %s352 = sand.u32 %s34, 1
          %s353 = scalar_lea.sflag [#allocation3], %s352
          %s354 = sand.u32 %s34, 1
          %s355 = smul.addr %s354, 16
          %s356 = scalar_lea.vmem [#allocation2], %s355
          %358 = vsyncadd %s353, 0
          %s359 = smul.addr %s24, 2
          %s360 = smul.addr %s359, 8
          %s361 = scalar_lea.hbm %s0, %s360
          %s363 = sshll.u32 %s361, 4
          %s364 = int_to_ptr.hbm [resolvable:$true] %s363
          %s365 = sshll.u32 %s356, 4
          %s366 = int_to_ptr.vmem [resolvable:$true] %s365
          %368 = dma.hbm_to_vmem [thread:$0]  %s364, 256, %s366, %s353
        $region52: #{tpu_custom_call.1} parent=47 // pred_fallthru
          _
      $region48: #{tpu_custom_call.1} parent=5 // pred_fallthru
        _
      %p369 = scmp.le.s32.totalorder 1, %s24
      %p370 = scmp.lt.s32.totalorder %s24, 3
      %p371 = pnand %p369, %p370
      %p372 = pneg %p371
      // Predicated region
      $region53: #{tpu_custom_call.1} parent=5 // pred_check
        _
      $region54: #{tpu_custom_call.1} parent=5 // pred_check_branch
        %374 = sbr.rel (%p371) target = $region56
      $region55: #{tpu_custom_call.1} parent=5 // pred_region
        %s375 = ssub.s32 %s24, 1
        %s376 = sand.u32 %s37, 1
        %s377 = scalar_lea.sflag [#allocation3], %s376
        %s378 = sand.u32 %s37, 1
        %s379 = smul.addr %s378, 16
        %s380 = scalar_lea.vmem [#allocation2], %s379
        // Predicated region
        $region57: #{tpu_custom_call.1} parent=55 // pred_check
          %p381 = pneg %p50
        $region58: #{tpu_custom_call.1} parent=55 // pred_check_branch
          %383 = sbr.rel (%p381) target = $region60
        $region59: #{tpu_custom_call.1} parent=55 // pred_region
          %385 = dma.done %s377, 256
        $region60: #{tpu_custom_call.1} parent=55 // pred_fallthru
          _
        // Predicated region
        $region61: #{tpu_custom_call.1} parent=55 // pred_check
          %p386 = pneg %p71
        $region62: #{tpu_custom_call.1} parent=55 // pred_check_branch
          %388 = sbr.rel (%p386) target = $region64
        $region63: #{tpu_custom_call.1} parent=55 // pred_region
          %390 = dma.done [#allocation6], 8192
        $region64: #{tpu_custom_call.1} parent=55 // pred_fallthru
          _
        // Predicated region
        $region65: #{tpu_custom_call.1} parent=55 // pred_check
          %p391 = pneg %p92
        $region66: #{tpu_custom_call.1} parent=55 // pred_check_branch
          %393 = sbr.rel (%p391) target = $region68
        $region67: #{tpu_custom_call.1} parent=55 // pred_region
          %395 = dma.done [#allocation6], 64
        $region68: #{tpu_custom_call.1} parent=55 // pred_fallthru
          _
        // Predicated region
        $region69: #{tpu_custom_call.1} parent=55 // pred_check
          %p396 = pneg %p113
        $region70: #{tpu_custom_call.1} parent=55 // pred_check_branch
          %398 = sbr.rel (%p396) target = $region72
        $region71: #{tpu_custom_call.1} parent=55 // pred_region
          %400 = dma.done [#allocation9], 16384
        $region72: #{tpu_custom_call.1} parent=55 // pred_fallthru
          _
        // Predicated region
        $region73: #{tpu_custom_call.1} parent=55 // pred_check
          %p401 = pneg %p134
        $region74: #{tpu_custom_call.1} parent=55 // pred_check_branch
          %403 = sbr.rel (%p401) target = $region76
        $region75: #{tpu_custom_call.1} parent=55 // pred_region
          %405 = dma.done [#allocation9], 64
        $region76: #{tpu_custom_call.1} parent=55 // pred_fallthru
          _
        // Predicated region
        $region77: #{tpu_custom_call.1} parent=55 // pred_check
          %p406 = pneg %p155
        $region78: #{tpu_custom_call.1} parent=55 // pred_check_branch
          %408 = sbr.rel (%p406) target = $region80
        $region79: #{tpu_custom_call.1} parent=55 // pred_region
          %410 = dma.done [#allocation12], 4096
        $region80: #{tpu_custom_call.1} parent=55 // pred_fallthru
          _
        // Predicated region
        $region81: #{tpu_custom_call.1} parent=55 // pred_check
          %p411 = pneg %p197
        $region82: #{tpu_custom_call.1} parent=55 // pred_check_branch
          %413 = sbr.rel (%p411) target = $region84
        $region83: #{tpu_custom_call.1} parent=55 // pred_region
          %415 = dma.done [#allocation12], 1024
        $region84: #{tpu_custom_call.1} parent=55 // pred_fallthru
          _
        %s416 = sand.u32 %s37, 1
        %s417 = scalar_lea.sflag [#allocation3], %s416
        %s418 = sand.u32 %s37, 1
        %s419 = smul.addr %s418, 16
        %s420 = scalar_lea.vmem [#allocation2], %s419
        %p421 = pneg %p50
        %p422 = pneg %p47
        %p423 = pneg %p71
        %p424 = pneg %p68
        %p425 = pneg %p92
        %p426 = pneg %p89
        %p427 = pneg %p113
        %p428 = pneg %p110
        %p429 = pneg %p134
        %p430 = pneg %p131
        %p431 = pneg %p155
        %p432 = pneg %p152
        %p433 = pneg %p176
        %p434 = pneg %p173
        %p435 = pneg %p197
        %p436 = pneg %p194
        %p437 = pneg %p218
        %p438 = pneg %p215
        %p439 = pneg %p244
        %p440 = pneg %p241
        %s441 = sand.u32 %s231, 1
        %s442 = scalar_lea.sflag [#allocation4], %s441
        %s443 = sand.u32 %s231, 1
        %s444 = smul.addr %s443, 8
        %s445 = scalar_lea.vmem [#allocation14], %s444
        %v446 = vld [vmem:[%s380] sm:$0xff]
        %v447 = vld [vmem:[%s380 + $0x8] sm:$0xff]
        %v448 = vpack.c.bf16 %v446, %v446
        %v449 = vpack.c.bf16 %v447, %v447
        %v450 = vld [vmem:[#allocation5] sm:$0xff]
        %v451 = vld [vmem:[#allocation5 + $0x8] sm:$0xff]
        %v452 = vld [vmem:[#allocation5 + $0x10] sm:$0xff]
        %v453 = vld [vmem:[#allocation5 + $0x18] sm:$0xff]
        %v454 = vld [vmem:[#allocation5 + $0x20] sm:$0xff]
        %v455 = vld [vmem:[#allocation5 + $0x28] sm:$0xff]
        %v456 = vld [vmem:[#allocation5 + $0x30] sm:$0xff]
        %v457 = vld [vmem:[#allocation5 + $0x38] sm:$0xff]
        %v458 = vld [vmem:[#allocation5 + $0x40] sm:$0xff]
        %v459 = vld [vmem:[#allocation5 + $0x48] sm:$0xff]
        %v460 = vld [vmem:[#allocation5 + $0x50] sm:$0xff]
        %v461 = vld [vmem:[#allocation5 + $0x58] sm:$0xff]
        %v462 = vld [vmem:[#allocation5 + $0x60] sm:$0xff]
        %v463 = vld [vmem:[#allocation5 + $0x68] sm:$0xff]
        %v464 = vld [vmem:[#allocation5 + $0x70] sm:$0xff]
        %v465 = vld [vmem:[#allocation5 + $0x78] sm:$0xff]
        %v466 = vld [vmem:[#allocation5 + $0x80] sm:$0xff]
        %v467 = vld [vmem:[#allocation5 + $0x88] sm:$0xff]
        %v468 = vld [vmem:[#allocation5 + $0x90] sm:$0xff]
        %v469 = vld [vmem:[#allocation5 + $0x98] sm:$0xff]
        %v470 = vld [vmem:[#allocation5 + $0xa0] sm:$0xff]
        %v471 = vld [vmem:[#allocation5 + $0xa8] sm:$0xff]
        %v472 = vld [vmem:[#allocation5 + $0xb0] sm:$0xff]
        %v473 = vld [vmem:[#allocation5 + $0xb8] sm:$0xff]
        %v474 = vld [vmem:[#allocation5 + $0xc0] sm:$0xff]
        %v475 = vld [vmem:[#allocation5 + $0xc8] sm:$0xff]
        %v476 = vld [vmem:[#allocation5 + $0xd0] sm:$0xff]
        %v477 = vld [vmem:[#allocation5 + $0xd8] sm:$0xff]
        %v478 = vld [vmem:[#allocation5 + $0xe0] sm:$0xff]
        %v479 = vld [vmem:[#allocation5 + $0xe8] sm:$0xff]
        %v480 = vld [vmem:[#allocation5 + $0xf0] sm:$0xff]
        %v481 = vld [vmem:[#allocation5 + $0xf8] sm:$0xff]
        %v482 = vld [vmem:[#allocation5 + $0x100] sm:$0xff]
        %v483 = vld [vmem:[#allocation5 + $0x108] sm:$0xff]
        %v484 = vld [vmem:[#allocation5 + $0x110] sm:$0xff]
        %v485 = vld [vmem:[#allocation5 + $0x118] sm:$0xff]
        %v486 = vld [vmem:[#allocation5 + $0x120] sm:$0xff]
        %v487 = vld [vmem:[#allocation5 + $0x128] sm:$0xff]
        %v488 = vld [vmem:[#allocation5 + $0x130] sm:$0xff]
        %v489 = vld [vmem:[#allocation5 + $0x138] sm:$0xff]
        %v490 = vld [vmem:[#allocation5 + $0x140] sm:$0xff]
        %v491 = vld [vmem:[#allocation5 + $0x148] sm:$0xff]
        %v492 = vld [vmem:[#allocation5 + $0x150] sm:$0xff]
        %v493 = vld [vmem:[#allocation5 + $0x158] sm:$0xff]
        %v494 = vld [vmem:[#allocation5 + $0x160] sm:$0xff]
        %v495 = vld [vmem:[#allocation5 + $0x168] sm:$0xff]
        %v496 = vld [vmem:[#allocation5 + $0x170] sm:$0xff]
        %v497 = vld [vmem:[#allocation5 + $0x178] sm:$0xff]
        %v498 = vld [vmem:[#allocation5 + $0x180] sm:$0xff]
        %v499 = vld [vmem:[#allocation5 + $0x188] sm:$0xff]
        %v500 = vld [vmem:[#allocation5 + $0x190] sm:$0xff]
        %v501 = vld [vmem:[#allocation5 + $0x198] sm:$0xff]
        %v502 = vld [vmem:[#allocation5 + $0x1a0] sm:$0xff]
        %v503 = vld [vmem:[#allocation5 + $0x1a8] sm:$0xff]
        %v504 = vld [vmem:[#allocation5 + $0x1b0] sm:$0xff]
        %v505 = vld [vmem:[#allocation5 + $0x1b8] sm:$0xff]
        %v506 = vld [vmem:[#allocation5 + $0x1c0] sm:$0xff]
        %v507 = vld [vmem:[#allocation5 + $0x1c8] sm:$0xff]
        %v508 = vld [vmem:[#allocation5 + $0x1d0] sm:$0xff]
        %v509 = vld [vmem:[#allocation5 + $0x1d8] sm:$0xff]
        %v510 = vld [vmem:[#allocation5 + $0x1e0] sm:$0xff]
        %v511 = vld [vmem:[#allocation5 + $0x1e8] sm:$0xff]
        %v512 = vld [vmem:[#allocation5 + $0x1f0] sm:$0xff]
        %v513 = vld [vmem:[#allocation5 + $0x1f8] sm:$0xff]
        %v514 = vld [vmem:[#allocation7] sm:$0xf]
        %v516 = vperm.slane %v514, 0
        %v517 = vperm.slane %v514, 1
        %v518 = vperm.slane %v514, 2
        %v519 = vperm.slane %v514, 3
        %v588 = vunpack.c.l.b16 %v450
        %v589 = vunpack.c.h.b16 %v450
        %v590 = vunpack.c.l.b16 %v451
        %v591 = vunpack.c.h.b16 %v451
        %v592 = vunpack.c.l.b16 %v452
        %v593 = vunpack.c.h.b16 %v452
        %v594 = vunpack.c.l.b16 %v453
        %v595 = vunpack.c.h.b16 %v453
        %v596 = vunpack.c.l.b16 %v454
        %v597 = vunpack.c.h.b16 %v454
        %v598 = vunpack.c.l.b16 %v455
        %v599 = vunpack.c.h.b16 %v455
        %v600 = vunpack.c.l.b16 %v456
        %v601 = vunpack.c.h.b16 %v456
        %v602 = vunpack.c.l.b16 %v457
        %v603 = vunpack.c.h.b16 %v457
        %v604 = vunpack.c.l.b16 %v458
        %v605 = vunpack.c.h.b16 %v458
        %v606 = vunpack.c.l.b16 %v459
        %v607 = vunpack.c.h.b16 %v459
        %v608 = vunpack.c.l.b16 %v460
        %v609 = vunpack.c.h.b16 %v460
        %v610 = vunpack.c.l.b16 %v461
        %v611 = vunpack.c.h.b16 %v461
        %v612 = vunpack.c.l.b16 %v462
        %v613 = vunpack.c.h.b16 %v462
        %v614 = vunpack.c.l.b16 %v463
        %v615 = vunpack.c.h.b16 %v463
        %v616 = vunpack.c.l.b16 %v464
        %v617 = vunpack.c.h.b16 %v464
        %v618 = vunpack.c.l.b16 %v465
        %v619 = vunpack.c.h.b16 %v465
        %v620 = vunpack.c.l.b16 %v466
        %v621 = vunpack.c.h.b16 %v466
        %v622 = vunpack.c.l.b16 %v467
        %v623 = vunpack.c.h.b16 %v467
        %v624 = vunpack.c.l.b16 %v468
        %v625 = vunpack.c.h.b16 %v468
        %v626 = vunpack.c.l.b16 %v469
        %v627 = vunpack.c.h.b16 %v469
        %v628 = vunpack.c.l.b16 %v470
        %v629 = vunpack.c.h.b16 %v470
        %v630 = vunpack.c.l.b16 %v471
        %v631 = vunpack.c.h.b16 %v471
        %v632 = vunpack.c.l.b16 %v472
        %v633 = vunpack.c.h.b16 %v472
        %v634 = vunpack.c.l.b16 %v473
        %v635 = vunpack.c.h.b16 %v473
        %v636 = vunpack.c.l.b16 %v474
        %v637 = vunpack.c.h.b16 %v474
        %v638 = vunpack.c.l.b16 %v475
        %v639 = vunpack.c.h.b16 %v475
        %v640 = vunpack.c.l.b16 %v476
        %v641 = vunpack.c.h.b16 %v476
        %v642 = vunpack.c.l.b16 %v477
        %v643 = vunpack.c.h.b16 %v477
        %v644 = vunpack.c.l.b16 %v478
        %v645 = vunpack.c.h.b16 %v478
        %v646 = vunpack.c.l.b16 %v479
        %v647 = vunpack.c.h.b16 %v479
        %v648 = vunpack.c.l.b16 %v480
        %v649 = vunpack.c.h.b16 %v480
        %v650 = vunpack.c.l.b16 %v481
        %v651 = vunpack.c.h.b16 %v481
        %v652 = vunpack.c.l.b16 %v482
        %v653 = vunpack.c.h.b16 %v482
        %v654 = vunpack.c.l.b16 %v483
        %v655 = vunpack.c.h.b16 %v483
        %v656 = vunpack.c.l.b16 %v484
        %v657 = vunpack.c.h.b16 %v484
        %v658 = vunpack.c.l.b16 %v485
        %v659 = vunpack.c.h.b16 %v485
        %v660 = vunpack.c.l.b16 %v486
        %v661 = vunpack.c.h.b16 %v486
        %v662 = vunpack.c.l.b16 %v487
        %v663 = vunpack.c.h.b16 %v487
        %v664 = vunpack.c.l.b16 %v488
        %v665 = vunpack.c.h.b16 %v488
        %v666 = vunpack.c.l.b16 %v489
        %v667 = vunpack.c.h.b16 %v489
        %v668 = vunpack.c.l.b16 %v490
        %v669 = vunpack.c.h.b16 %v490
        %v670 = vunpack.c.l.b16 %v491
        %v671 = vunpack.c.h.b16 %v491
        %v672 = vunpack.c.l.b16 %v492
        %v673 = vunpack.c.h.b16 %v492
        %v674 = vunpack.c.l.b16 %v493
        %v675 = vunpack.c.h.b16 %v493
        %v676 = vunpack.c.l.b16 %v494
        %v677 = vunpack.c.h.b16 %v494
        %v678 = vunpack.c.l.b16 %v495
        %v679 = vunpack.c.h.b16 %v495
        %v680 = vunpack.c.l.b16 %v496
        %v681 = vunpack.c.h.b16 %v496
        %v682 = vunpack.c.l.b16 %v497
        %v683 = vunpack.c.h.b16 %v497
        %v684 = vunpack.c.l.b16 %v498
        %v685 = vunpack.c.h.b16 %v498
        %v686 = vunpack.c.l.b16 %v499
        %v687 = vunpack.c.h.b16 %v499
        %v688 = vunpack.c.l.b16 %v500
        %v689 = vunpack.c.h.b16 %v500
        %v690 = vunpack.c.l.b16 %v501
        %v691 = vunpack.c.h.b16 %v501
        %v692 = vunpack.c.l.b16 %v502
        %v693 = vunpack.c.h.b16 %v502
        %v694 = vunpack.c.l.b16 %v503
        %v695 = vunpack.c.h.b16 %v503
        %v696 = vunpack.c.l.b16 %v504
        %v697 = vunpack.c.h.b16 %v504
        %v698 = vunpack.c.l.b16 %v505
        %v699 = vunpack.c.h.b16 %v505
        %v700 = vunpack.c.l.b16 %v506
        %v701 = vunpack.c.h.b16 %v506
        %v702 = vunpack.c.l.b16 %v507
        %v703 = vunpack.c.h.b16 %v507
        %v704 = vunpack.c.l.b16 %v508
        %v705 = vunpack.c.h.b16 %v508
        %v706 = vunpack.c.l.b16 %v509
        %v707 = vunpack.c.h.b16 %v509
        %v708 = vunpack.c.l.b16 %v510
        %v709 = vunpack.c.h.b16 %v510
        %v710 = vunpack.c.l.b16 %v511
        %v711 = vunpack.c.h.b16 %v511
        %v712 = vunpack.c.l.b16 %v512
        %v713 = vunpack.c.h.b16 %v512
        %v714 = vunpack.c.l.b16 %v513
        %v715 = vunpack.c.h.b16 %v513
        %v716 = vpack.c.b16 %v592, %v588
        %v717 = vpack.c.b16 %v593, %v589
        %v718 = vpack.c.b16 %v594, %v590
        %v719 = vpack.c.b16 %v595, %v591
        %v720 = vpack.c.b16 %v600, %v596
        %v721 = vpack.c.b16 %v601, %v597
        %v722 = vpack.c.b16 %v602, %v598
        %v723 = vpack.c.b16 %v603, %v599
        %v724 = vpack.c.b16 %v608, %v604
        %v725 = vpack.c.b16 %v609, %v605
        %v726 = vpack.c.b16 %v610, %v606
        %v727 = vpack.c.b16 %v611, %v607
        %v728 = vpack.c.b16 %v616, %v612
        %v729 = vpack.c.b16 %v617, %v613
        %v730 = vpack.c.b16 %v618, %v614
        %v731 = vpack.c.b16 %v619, %v615
        %v732 = vpack.c.b16 %v624, %v620
        %v733 = vpack.c.b16 %v625, %v621
        %v734 = vpack.c.b16 %v626, %v622
        %v735 = vpack.c.b16 %v627, %v623
        %v736 = vpack.c.b16 %v632, %v628
        %v737 = vpack.c.b16 %v633, %v629
        %v738 = vpack.c.b16 %v634, %v630
        %v739 = vpack.c.b16 %v635, %v631
        %v740 = vpack.c.b16 %v640, %v636
        %v741 = vpack.c.b16 %v641, %v637
        %v742 = vpack.c.b16 %v642, %v638
        %v743 = vpack.c.b16 %v643, %v639
        %v744 = vpack.c.b16 %v648, %v644
        %v745 = vpack.c.b16 %v649, %v645
        %v746 = vpack.c.b16 %v650, %v646
        %v747 = vpack.c.b16 %v651, %v647
        %v748 = vpack.c.b16 %v656, %v652
        %v749 = vpack.c.b16 %v657, %v653
        %v750 = vpack.c.b16 %v658, %v654
        %v751 = vpack.c.b16 %v659, %v655
        %v752 = vpack.c.b16 %v664, %v660
        %v753 = vpack.c.b16 %v665, %v661
        %v754 = vpack.c.b16 %v666, %v662
        %v755 = vpack.c.b16 %v667, %v663
        %v756 = vpack.c.b16 %v672, %v668
        %v757 = vpack.c.b16 %v673, %v669
        %v758 = vpack.c.b16 %v674, %v670
        %v759 = vpack.c.b16 %v675, %v671
        %v760 = vpack.c.b16 %v680, %v676
        %v761 = vpack.c.b16 %v681, %v677
        %v762 = vpack.c.b16 %v682, %v678
        %v763 = vpack.c.b16 %v683, %v679
        %v764 = vpack.c.b16 %v688, %v684
        %v765 = vpack.c.b16 %v689, %v685
        %v766 = vpack.c.b16 %v690, %v686
        %v767 = vpack.c.b16 %v691, %v687
        %v768 = vpack.c.b16 %v696, %v692
        %v769 = vpack.c.b16 %v697, %v693
        %v770 = vpack.c.b16 %v698, %v694
        %v771 = vpack.c.b16 %v699, %v695
        %v772 = vpack.c.b16 %v704, %v700
        %v773 = vpack.c.b16 %v705, %v701
        %v774 = vpack.c.b16 %v706, %v702
        %v775 = vpack.c.b16 %v707, %v703
        %v776 = vpack.c.b16 %v712, %v708
        %v777 = vpack.c.b16 %v713, %v709
        %v778 = vpack.c.b16 %v714, %v710
        %v779 = vpack.c.b16 %v715, %v711
        %844 = vmatpush.bf16.msra.mxu0 %v744
        %845 = vmatpush.bf16.msra.mxu0 %v740
        %846 = vmatpush.bf16.msra.mxu0 %v736
        %847 = vmatpush.bf16.msra.mxu0 %v732
        %848 = vmatpush.bf16.msra.mxu0 %v728
        %849 = vmatpush.bf16.msra.mxu0 %v724
        %850 = vmatpush.bf16.msra.mxu0 %v720
        %851 = vmatpush.bf16.msra.mxu0 %v716
        %852 = vmatmul.bf16.gmra.mxu0 %v448
        %v853 = vpop.f32.mrf.mxu0
        %v854 = vadd.f32 %v516, %v853
        %v855 = vpop.f32.mrf.mxu0
        %856 = vdwg.mxu0
        %857 = vmatpush.bf16.msra.mxu0 %v776
        %858 = vmatpush.bf16.msra.mxu0 %v772
        %859 = vmatpush.bf16.msra.mxu0 %v768
        %860 = vmatpush.bf16.msra.mxu0 %v764
        %861 = vmatpush.bf16.msra.mxu0 %v760
        %862 = vmatpush.bf16.msra.mxu0 %v756
        %863 = vmatpush.bf16.msra.mxu0 %v752
        %864 = vmatpush.bf16.msra.mxu0 %v748
        %865 = vmatmul.bf16.gmra.mxu0 %v449
        %v866 = vpop.f32.mrf.mxu0
        %v867 = vadd.f32 %v854, %v866
        %v868 = vpop.f32.mrf.mxu0
        %869 = vdwg.mxu0
        %870 = vmatpush.bf16.msra.mxu0 %v745
        %871 = vmatpush.bf16.msra.mxu0 %v741
        %872 = vmatpush.bf16.msra.mxu0 %v737
        %873 = vmatpush.bf16.msra.mxu0 %v733
        %874 = vmatpush.bf16.msra.mxu0 %v729
        %875 = vmatpush.bf16.msra.mxu0 %v725
        %876 = vmatpush.bf16.msra.mxu0 %v721
        %877 = vmatpush.bf16.msra.mxu0 %v717
        %878 = vmatmul.bf16.gmra.mxu0 %v448
        %v879 = vpop.f32.mrf.mxu0
        %v880 = vadd.f32 %v517, %v879
        %v881 = vpop.f32.mrf.mxu0
        %882 = vdwg.mxu0
        %883 = vmatpush.bf16.msra.mxu0 %v777
        %884 = vmatpush.bf16.msra.mxu0 %v773
        %885 = vmatpush.bf16.msra.mxu0 %v769
        %886 = vmatpush.bf16.msra.mxu0 %v765
        %887 = vmatpush.bf16.msra.mxu0 %v761
        %888 = vmatpush.bf16.msra.mxu0 %v757
        %889 = vmatpush.bf16.msra.mxu0 %v753
        %890 = vmatpush.bf16.msra.mxu0 %v749
        %891 = vmatmul.bf16.gmra.mxu0 %v449
        %v892 = vpop.f32.mrf.mxu0
        %v893 = vadd.f32 %v880, %v892
        %v894 = vpop.f32.mrf.mxu0
        %895 = vdwg.mxu0
        %896 = vmatpush.bf16.msra.mxu0 %v746
        %897 = vmatpush.bf16.msra.mxu0 %v742
        %898 = vmatpush.bf16.msra.mxu0 %v738
        %899 = vmatpush.bf16.msra.mxu0 %v734
        %900 = vmatpush.bf16.msra.mxu0 %v730
        %901 = vmatpush.bf16.msra.mxu0 %v726
        %902 = vmatpush.bf16.msra.mxu0 %v722
        %903 = vmatpush.bf16.msra.mxu0 %v718
        %904 = vmatmul.bf16.gmra.mxu0 %v448
        %v905 = vpop.f32.mrf.mxu0
        %v906 = vadd.f32 %v518, %v905
        %v907 = vpop.f32.mrf.mxu0
        %908 = vdwg.mxu0
        %909 = vmatpush.bf16.msra.mxu0 %v778
        %910 = vmatpush.bf16.msra.mxu0 %v774
        %911 = vmatpush.bf16.msra.mxu0 %v770
        %912 = vmatpush.bf16.msra.mxu0 %v766
        %913 = vmatpush.bf16.msra.mxu0 %v762
        %914 = vmatpush.bf16.msra.mxu0 %v758
        %915 = vmatpush.bf16.msra.mxu0 %v754
        %916 = vmatpush.bf16.msra.mxu0 %v750
        %917 = vmatmul.bf16.gmra.mxu0 %v449
        %v918 = vpop.f32.mrf.mxu0
        %v919 = vadd.f32 %v906, %v918
        %v920 = vpop.f32.mrf.mxu0
        %921 = vdwg.mxu0
        %922 = vmatpush.bf16.msra.mxu0 %v747
        %923 = vmatpush.bf16.msra.mxu0 %v743
        %924 = vmatpush.bf16.msra.mxu0 %v739
        %925 = vmatpush.bf16.msra.mxu0 %v735
        %926 = vmatpush.bf16.msra.mxu0 %v731
        %927 = vmatpush.bf16.msra.mxu0 %v727
        %928 = vmatpush.bf16.msra.mxu0 %v723
        %929 = vmatpush.bf16.msra.mxu0 %v719
        %930 = vmatmul.bf16.gmra.mxu0 %v448
        %v931 = vpop.f32.mrf.mxu0
        %v932 = vadd.f32 %v519, %v931
        %v933 = vpop.f32.mrf.mxu0
        %934 = vdwg.mxu0
        %935 = vmatpush.bf16.msra.mxu0 %v779
        %936 = vmatpush.bf16.msra.mxu0 %v775
        %937 = vmatpush.bf16.msra.mxu0 %v771
        %938 = vmatpush.bf16.msra.mxu0 %v767
        %939 = vmatpush.bf16.msra.mxu0 %v763
        %940 = vmatpush.bf16.msra.mxu0 %v759
        %941 = vmatpush.bf16.msra.mxu0 %v755
        %942 = vmatpush.bf16.msra.mxu0 %v751
        %943 = vmatmul.bf16.gmra.mxu0 %v449
        %v944 = vpop.f32.mrf.mxu0
        %v945 = vadd.f32 %v932, %v944
        %v946 = vpop.f32.mrf.mxu0
        %947 = vdwg.mxu0
        %v948 = vmax.f32 %v867, 0.0
        %v949 = vmax.f32 %v893, 0.0
        %v950 = vmax.f32 %v919, 0.0
        %v951 = vmax.f32 %v945, 0.0
        %v952 = vpack.c.bf16 %v948, %v948
        %v953 = vpack.c.bf16 %v949, %v949
        %v954 = vpack.c.bf16 %v950, %v950
        %v955 = vpack.c.bf16 %v951, %v951
        %v956 = vld [vmem:[#allocation8] sm:$0xff]
        %v957 = vld [vmem:[#allocation8 + $0x8] sm:$0xff]
        %v958 = vld [vmem:[#allocation8 + $0x10] sm:$0xff]
        %v959 = vld [vmem:[#allocation8 + $0x18] sm:$0xff]
        %v960 = vld [vmem:[#allocation8 + $0x20] sm:$0xff]
        %v961 = vld [vmem:[#allocation8 + $0x28] sm:$0xff]
        %v962 = vld [vmem:[#allocation8 + $0x30] sm:$0xff]
        %v963 = vld [vmem:[#allocation8 + $0x38] sm:$0xff]
        %v964 = vld [vmem:[#allocation8 + $0x40] sm:$0xff]
        %v965 = vld [vmem:[#allocation8 + $0x48] sm:$0xff]
        %v966 = vld [vmem:[#allocation8 + $0x50] sm:$0xff]
        %v967 = vld [vmem:[#allocation8 + $0x58] sm:$0xff]
        %v968 = vld [vmem:[#allocation8 + $0x60] sm:$0xff]
        %v969 = vld [vmem:[#allocation8 + $0x68] sm:$0xff]
        %v970 = vld [vmem:[#allocation8 + $0x70] sm:$0xff]
        %v971 = vld [vmem:[#allocation8 + $0x78] sm:$0xff]
        %v972 = vld [vmem:[#allocation8 + $0x80] sm:$0xff]
        %v973 = vld [vmem:[#allocation8 + $0x88] sm:$0xff]
        %v974 = vld [vmem:[#allocation8 + $0x90] sm:$0xff]
        %v975 = vld [vmem:[#allocation8 + $0x98] sm:$0xff]
        %v976 = vld [vmem:[#allocation8 + $0xa0] sm:$0xff]
        %v977 = vld [vmem:[#allocation8 + $0xa8] sm:$0xff]
        %v978 = vld [vmem:[#allocation8 + $0xb0] sm:$0xff]
        %v979 = vld [vmem:[#allocation8 + $0xb8] sm:$0xff]
        %v980 = vld [vmem:[#allocation8 + $0xc0] sm:$0xff]
        %v981 = vld [vmem:[#allocation8 + $0xc8] sm:$0xff]
        %v982 = vld [vmem:[#allocation8 + $0xd0] sm:$0xff]
        %v983 = vld [vmem:[#allocation8 + $0xd8] sm:$0xff]
        %v984 = vld [vmem:[#allocation8 + $0xe0] sm:$0xff]
        %v985 = vld [vmem:[#allocation8 + $0xe8] sm:$0xff]
        %v986 = vld [vmem:[#allocation8 + $0xf0] sm:$0xff]
        %v987 = vld [vmem:[#allocation8 + $0xf8] sm:$0xff]
        %v988 = vld [vmem:[#allocation8 + $0x100] sm:$0xff]
        %v989 = vld [vmem:[#allocation8 + $0x108] sm:$0xff]
        %v990 = vld [vmem:[#allocation8 + $0x110] sm:$0xff]
        %v991 = vld [vmem:[#allocation8 + $0x118] sm:$0xff]
        %v992 = vld [vmem:[#allocation8 + $0x120] sm:$0xff]
        %v993 = vld [vmem:[#allocation8 + $0x128] sm:$0xff]
        %v994 = vld [vmem:[#allocation8 + $0x130] sm:$0xff]
        %v995 = vld [vmem:[#allocation8 + $0x138] sm:$0xff]
        %v996 = vld [vmem:[#allocation8 + $0x140] sm:$0xff]
        %v997 = vld [vmem:[#allocation8 + $0x148] sm:$0xff]
        %v998 = vld [vmem:[#allocation8 + $0x150] sm:$0xff]
        %v999 = vld [vmem:[#allocation8 + $0x158] sm:$0xff]
        %v1000 = vld [vmem:[#allocation8 + $0x160] sm:$0xff]
        %v1001 = vld [vmem:[#allocation8 + $0x168] sm:$0xff]
        %v1002 = vld [vmem:[#allocation8 + $0x170] sm:$0xff]
        %v1003 = vld [vmem:[#allocation8 + $0x178] sm:$0xff]
        %v1004 = vld [vmem:[#allocation8 + $0x180] sm:$0xff]
        %v1005 = vld [vmem:[#allocation8 + $0x188] sm:$0xff]
        %v1006 = vld [vmem:[#allocation8 + $0x190] sm:$0xff]
        %v1007 = vld [vmem:[#allocation8 + $0x198] sm:$0xff]
        %v1008 = vld [vmem:[#allocation8 + $0x1a0] sm:$0xff]
        %v1009 = vld [vmem:[#allocation8 + $0x1a8] sm:$0xff]
        %v1010 = vld [vmem:[#allocation8 + $0x1b0] sm:$0xff]
        %v1011 = vld [vmem:[#allocation8 + $0x1b8] sm:$0xff]
        %v1012 = vld [vmem:[#allocation8 + $0x1c0] sm:$0xff]
        %v1013 = vld [vmem:[#allocation8 + $0x1c8] sm:$0xff]
        %v1014 = vld [vmem:[#allocation8 + $0x1d0] sm:$0xff]
        %v1015 = vld [vmem:[#allocation8 + $0x1d8] sm:$0xff]
        %v1016 = vld [vmem:[#allocation8 + $0x1e0] sm:$0xff]
        %v1017 = vld [vmem:[#allocation8 + $0x1e8] sm:$0xff]
        %v1018 = vld [vmem:[#allocation8 + $0x1f0] sm:$0xff]
        %v1019 = vld [vmem:[#allocation8 + $0x1f8] sm:$0xff]
        %v1020 = vld [vmem:[#allocation8 + $0x200] sm:$0xff]
        %v1021 = vld [vmem:[#allocation8 + $0x208] sm:$0xff]
        %v1022 = vld [vmem:[#allocation8 + $0x210] sm:$0xff]
        %v1023 = vld [vmem:[#allocation8 + $0x218] sm:$0xff]
        %v1024 = vld [vmem:[#allocation8 + $0x220] sm:$0xff]
        %v1025 = vld [vmem:[#allocation8 + $0x228] sm:$0xff]
        %v1026 = vld [vmem:[#allocation8 + $0x230] sm:$0xff]
        %v1027 = vld [vmem:[#allocation8 + $0x238] sm:$0xff]
        %v1028 = vld [vmem:[#allocation8 + $0x240] sm:$0xff]
        %v1029 = vld [vmem:[#allocation8 + $0x248] sm:$0xff]
        %v1030 = vld [vmem:[#allocation8 + $0x250] sm:$0xff]
        %v1031 = vld [vmem:[#allocation8 + $0x258] sm:$0xff]
        %v1032 = vld [vmem:[#allocation8 + $0x260] sm:$0xff]
        %v1033 = vld [vmem:[#allocation8 + $0x268] sm:$0xff]
        %v1034 = vld [vmem:[#allocation8 + $0x270] sm:$0xff]
        %v1035 = vld [vmem:[#allocation8 + $0x278] sm:$0xff]
        %v1036 = vld [vmem:[#allocation8 + $0x280] sm:$0xff]
        %v1037 = vld [vmem:[#allocation8 + $0x288] sm:$0xff]
        %v1038 = vld [vmem:[#allocation8 + $0x290] sm:$0xff]
        %v1039 = vld [vmem:[#allocation8 + $0x298] sm:$0xff]
        %v1040 = vld [vmem:[#allocation8 + $0x2a0] sm:$0xff]
        %v1041 = vld [vmem:[#allocation8 + $0x2a8] sm:$0xff]
        %v1042 = vld [vmem:[#allocation8 + $0x2b0] sm:$0xff]
        %v1043 = vld [vmem:[#allocation8 + $0x2b8] sm:$0xff]
        %v1044 = vld [vmem:[#allocation8 + $0x2c0] sm:$0xff]
        %v1045 = vld [vmem:[#allocation8 + $0x2c8] sm:$0xff]
        %v1046 = vld [vmem:[#allocation8 + $0x2d0] sm:$0xff]
        %v1047 = vld [vmem:[#allocation8 + $0x2d8] sm:$0xff]
        %v1048 = vld [vmem:[#allocation8 + $0x2e0] sm:$0xff]
        %v1049 = vld [vmem:[#allocation8 + $0x2e8] sm:$0xff]
        %v1050 = vld [vmem:[#allocation8 + $0x2f0] sm:$0xff]
        %v1051 = vld [vmem:[#allocation8 + $0x2f8] sm:$0xff]
        %v1052 = vld [vmem:[#allocation8 + $0x300] sm:$0xff]
        %v1053 = vld [vmem:[#allocation8 + $0x308] sm:$0xff]
        %v1054 = vld [vmem:[#allocation8 + $0x310] sm:$0xff]
        %v1055 = vld [vmem:[#allocation8 + $0x318] sm:$0xff]
        %v1056 = vld [vmem:[#allocation8 + $0x320] sm:$0xff]
        %v1057 = vld [vmem:[#allocation8 + $0x328] sm:$0xff]
        %v1058 = vld [vmem:[#allocation8 + $0x330] sm:$0xff]
        %v1059 = vld [vmem:[#allocation8 + $0x338] sm:$0xff]
        %v1060 = vld [vmem:[#allocation8 + $0x340] sm:$0xff]
        %v1061 = vld [vmem:[#allocation8 + $0x348] sm:$0xff]
        %v1062 = vld [vmem:[#allocation8 + $0x350] sm:$0xff]
        %v1063 = vld [vmem:[#allocation8 + $0x358] sm:$0xff]
        %v1064 = vld [vmem:[#allocation8 + $0x360] sm:$0xff]
        %v1065 = vld [vmem:[#allocation8 + $0x368] sm:$0xff]
        %v1066 = vld [vmem:[#allocation8 + $0x370] sm:$0xff]
        %v1067 = vld [vmem:[#allocation8 + $0x378] sm:$0xff]
        %v1068 = vld [vmem:[#allocation8 + $0x380] sm:$0xff]
        %v1069 = vld [vmem:[#allocation8 + $0x388] sm:$0xff]
        %v1070 = vld [vmem:[#allocation8 + $0x390] sm:$0xff]
        %v1071 = vld [vmem:[#allocation8 + $0x398] sm:$0xff]
        %v1072 = vld [vmem:[#allocation8 + $0x3a0] sm:$0xff]
        %v1073 = vld [vmem:[#allocation8 + $0x3a8] sm:$0xff]
        %v1074 = vld [vmem:[#allocation8 + $0x3b0] sm:$0xff]
        %v1075 = vld [vmem:[#allocation8 + $0x3b8] sm:$0xff]
        %v1076 = vld [vmem:[#allocation8 + $0x3c0] sm:$0xff]
        %v1077 = vld [vmem:[#allocation8 + $0x3c8] sm:$0xff]
        %v1078 = vld [vmem:[#allocation8 + $0x3d0] sm:$0xff]
        %v1079 = vld [vmem:[#allocation8 + $0x3d8] sm:$0xff]
        %v1080 = vld [vmem:[#allocation8 + $0x3e0] sm:$0xff]
        %v1081 = vld [vmem:[#allocation8 + $0x3e8] sm:$0xff]
        %v1082 = vld [vmem:[#allocation8 + $0x3f0] sm:$0xff]
        %v1083 = vld [vmem:[#allocation8 + $0x3f8] sm:$0xff]
        %v1084 = vld [vmem:[#allocation10] sm:$0xf]
        %v1086 = vperm.slane %v1084, 0
        %v1087 = vperm.slane %v1084, 1
        %v1088 = vperm.slane %v1084, 2
        %v1089 = vperm.slane %v1084, 3
        %v1222 = vunpack.c.l.b16 %v956
        %v1223 = vunpack.c.h.b16 %v956
        %v1224 = vunpack.c.l.b16 %v957
        %v1225 = vunpack.c.h.b16 %v957
        %v1226 = vunpack.c.l.b16 %v958
        %v1227 = vunpack.c.h.b16 %v958
        %v1228 = vunpack.c.l.b16 %v959
        %v1229 = vunpack.c.h.b16 %v959
        %v1230 = vunpack.c.l.b16 %v960
        %v1231 = vunpack.c.h.b16 %v960
        %v1232 = vunpack.c.l.b16 %v961
        %v1233 = vunpack.c.h.b16 %v961
        %v1234 = vunpack.c.l.b16 %v962
        %v1235 = vunpack.c.h.b16 %v962
        %v1236 = vunpack.c.l.b16 %v963
        %v1237 = vunpack.c.h.b16 %v963
        %v1238 = vunpack.c.l.b16 %v964
        %v1239 = vunpack.c.h.b16 %v964
        %v1240 = vunpack.c.l.b16 %v965
        %v1241 = vunpack.c.h.b16 %v965
        %v1242 = vunpack.c.l.b16 %v966
        %v1243 = vunpack.c.h.b16 %v966
        %v1244 = vunpack.c.l.b16 %v967
        %v1245 = vunpack.c.h.b16 %v967
        %v1246 = vunpack.c.l.b16 %v968
        %v1247 = vunpack.c.h.b16 %v968
        %v1248 = vunpack.c.l.b16 %v969
        %v1249 = vunpack.c.h.b16 %v969
        %v1250 = vunpack.c.l.b16 %v970
        %v1251 = vunpack.c.h.b16 %v970
        %v1252 = vunpack.c.l.b16 %v971
        %v1253 = vunpack.c.h.b16 %v971
        %v1254 = vunpack.c.l.b16 %v972
        %v1255 = vunpack.c.h.b16 %v972
        %v1256 = vunpack.c.l.b16 %v973
        %v1257 = vunpack.c.h.b16 %v973
        %v1258 = vunpack.c.l.b16 %v974
        %v1259 = vunpack.c.h.b16 %v974
        %v1260 = vunpack.c.l.b16 %v975
        %v1261 = vunpack.c.h.b16 %v975
        %v1262 = vunpack.c.l.b16 %v976
        %v1263 = vunpack.c.h.b16 %v976
        %v1264 = vunpack.c.l.b16 %v977
        %v1265 = vunpack.c.h.b16 %v977
        %v1266 = vunpack.c.l.b16 %v978
        %v1267 = vunpack.c.h.b16 %v978
        %v1268 = vunpack.c.l.b16 %v979
        %v1269 = vunpack.c.h.b16 %v979
        %v1270 = vunpack.c.l.b16 %v980
        %v1271 = vunpack.c.h.b16 %v980
        %v1272 = vunpack.c.l.b16 %v981
        %v1273 = vunpack.c.h.b16 %v981
        %v1274 = vunpack.c.l.b16 %v982
        %v1275 = vunpack.c.h.b16 %v982
        %v1276 = vunpack.c.l.b16 %v983
        %v1277 = vunpack.c.h.b16 %v983
        %v1278 = vunpack.c.l.b16 %v984
        %v1279 = vunpack.c.h.b16 %v984
        %v1280 = vunpack.c.l.b16 %v985
        %v1281 = vunpack.c.h.b16 %v985
        %v1282 = vunpack.c.l.b16 %v986
        %v1283 = vunpack.c.h.b16 %v986
        %v1284 = vunpack.c.l.b16 %v987
        %v1285 = vunpack.c.h.b16 %v987
        %v1286 = vunpack.c.l.b16 %v988
        %v1287 = vunpack.c.h.b16 %v988
        %v1288 = vunpack.c.l.b16 %v989
        %v1289 = vunpack.c.h.b16 %v989
        %v1290 = vunpack.c.l.b16 %v990
        %v1291 = vunpack.c.h.b16 %v990
        %v1292 = vunpack.c.l.b16 %v991
        %v1293 = vunpack.c.h.b16 %v991
        %v1294 = vunpack.c.l.b16 %v992
        %v1295 = vunpack.c.h.b16 %v992
        %v1296 = vunpack.c.l.b16 %v993
        %v1297 = vunpack.c.h.b16 %v993
        %v1298 = vunpack.c.l.b16 %v994
        %v1299 = vunpack.c.h.b16 %v994
        %v1300 = vunpack.c.l.b16 %v995
        %v1301 = vunpack.c.h.b16 %v995
        %v1302 = vunpack.c.l.b16 %v996
        %v1303 = vunpack.c.h.b16 %v996
        %v1304 = vunpack.c.l.b16 %v997
        %v1305 = vunpack.c.h.b16 %v997
        %v1306 = vunpack.c.l.b16 %v998
        %v1307 = vunpack.c.h.b16 %v998
        %v1308 = vunpack.c.l.b16 %v999
        %v1309 = vunpack.c.h.b16 %v999
        %v1310 = vunpack.c.l.b16 %v1000
        %v1311 = vunpack.c.h.b16 %v1000
        %v1312 = vunpack.c.l.b16 %v1001
        %v1313 = vunpack.c.h.b16 %v1001
        %v1314 = vunpack.c.l.b16 %v1002
        %v1315 = vunpack.c.h.b16 %v1002
        %v1316 = vunpack.c.l.b16 %v1003
        %v1317 = vunpack.c.h.b16 %v1003
        %v1318 = vunpack.c.l.b16 %v1004
        %v1319 = vunpack.c.h.b16 %v1004
        %v1320 = vunpack.c.l.b16 %v1005
        %v1321 = vunpack.c.h.b16 %v1005
        %v1322 = vunpack.c.l.b16 %v1006
        %v1323 = vunpack.c.h.b16 %v1006
        %v1324 = vunpack.c.l.b16 %v1007
        %v1325 = vunpack.c.h.b16 %v1007
        %v1326 = vunpack.c.l.b16 %v1008
        %v1327 = vunpack.c.h.b16 %v1008
        %v1328 = vunpack.c.l.b16 %v1009
        %v1329 = vunpack.c.h.b16 %v1009
        %v1330 = vunpack.c.l.b16 %v1010
        %v1331 = vunpack.c.h.b16 %v1010
        %v1332 = vunpack.c.l.b16 %v1011
        %v1333 = vunpack.c.h.b16 %v1011
        %v1334 = vunpack.c.l.b16 %v1012
        %v1335 = vunpack.c.h.b16 %v1012
        %v1336 = vunpack.c.l.b16 %v1013
        %v1337 = vunpack.c.h.b16 %v1013
        %v1338 = vunpack.c.l.b16 %v1014
        %v1339 = vunpack.c.h.b16 %v1014
        %v1340 = vunpack.c.l.b16 %v1015
        %v1341 = vunpack.c.h.b16 %v1015
        %v1342 = vunpack.c.l.b16 %v1016
        %v1343 = vunpack.c.h.b16 %v1016
        %v1344 = vunpack.c.l.b16 %v1017
        %v1345 = vunpack.c.h.b16 %v1017
        %v1346 = vunpack.c.l.b16 %v1018
        %v1347 = vunpack.c.h.b16 %v1018
        %v1348 = vunpack.c.l.b16 %v1019
        %v1349 = vunpack.c.h.b16 %v1019
        %v1350 = vunpack.c.l.b16 %v1020
        %v1351 = vunpack.c.h.b16 %v1020
        %v1352 = vunpack.c.l.b16 %v1021
        %v1353 = vunpack.c.h.b16 %v1021
        %v1354 = vunpack.c.l.b16 %v1022
        %v1355 = vunpack.c.h.b16 %v1022
        %v1356 = vunpack.c.l.b16 %v1023
        %v1357 = vunpack.c.h.b16 %v1023
        %v1358 = vunpack.c.l.b16 %v1024
        %v1359 = vunpack.c.h.b16 %v1024
        %v1360 = vunpack.c.l.b16 %v1025
        %v1361 = vunpack.c.h.b16 %v1025
        %v1362 = vunpack.c.l.b16 %v1026
        %v1363 = vunpack.c.h.b16 %v1026
        %v1364 = vunpack.c.l.b16 %v1027
        %v1365 = vunpack.c.h.b16 %v1027
        %v1366 = vunpack.c.l.b16 %v1028
        %v1367 = vunpack.c.h.b16 %v1028
        %v1368 = vunpack.c.l.b16 %v1029
        %v1369 = vunpack.c.h.b16 %v1029
        %v1370 = vunpack.c.l.b16 %v1030
        %v1371 = vunpack.c.h.b16 %v1030
        %v1372 = vunpack.c.l.b16 %v1031
        %v1373 = vunpack.c.h.b16 %v1031
        %v1374 = vunpack.c.l.b16 %v1032
        %v1375 = vunpack.c.h.b16 %v1032
        %v1376 = vunpack.c.l.b16 %v1033
        %v1377 = vunpack.c.h.b16 %v1033
        %v1378 = vunpack.c.l.b16 %v1034
        %v1379 = vunpack.c.h.b16 %v1034
        %v1380 = vunpack.c.l.b16 %v1035
        %v1381 = vunpack.c.h.b16 %v1035
        %v1382 = vunpack.c.l.b16 %v1036
        %v1383 = vunpack.c.h.b16 %v1036
        %v1384 = vunpack.c.l.b16 %v1037
        %v1385 = vunpack.c.h.b16 %v1037
        %v1386 = vunpack.c.l.b16 %v1038
        %v1387 = vunpack.c.h.b16 %v1038
        %v1388 = vunpack.c.l.b16 %v1039
        %v1389 = vunpack.c.h.b16 %v1039
        %v1390 = vunpack.c.l.b16 %v1040
        %v1391 = vunpack.c.h.b16 %v1040
        %v1392 = vunpack.c.l.b16 %v1041
        %v1393 = vunpack.c.h.b16 %v1041
        %v1394 = vunpack.c.l.b16 %v1042
        %v1395 = vunpack.c.h.b16 %v1042
        %v1396 = vunpack.c.l.b16 %v1043
        %v1397 = vunpack.c.h.b16 %v1043
        %v1398 = vunpack.c.l.b16 %v1044
        %v1399 = vunpack.c.h.b16 %v1044
        %v1400 = vunpack.c.l.b16 %v1045
        %v1401 = vunpack.c.h.b16 %v1045
        %v1402 = vunpack.c.l.b16 %v1046
        %v1403 = vunpack.c.h.b16 %v1046
        %v1404 = vunpack.c.l.b16 %v1047
        %v1405 = vunpack.c.h.b16 %v1047
        %v1406 = vunpack.c.l.b16 %v1048
        %v1407 = vunpack.c.h.b16 %v1048
        %v1408 = vunpack.c.l.b16 %v1049
        %v1409 = vunpack.c.h.b16 %v1049
        %v1410 = vunpack.c.l.b16 %v1050
        %v1411 = vunpack.c.h.b16 %v1050
        %v1412 = vunpack.c.l.b16 %v1051
        %v1413 = vunpack.c.h.b16 %v1051
        %v1414 = vunpack.c.l.b16 %v1052
        %v1415 = vunpack.c.h.b16 %v1052
        %v1416 = vunpack.c.l.b16 %v1053
        %v1417 = vunpack.c.h.b16 %v1053
        %v1418 = vunpack.c.l.b16 %v1054
        %v1419 = vunpack.c.h.b16 %v1054
        %v1420 = vunpack.c.l.b16 %v1055
        %v1421 = vunpack.c.h.b16 %v1055
        %v1422 = vunpack.c.l.b16 %v1056
        %v1423 = vunpack.c.h.b16 %v1056
        %v1424 = vunpack.c.l.b16 %v1057
        %v1425 = vunpack.c.h.b16 %v1057
        %v1426 = vunpack.c.l.b16 %v1058
        %v1427 = vunpack.c.h.b16 %v1058
        %v1428 = vunpack.c.l.b16 %v1059
        %v1429 = vunpack.c.h.b16 %v1059
        %v1430 = vunpack.c.l.b16 %v1060
        %v1431 = vunpack.c.h.b16 %v1060
        %v1432 = vunpack.c.l.b16 %v1061
        %v1433 = vunpack.c.h.b16 %v1061
        %v1434 = vunpack.c.l.b16 %v1062
        %v1435 = vunpack.c.h.b16 %v1062
        %v1436 = vunpack.c.l.b16 %v1063
        %v1437 = vunpack.c.h.b16 %v1063
        %v1438 = vunpack.c.l.b16 %v1064
        %v1439 = vunpack.c.h.b16 %v1064
        %v1440 = vunpack.c.l.b16 %v1065
        %v1441 = vunpack.c.h.b16 %v1065
        %v1442 = vunpack.c.l.b16 %v1066
        %v1443 = vunpack.c.h.b16 %v1066
        %v1444 = vunpack.c.l.b16 %v1067
        %v1445 = vunpack.c.h.b16 %v1067
        %v1446 = vunpack.c.l.b16 %v1068
        %v1447 = vunpack.c.h.b16 %v1068
        %v1448 = vunpack.c.l.b16 %v1069
        %v1449 = vunpack.c.h.b16 %v1069
        %v1450 = vunpack.c.l.b16 %v1070
        %v1451 = vunpack.c.h.b16 %v1070
        %v1452 = vunpack.c.l.b16 %v1071
        %v1453 = vunpack.c.h.b16 %v1071
        %v1454 = vunpack.c.l.b16 %v1072
        %v1455 = vunpack.c.h.b16 %v1072
        %v1456 = vunpack.c.l.b16 %v1073
        %v1457 = vunpack.c.h.b16 %v1073
        %v1458 = vunpack.c.l.b16 %v1074
        %v1459 = vunpack.c.h.b16 %v1074
        %v1460 = vunpack.c.l.b16 %v1075
        %v1461 = vunpack.c.h.b16 %v1075
        %v1462 = vunpack.c.l.b16 %v1076
        %v1463 = vunpack.c.h.b16 %v1076
        %v1464 = vunpack.c.l.b16 %v1077
        %v1465 = vunpack.c.h.b16 %v1077
        %v1466 = vunpack.c.l.b16 %v1078
        %v1467 = vunpack.c.h.b16 %v1078
        %v1468 = vunpack.c.l.b16 %v1079
        %v1469 = vunpack.c.h.b16 %v1079
        %v1470 = vunpack.c.l.b16 %v1080
        %v1471 = vunpack.c.h.b16 %v1080
        %v1472 = vunpack.c.l.b16 %v1081
        %v1473 = vunpack.c.h.b16 %v1081
        %v1474 = vunpack.c.l.b16 %v1082
        %v1475 = vunpack.c.h.b16 %v1082
        %v1476 = vunpack.c.l.b16 %v1083
        %v1477 = vunpack.c.h.b16 %v1083
        %v1478 = vpack.c.b16 %v1226, %v1222
        %v1479 = vpack.c.b16 %v1227, %v1223
        %v1480 = vpack.c.b16 %v1228, %v1224
        %v1481 = vpack.c.b16 %v1229, %v1225
        %v1482 = vpack.c.b16 %v1234, %v1230
        %v1483 = vpack.c.b16 %v1235, %v1231
        %v1484 = vpack.c.b16 %v1236, %v1232
        %v1485 = vpack.c.b16 %v1237, %v1233
        %v1486 = vpack.c.b16 %v1242, %v1238
        %v1487 = vpack.c.b16 %v1243, %v1239
        %v1488 = vpack.c.b16 %v1244, %v1240
        %v1489 = vpack.c.b16 %v1245, %v1241
        %v1490 = vpack.c.b16 %v1250, %v1246
        %v1491 = vpack.c.b16 %v1251, %v1247
        %v1492 = vpack.c.b16 %v1252, %v1248
        %v1493 = vpack.c.b16 %v1253, %v1249
        %v1494 = vpack.c.b16 %v1258, %v1254
        %v1495 = vpack.c.b16 %v1259, %v1255
        %v1496 = vpack.c.b16 %v1260, %v1256
        %v1497 = vpack.c.b16 %v1261, %v1257
        %v1498 = vpack.c.b16 %v1266, %v1262
        %v1499 = vpack.c.b16 %v1267, %v1263
        %v1500 = vpack.c.b16 %v1268, %v1264
        %v1501 = vpack.c.b16 %v1269, %v1265
        %v1502 = vpack.c.b16 %v1274, %v1270
        %v1503 = vpack.c.b16 %v1275, %v1271
        %v1504 = vpack.c.b16 %v1276, %v1272
        %v1505 = vpack.c.b16 %v1277, %v1273
        %v1506 = vpack.c.b16 %v1282, %v1278
        %v1507 = vpack.c.b16 %v1283, %v1279
        %v1508 = vpack.c.b16 %v1284, %v1280
        %v1509 = vpack.c.b16 %v1285, %v1281
        %v1510 = vpack.c.b16 %v1290, %v1286
        %v1511 = vpack.c.b16 %v1291, %v1287
        %v1512 = vpack.c.b16 %v1292, %v1288
        %v1513 = vpack.c.b16 %v1293, %v1289
        %v1514 = vpack.c.b16 %v1298, %v1294
        %v1515 = vpack.c.b16 %v1299, %v1295
        %v1516 = vpack.c.b16 %v1300, %v1296
        %v1517 = vpack.c.b16 %v1301, %v1297
        %v1518 = vpack.c.b16 %v1306, %v1302
        %v1519 = vpack.c.b16 %v1307, %v1303
        %v1520 = vpack.c.b16 %v1308, %v1304
        %v1521 = vpack.c.b16 %v1309, %v1305
        %v1522 = vpack.c.b16 %v1314, %v1310
        %v1523 = vpack.c.b16 %v1315, %v1311
        %v1524 = vpack.c.b16 %v1316, %v1312
        %v1525 = vpack.c.b16 %v1317, %v1313
        %v1526 = vpack.c.b16 %v1322, %v1318
        %v1527 = vpack.c.b16 %v1323, %v1319
        %v1528 = vpack.c.b16 %v1324, %v1320
        %v1529 = vpack.c.b16 %v1325, %v1321
        %v1530 = vpack.c.b16 %v1330, %v1326
        %v1531 = vpack.c.b16 %v1331, %v1327
        %v1532 = vpack.c.b16 %v1332, %v1328
        %v1533 = vpack.c.b16 %v1333, %v1329
        %v1534 = vpack.c.b16 %v1338, %v1334
        %v1535 = vpack.c.b16 %v1339, %v1335
        %v1536 = vpack.c.b16 %v1340, %v1336
        %v1537 = vpack.c.b16 %v1341, %v1337
        %v1538 = vpack.c.b16 %v1346, %v1342
        %v1539 = vpack.c.b16 %v1347, %v1343
        %v1540 = vpack.c.b16 %v1348, %v1344
        %v1541 = vpack.c.b16 %v1349, %v1345
        %v1542 = vpack.c.b16 %v1354, %v1350
        %v1543 = vpack.c.b16 %v1355, %v1351
        %v1544 = vpack.c.b16 %v1356, %v1352
        %v1545 = vpack.c.b16 %v1357, %v1353
        %v1546 = vpack.c.b16 %v1362, %v1358
        %v1547 = vpack.c.b16 %v1363, %v1359
        %v1548 = vpack.c.b16 %v1364, %v1360
        %v1549 = vpack.c.b16 %v1365, %v1361
        %v1550 = vpack.c.b16 %v1370, %v1366
        %v1551 = vpack.c.b16 %v1371, %v1367
        %v1552 = vpack.c.b16 %v1372, %v1368
        %v1553 = vpack.c.b16 %v1373, %v1369
        %v1554 = vpack.c.b16 %v1378, %v1374
        %v1555 = vpack.c.b16 %v1379, %v1375
        %v1556 = vpack.c.b16 %v1380, %v1376
        %v1557 = vpack.c.b16 %v1381, %v1377
        %v1558 = vpack.c.b16 %v1386, %v1382
        %v1559 = vpack.c.b16 %v1387, %v1383
        %v1560 = vpack.c.b16 %v1388, %v1384
        %v1561 = vpack.c.b16 %v1389, %v1385
        %v1562 = vpack.c.b16 %v1394, %v1390
        %v1563 = vpack.c.b16 %v1395, %v1391
        %v1564 = vpack.c.b16 %v1396, %v1392
        %v1565 = vpack.c.b16 %v1397, %v1393
        %v1566 = vpack.c.b16 %v1402, %v1398
        %v1567 = vpack.c.b16 %v1403, %v1399
        %v1568 = vpack.c.b16 %v1404, %v1400
        %v1569 = vpack.c.b16 %v1405, %v1401
        %v1570 = vpack.c.b16 %v1410, %v1406
        %v1571 = vpack.c.b16 %v1411, %v1407
        %v1572 = vpack.c.b16 %v1412, %v1408
        %v1573 = vpack.c.b16 %v1413, %v1409
        %v1574 = vpack.c.b16 %v1418, %v1414
        %v1575 = vpack.c.b16 %v1419, %v1415
        %v1576 = vpack.c.b16 %v1420, %v1416
        %v1577 = vpack.c.b16 %v1421, %v1417
        %v1578 = vpack.c.b16 %v1426, %v1422
        %v1579 = vpack.c.b16 %v1427, %v1423
        %v1580 = vpack.c.b16 %v1428, %v1424
        %v1581 = vpack.c.b16 %v1429, %v1425
        %v1582 = vpack.c.b16 %v1434, %v1430
        %v1583 = vpack.c.b16 %v1435, %v1431
        %v1584 = vpack.c.b16 %v1436, %v1432
        %v1585 = vpack.c.b16 %v1437, %v1433
        %v1586 = vpack.c.b16 %v1442, %v1438
        %v1587 = vpack.c.b16 %v1443, %v1439
        %v1588 = vpack.c.b16 %v1444, %v1440
        %v1589 = vpack.c.b16 %v1445, %v1441
        %v1590 = vpack.c.b16 %v1450, %v1446
        %v1591 = vpack.c.b16 %v1451, %v1447
        %v1592 = vpack.c.b16 %v1452, %v1448
        %v1593 = vpack.c.b16 %v1453, %v1449
        %v1594 = vpack.c.b16 %v1458, %v1454
        %v1595 = vpack.c.b16 %v1459, %v1455
        %v1596 = vpack.c.b16 %v1460, %v1456
        %v1597 = vpack.c.b16 %v1461, %v1457
        %v1598 = vpack.c.b16 %v1466, %v1462
        %v1599 = vpack.c.b16 %v1467, %v1463
        %v1600 = vpack.c.b16 %v1468, %v1464
        %v1601 = vpack.c.b16 %v1469, %v1465
        %v1602 = vpack.c.b16 %v1474, %v1470
        %v1603 = vpack.c.b16 %v1475, %v1471
        %v1604 = vpack.c.b16 %v1476, %v1472
        %v1605 = vpack.c.b16 %v1477, %v1473
        %1734 = vmatpush.bf16.msra.mxu0 %v1506
        %1735 = vmatpush.bf16.msra.mxu0 %v1502
        %1736 = vmatpush.bf16.msra.mxu0 %v1498
        %1737 = vmatpush.bf16.msra.mxu0 %v1494
        %1738 = vmatpush.bf16.msra.mxu0 %v1490
        %1739 = vmatpush.bf16.msra.mxu0 %v1486
        %1740 = vmatpush.bf16.msra.mxu0 %v1482
        %1741 = vmatpush.bf16.msra.mxu0 %v1478
        %1742 = vmatmul.bf16.gmra.mxu0 %v952
        %v1743 = vpop.f32.mrf.mxu0
        %v1744 = vadd.f32 %v1086, %v1743
        %v1745 = vpop.f32.mrf.mxu0
        %1746 = vdwg.mxu0
        %1747 = vmatpush.bf16.msra.mxu0 %v1538
        %1748 = vmatpush.bf16.msra.mxu0 %v1534
        %1749 = vmatpush.bf16.msra.mxu0 %v1530
        %1750 = vmatpush.bf16.msra.mxu0 %v1526
        %1751 = vmatpush.bf16.msra.mxu0 %v1522
        %1752 = vmatpush.bf16.msra.mxu0 %v1518
        %1753 = vmatpush.bf16.msra.mxu0 %v1514
        %1754 = vmatpush.bf16.msra.mxu0 %v1510
        %1755 = vmatmul.bf16.gmra.mxu0 %v953
        %v1756 = vpop.f32.mrf.mxu0
        %v1757 = vadd.f32 %v1744, %v1756
        %v1758 = vpop.f32.mrf.mxu0
        %1759 = vdwg.mxu0
        %1760 = vmatpush.bf16.msra.mxu0 %v1570
        %1761 = vmatpush.bf16.msra.mxu0 %v1566
        %1762 = vmatpush.bf16.msra.mxu0 %v1562
        %1763 = vmatpush.bf16.msra.mxu0 %v1558
        %1764 = vmatpush.bf16.msra.mxu0 %v1554
        %1765 = vmatpush.bf16.msra.mxu0 %v1550
        %1766 = vmatpush.bf16.msra.mxu0 %v1546
        %1767 = vmatpush.bf16.msra.mxu0 %v1542
        %1768 = vmatmul.bf16.gmra.mxu0 %v954
        %v1769 = vpop.f32.mrf.mxu0
        %v1770 = vadd.f32 %v1757, %v1769
        %v1771 = vpop.f32.mrf.mxu0
        %1772 = vdwg.mxu0
        %1773 = vmatpush.bf16.msra.mxu0 %v1602
        %1774 = vmatpush.bf16.msra.mxu0 %v1598
        %1775 = vmatpush.bf16.msra.mxu0 %v1594
        %1776 = vmatpush.bf16.msra.mxu0 %v1590
        %1777 = vmatpush.bf16.msra.mxu0 %v1586
        %1778 = vmatpush.bf16.msra.mxu0 %v1582
        %1779 = vmatpush.bf16.msra.mxu0 %v1578
        %1780 = vmatpush.bf16.msra.mxu0 %v1574
        %1781 = vmatmul.bf16.gmra.mxu0 %v955
        %v1782 = vpop.f32.mrf.mxu0
        %v1783 = vadd.f32 %v1770, %v1782
        %v1784 = vpop.f32.mrf.mxu0
        %1785 = vdwg.mxu0
        %1786 = vmatpush.bf16.msra.mxu0 %v1507
        %1787 = vmatpush.bf16.msra.mxu0 %v1503
        %1788 = vmatpush.bf16.msra.mxu0 %v1499
        %1789 = vmatpush.bf16.msra.mxu0 %v1495
        %1790 = vmatpush.bf16.msra.mxu0 %v1491
        %1791 = vmatpush.bf16.msra.mxu0 %v1487
        %1792 = vmatpush.bf16.msra.mxu0 %v1483
        %1793 = vmatpush.bf16.msra.mxu0 %v1479
        %1794 = vmatmul.bf16.gmra.mxu0 %v952
        %v1795 = vpop.f32.mrf.mxu0
        %v1796 = vadd.f32 %v1087, %v1795
        %v1797 = vpop.f32.mrf.mxu0
        %1798 = vdwg.mxu0
        %1799 = vmatpush.bf16.msra.mxu0 %v1539
        %1800 = vmatpush.bf16.msra.mxu0 %v1535
        %1801 = vmatpush.bf16.msra.mxu0 %v1531
        %1802 = vmatpush.bf16.msra.mxu0 %v1527
        %1803 = vmatpush.bf16.msra.mxu0 %v1523
        %1804 = vmatpush.bf16.msra.mxu0 %v1519
        %1805 = vmatpush.bf16.msra.mxu0 %v1515
        %1806 = vmatpush.bf16.msra.mxu0 %v1511
        %1807 = vmatmul.bf16.gmra.mxu0 %v953
        %v1808 = vpop.f32.mrf.mxu0
        %v1809 = vadd.f32 %v1796, %v1808
        %v1810 = vpop.f32.mrf.mxu0
        %1811 = vdwg.mxu0
        %1812 = vmatpush.bf16.msra.mxu0 %v1571
        %1813 = vmatpush.bf16.msra.mxu0 %v1567
        %1814 = vmatpush.bf16.msra.mxu0 %v1563
        %1815 = vmatpush.bf16.msra.mxu0 %v1559
        %1816 = vmatpush.bf16.msra.mxu0 %v1555
        %1817 = vmatpush.bf16.msra.mxu0 %v1551
        %1818 = vmatpush.bf16.msra.mxu0 %v1547
        %1819 = vmatpush.bf16.msra.mxu0 %v1543
        %1820 = vmatmul.bf16.gmra.mxu0 %v954
        %v1821 = vpop.f32.mrf.mxu0
        %v1822 = vadd.f32 %v1809, %v1821
        %v1823 = vpop.f32.mrf.mxu0
        %1824 = vdwg.mxu0
        %1825 = vmatpush.bf16.msra.mxu0 %v1603
        %1826 = vmatpush.bf16.msra.mxu0 %v1599
        %1827 = vmatpush.bf16.msra.mxu0 %v1595
        %1828 = vmatpush.bf16.msra.mxu0 %v1591
        %1829 = vmatpush.bf16.msra.mxu0 %v1587
        %1830 = vmatpush.bf16.msra.mxu0 %v1583
        %1831 = vmatpush.bf16.msra.mxu0 %v1579
        %1832 = vmatpush.bf16.msra.mxu0 %v1575
        %1833 = vmatmul.bf16.gmra.mxu0 %v955
        %v1834 = vpop.f32.mrf.mxu0
        %v1835 = vadd.f32 %v1822, %v1834
        %v1836 = vpop.f32.mrf.mxu0
        %1837 = vdwg.mxu0
        %1838 = vmatpush.bf16.msra.mxu0 %v1508
        %1839 = vmatpush.bf16.msra.mxu0 %v1504
        %1840 = vmatpush.bf16.msra.mxu0 %v1500
        %1841 = vmatpush.bf16.msra.mxu0 %v1496
        %1842 = vmatpush.bf16.msra.mxu0 %v1492
        %1843 = vmatpush.bf16.msra.mxu0 %v1488
        %1844 = vmatpush.bf16.msra.mxu0 %v1484
        %1845 = vmatpush.bf16.msra.mxu0 %v1480
        %1846 = vmatmul.bf16.gmra.mxu0 %v952
        %v1847 = vpop.f32.mrf.mxu0
        %v1848 = vadd.f32 %v1088, %v1847
        %v1849 = vpop.f32.mrf.mxu0
        %1850 = vdwg.mxu0
        %1851 = vmatpush.bf16.msra.mxu0 %v1540
        %1852 = vmatpush.bf16.msra.mxu0 %v1536
        %1853 = vmatpush.bf16.msra.mxu0 %v1532
        %1854 = vmatpush.bf16.msra.mxu0 %v1528
        %1855 = vmatpush.bf16.msra.mxu0 %v1524
        %1856 = vmatpush.bf16.msra.mxu0 %v1520
        %1857 = vmatpush.bf16.msra.mxu0 %v1516
        %1858 = vmatpush.bf16.msra.mxu0 %v1512
        %1859 = vmatmul.bf16.gmra.mxu0 %v953
        %v1860 = vpop.f32.mrf.mxu0
        %v1861 = vadd.f32 %v1848, %v1860
        %v1862 = vpop.f32.mrf.mxu0
        %1863 = vdwg.mxu0
        %1864 = vmatpush.bf16.msra.mxu0 %v1572
        %1865 = vmatpush.bf16.msra.mxu0 %v1568
        %1866 = vmatpush.bf16.msra.mxu0 %v1564
        %1867 = vmatpush.bf16.msra.mxu0 %v1560
        %1868 = vmatpush.bf16.msra.mxu0 %v1556
        %1869 = vmatpush.bf16.msra.mxu0 %v1552
        %1870 = vmatpush.bf16.msra.mxu0 %v1548
        %1871 = vmatpush.bf16.msra.mxu0 %v1544
        %1872 = vmatmul.bf16.gmra.mxu0 %v954
        %v1873 = vpop.f32.mrf.mxu0
        %v1874 = vadd.f32 %v1861, %v1873
        %v1875 = vpop.f32.mrf.mxu0
        %1876 = vdwg.mxu0
        %1877 = vmatpush.bf16.msra.mxu0 %v1604
        %1878 = vmatpush.bf16.msra.mxu0 %v1600
        %1879 = vmatpush.bf16.msra.mxu0 %v1596
        %1880 = vmatpush.bf16.msra.mxu0 %v1592
        %1881 = vmatpush.bf16.msra.mxu0 %v1588
        %1882 = vmatpush.bf16.msra.mxu0 %v1584
        %1883 = vmatpush.bf16.msra.mxu0 %v1580
        %1884 = vmatpush.bf16.msra.mxu0 %v1576
        %1885 = vmatmul.bf16.gmra.mxu0 %v955
        %v1886 = vpop.f32.mrf.mxu0
        %v1887 = vadd.f32 %v1874, %v1886
        %v1888 = vpop.f32.mrf.mxu0
        %1889 = vdwg.mxu0
        %1890 = vmatpush.bf16.msra.mxu0 %v1509
        %1891 = vmatpush.bf16.msra.mxu0 %v1505
        %1892 = vmatpush.bf16.msra.mxu0 %v1501
        %1893 = vmatpush.bf16.msra.mxu0 %v1497
        %1894 = vmatpush.bf16.msra.mxu0 %v1493
        %1895 = vmatpush.bf16.msra.mxu0 %v1489
        %1896 = vmatpush.bf16.msra.mxu0 %v1485
        %1897 = vmatpush.bf16.msra.mxu0 %v1481
        %1898 = vmatmul.bf16.gmra.mxu0 %v952
        %v1899 = vpop.f32.mrf.mxu0
        %v1900 = vadd.f32 %v1089, %v1899
        %v1901 = vpop.f32.mrf.mxu0
        %1902 = vdwg.mxu0
        %1903 = vmatpush.bf16.msra.mxu0 %v1541
        %1904 = vmatpush.bf16.msra.mxu0 %v1537
        %1905 = vmatpush.bf16.msra.mxu0 %v1533
        %1906 = vmatpush.bf16.msra.mxu0 %v1529
        %1907 = vmatpush.bf16.msra.mxu0 %v1525
        %1908 = vmatpush.bf16.msra.mxu0 %v1521
        %1909 = vmatpush.bf16.msra.mxu0 %v1517
        %1910 = vmatpush.bf16.msra.mxu0 %v1513
        %1911 = vmatmul.bf16.gmra.mxu0 %v953
        %v1912 = vpop.f32.mrf.mxu0
        %v1913 = vadd.f32 %v1900, %v1912
        %v1914 = vpop.f32.mrf.mxu0
        %1915 = vdwg.mxu0
        %1916 = vmatpush.bf16.msra.mxu0 %v1573
        %1917 = vmatpush.bf16.msra.mxu0 %v1569
        %1918 = vmatpush.bf16.msra.mxu0 %v1565
        %1919 = vmatpush.bf16.msra.mxu0 %v1561
        %1920 = vmatpush.bf16.msra.mxu0 %v1557
        %1921 = vmatpush.bf16.msra.mxu0 %v1553
        %1922 = vmatpush.bf16.msra.mxu0 %v1549
        %1923 = vmatpush.bf16.msra.mxu0 %v1545
        %1924 = vmatmul.bf16.gmra.mxu0 %v954
        %v1925 = vpop.f32.mrf.mxu0
        %v1926 = vadd.f32 %v1913, %v1925
        %v1927 = vpop.f32.mrf.mxu0
        %1928 = vdwg.mxu0
        %1929 = vmatpush.bf16.msra.mxu0 %v1605
        %1930 = vmatpush.bf16.msra.mxu0 %v1601
        %1931 = vmatpush.bf16.msra.mxu0 %v1597
        %1932 = vmatpush.bf16.msra.mxu0 %v1593
        %1933 = vmatpush.bf16.msra.mxu0 %v1589
        %1934 = vmatpush.bf16.msra.mxu0 %v1585
        %1935 = vmatpush.bf16.msra.mxu0 %v1581
        %1936 = vmatpush.bf16.msra.mxu0 %v1577
        %1937 = vmatmul.bf16.gmra.mxu0 %v955
        %v1938 = vpop.f32.mrf.mxu0
        %v1939 = vadd.f32 %v1926, %v1938
        %v1940 = vpop.f32.mrf.mxu0
        %1941 = vdwg.mxu0
        %v1942 = vmax.f32 %v1783, 0.0
        %v1943 = vmax.f32 %v1835, 0.0
        %v1944 = vmax.f32 %v1887, 0.0
        %v1945 = vmax.f32 %v1939, 0.0
        %v1946 = vpack.c.bf16 %v1942, %v1942
        %v1947 = vpack.c.bf16 %v1943, %v1943
        %v1948 = vpack.c.bf16 %v1944, %v1944
        %v1949 = vpack.c.bf16 %v1945, %v1945
        %v1950 = vld [vmem:[#allocation11] sm:$0xf]
        %v1951 = vld [vmem:[#allocation11 + $0x4] sm:$0xf]
        %v1952 = vld [vmem:[#allocation11 + $0x8] sm:$0xf]
        %v1953 = vld [vmem:[#allocation11 + $0xc] sm:$0xf]
        %v1954 = vld [vmem:[#allocation11 + $0x10] sm:$0xf]
        %v1955 = vld [vmem:[#allocation11 + $0x14] sm:$0xf]
        %v1956 = vld [vmem:[#allocation11 + $0x18] sm:$0xf]
        %v1957 = vld [vmem:[#allocation11 + $0x1c] sm:$0xf]
        %v1958 = vld [vmem:[#allocation11 + $0x20] sm:$0xf]
        %v1959 = vld [vmem:[#allocation11 + $0x24] sm:$0xf]
        %v1960 = vld [vmem:[#allocation11 + $0x28] sm:$0xf]
        %v1961 = vld [vmem:[#allocation11 + $0x2c] sm:$0xf]
        %v1962 = vld [vmem:[#allocation11 + $0x30] sm:$0xf]
        %v1963 = vld [vmem:[#allocation11 + $0x34] sm:$0xf]
        %v1964 = vld [vmem:[#allocation11 + $0x38] sm:$0xf]
        %v1965 = vld [vmem:[#allocation11 + $0x3c] sm:$0xf]
        %v1966 = vld [vmem:[#allocation11 + $0x40] sm:$0xf]
        %v1967 = vld [vmem:[#allocation11 + $0x44] sm:$0xf]
        %v1968 = vld [vmem:[#allocation11 + $0x48] sm:$0xf]
        %v1969 = vld [vmem:[#allocation11 + $0x4c] sm:$0xf]
        %v1970 = vld [vmem:[#allocation11 + $0x50] sm:$0xf]
        %v1971 = vld [vmem:[#allocation11 + $0x54] sm:$0xf]
        %v1972 = vld [vmem:[#allocation11 + $0x58] sm:$0xf]
        %v1973 = vld [vmem:[#allocation11 + $0x5c] sm:$0xf]
        %v1974 = vld [vmem:[#allocation11 + $0x60] sm:$0xf]
        %v1975 = vld [vmem:[#allocation11 + $0x64] sm:$0xf]
        %v1976 = vld [vmem:[#allocation11 + $0x68] sm:$0xf]
        %v1977 = vld [vmem:[#allocation11 + $0x6c] sm:$0xf]
        %v1978 = vld [vmem:[#allocation11 + $0x70] sm:$0xf]
        %v1979 = vld [vmem:[#allocation11 + $0x74] sm:$0xf]
        %v1980 = vld [vmem:[#allocation11 + $0x78] sm:$0xf]
        %v1981 = vld [vmem:[#allocation11 + $0x7c] sm:$0xf]
        %v1982 = vld [vmem:[#allocation11 + $0x80] sm:$0xf]
        %v1983 = vld [vmem:[#allocation11 + $0x84] sm:$0xf]
        %v1984 = vld [vmem:[#allocation11 + $0x88] sm:$0xf]
        %v1985 = vld [vmem:[#allocation11 + $0x8c] sm:$0xf]
        %v1986 = vld [vmem:[#allocation11 + $0x90] sm:$0xf]
        %v1987 = vld [vmem:[#allocation11 + $0x94] sm:$0xf]
        %v1988 = vld [vmem:[#allocation11 + $0x98] sm:$0xf]
        %v1989 = vld [vmem:[#allocation11 + $0x9c] sm:$0xf]
        %v1990 = vld [vmem:[#allocation11 + $0xa0] sm:$0xf]
        %v1991 = vld [vmem:[#allocation11 + $0xa4] sm:$0xf]
        %v1992 = vld [vmem:[#allocation11 + $0xa8] sm:$0xf]
        %v1993 = vld [vmem:[#allocation11 + $0xac] sm:$0xf]
        %v1994 = vld [vmem:[#allocation11 + $0xb0] sm:$0xf]
        %v1995 = vld [vmem:[#allocation11 + $0xb4] sm:$0xf]
        %v1996 = vld [vmem:[#allocation11 + $0xb8] sm:$0xf]
        %v1997 = vld [vmem:[#allocation11 + $0xbc] sm:$0xf]
        %v1998 = vld [vmem:[#allocation11 + $0xc0] sm:$0xf]
        %v1999 = vld [vmem:[#allocation11 + $0xc4] sm:$0xf]
        %v2000 = vld [vmem:[#allocation11 + $0xc8] sm:$0xf]
        %v2001 = vld [vmem:[#allocation11 + $0xcc] sm:$0xf]
        %v2002 = vld [vmem:[#allocation11 + $0xd0] sm:$0xf]
        %v2003 = vld [vmem:[#allocation11 + $0xd4] sm:$0xf]
        %v2004 = vld [vmem:[#allocation11 + $0xd8] sm:$0xf]
        %v2005 = vld [vmem:[#allocation11 + $0xdc] sm:$0xf]
        %v2006 = vld [vmem:[#allocation11 + $0xe0] sm:$0xf]
        %v2007 = vld [vmem:[#allocation11 + $0xe4] sm:$0xf]
        %v2008 = vld [vmem:[#allocation11 + $0xe8] sm:$0xf]
        %v2009 = vld [vmem:[#allocation11 + $0xec] sm:$0xf]
        %v2010 = vld [vmem:[#allocation11 + $0xf0] sm:$0xf]
        %v2011 = vld [vmem:[#allocation11 + $0xf4] sm:$0xf]
        %v2012 = vld [vmem:[#allocation11 + $0xf8] sm:$0xf]
        %v2013 = vld [vmem:[#allocation11 + $0xfc] sm:$0xf]
        %v2014 = vld [vmem:[%s6] sm:$0x1]
        %v2016 = vperm.slane %v2014, 0
        %v2082 = vunpack.c.l.b16 %v1950
        %v2083 = vunpack.c.l.b16 %v1951
        %v2084 = vunpack.c.l.b16 %v1952
        %v2085 = vunpack.c.l.b16 %v1953
        %v2086 = vunpack.c.l.b16 %v1954
        %v2087 = vunpack.c.l.b16 %v1955
        %v2088 = vunpack.c.l.b16 %v1956
        %v2089 = vunpack.c.l.b16 %v1957
        %v2090 = vunpack.c.l.b16 %v1958
        %v2091 = vunpack.c.l.b16 %v1959
        %v2092 = vunpack.c.l.b16 %v1960
        %v2093 = vunpack.c.l.b16 %v1961
        %v2094 = vunpack.c.l.b16 %v1962
        %v2095 = vunpack.c.l.b16 %v1963
        %v2096 = vunpack.c.l.b16 %v1964
        %v2097 = vunpack.c.l.b16 %v1965
        %v2098 = vunpack.c.l.b16 %v1966
        %v2099 = vunpack.c.l.b16 %v1967
        %v2100 = vunpack.c.l.b16 %v1968
        %v2101 = vunpack.c.l.b16 %v1969
        %v2102 = vunpack.c.l.b16 %v1970
        %v2103 = vunpack.c.l.b16 %v1971
        %v2104 = vunpack.c.l.b16 %v1972
        %v2105 = vunpack.c.l.b16 %v1973
        %v2106 = vunpack.c.l.b16 %v1974
        %v2107 = vunpack.c.l.b16 %v1975
        %v2108 = vunpack.c.l.b16 %v1976
        %v2109 = vunpack.c.l.b16 %v1977
        %v2110 = vunpack.c.l.b16 %v1978
        %v2111 = vunpack.c.l.b16 %v1979
        %v2112 = vunpack.c.l.b16 %v1980
        %v2113 = vunpack.c.l.b16 %v1981
        %v2114 = vunpack.c.l.b16 %v1982
        %v2115 = vunpack.c.l.b16 %v1983
        %v2116 = vunpack.c.l.b16 %v1984
        %v2117 = vunpack.c.l.b16 %v1985
        %v2118 = vunpack.c.l.b16 %v1986
        %v2119 = vunpack.c.l.b16 %v1987
        %v2120 = vunpack.c.l.b16 %v1988
        %v2121 = vunpack.c.l.b16 %v1989
        %v2122 = vunpack.c.l.b16 %v1990
        %v2123 = vunpack.c.l.b16 %v1991
        %v2124 = vunpack.c.l.b16 %v1992
        %v2125 = vunpack.c.l.b16 %v1993
        %v2126 = vunpack.c.l.b16 %v1994
        %v2127 = vunpack.c.l.b16 %v1995
        %v2128 = vunpack.c.l.b16 %v1996
        %v2129 = vunpack.c.l.b16 %v1997
        %v2130 = vunpack.c.l.b16 %v1998
        %v2131 = vunpack.c.l.b16 %v1999
        %v2132 = vunpack.c.l.b16 %v2000
        %v2133 = vunpack.c.l.b16 %v2001
        %v2134 = vunpack.c.l.b16 %v2002
        %v2135 = vunpack.c.l.b16 %v2003
        %v2136 = vunpack.c.l.b16 %v2004
        %v2137 = vunpack.c.l.b16 %v2005
        %v2138 = vunpack.c.l.b16 %v2006
        %v2139 = vunpack.c.l.b16 %v2007
        %v2140 = vunpack.c.l.b16 %v2008
        %v2141 = vunpack.c.l.b16 %v2009
        %v2142 = vunpack.c.l.b16 %v2010
        %v2143 = vunpack.c.l.b16 %v2011
        %v2144 = vunpack.c.l.b16 %v2012
        %v2145 = vunpack.c.l.b16 %v2013
        %v2146 = vpack.c.b16 %v2083, %v2082
        %v2147 = vpack.c.b16 %v2085, %v2084
        %v2148 = vpack.c.b16 %v2087, %v2086
        %v2149 = vpack.c.b16 %v2089, %v2088
        %v2150 = vpack.c.b16 %v2091, %v2090
        %v2151 = vpack.c.b16 %v2093, %v2092
        %v2152 = vpack.c.b16 %v2095, %v2094
        %v2153 = vpack.c.b16 %v2097, %v2096
        %v2154 = vpack.c.b16 %v2099, %v2098
        %v2155 = vpack.c.b16 %v2101, %v2100
        %v2156 = vpack.c.b16 %v2103, %v2102
        %v2157 = vpack.c.b16 %v2105, %v2104
        %v2158 = vpack.c.b16 %v2107, %v2106
        %v2159 = vpack.c.b16 %v2109, %v2108
        %v2160 = vpack.c.b16 %v2111, %v2110
        %v2161 = vpack.c.b16 %v2113, %v2112
        %v2162 = vpack.c.b16 %v2115, %v2114
        %v2163 = vpack.c.b16 %v2117, %v2116
        %v2164 = vpack.c.b16 %v2119, %v2118
        %v2165 = vpack.c.b16 %v2121, %v2120
        %v2166 = vpack.c.b16 %v2123, %v2122
        %v2167 = vpack.c.b16 %v2125, %v2124
        %v2168 = vpack.c.b16 %v2127, %v2126
        %v2169 = vpack.c.b16 %v2129, %v2128
        %v2170 = vpack.c.b16 %v2131, %v2130
        %v2171 = vpack.c.b16 %v2133, %v2132
        %v2172 = vpack.c.b16 %v2135, %v2134
        %v2173 = vpack.c.b16 %v2137, %v2136
        %v2174 = vpack.c.b16 %v2139, %v2138
        %v2175 = vpack.c.b16 %v2141, %v2140
        %v2176 = vpack.c.b16 %v2143, %v2142
        %v2177 = vpack.c.b16 %v2145, %v2144
        %2210 = vmatpush.bf16.msra.mxu0 %v2153
        %2211 = vmatpush.bf16.msra.mxu0 %v2152
        %2212 = vmatpush.bf16.msra.mxu0 %v2151
        %2213 = vmatpush.bf16.msra.mxu0 %v2150
        %2214 = vmatpush.bf16.msra.mxu0 %v2149
        %2215 = vmatpush.bf16.msra.mxu0 %v2148
        %2216 = vmatpush.bf16.msra.mxu0 %v2147
        %2217 = vmatpush.bf16.msra.mxu0 %v2146
        %2218 = vmatmul.bf16.gmra.mxu0 %v1946
        %v2219 = vpop.f32.mrf.mxu0
        %v2220 = vadd.f32 %v2016, %v2219
        %v2221 = vpop.f32.mrf.mxu0
        %2222 = vdwg.mxu0
        %2223 = vmatpush.bf16.msra.mxu0 %v2161
        %2224 = vmatpush.bf16.msra.mxu0 %v2160
        %2225 = vmatpush.bf16.msra.mxu0 %v2159
        %2226 = vmatpush.bf16.msra.mxu0 %v2158
        %2227 = vmatpush.bf16.msra.mxu0 %v2157
        %2228 = vmatpush.bf16.msra.mxu0 %v2156
        %2229 = vmatpush.bf16.msra.mxu0 %v2155
        %2230 = vmatpush.bf16.msra.mxu0 %v2154
        %2231 = vmatmul.bf16.gmra.mxu0 %v1947
        %v2232 = vpop.f32.mrf.mxu0
        %v2233 = vadd.f32 %v2220, %v2232
        %v2234 = vpop.f32.mrf.mxu0
        %2235 = vdwg.mxu0
        %2236 = vmatpush.bf16.msra.mxu0 %v2169
        %2237 = vmatpush.bf16.msra.mxu0 %v2168
        %2238 = vmatpush.bf16.msra.mxu0 %v2167
        %2239 = vmatpush.bf16.msra.mxu0 %v2166
        %2240 = vmatpush.bf16.msra.mxu0 %v2165
        %2241 = vmatpush.bf16.msra.mxu0 %v2164
        %2242 = vmatpush.bf16.msra.mxu0 %v2163
        %2243 = vmatpush.bf16.msra.mxu0 %v2162
        %2244 = vmatmul.bf16.gmra.mxu0 %v1948
        %v2245 = vpop.f32.mrf.mxu0
        %v2246 = vadd.f32 %v2233, %v2245
        %v2247 = vpop.f32.mrf.mxu0
        %2248 = vdwg.mxu0
        %2249 = vmatpush.bf16.msra.mxu0 %v2177
        %2250 = vmatpush.bf16.msra.mxu0 %v2176
        %2251 = vmatpush.bf16.msra.mxu0 %v2175
        %2252 = vmatpush.bf16.msra.mxu0 %v2174
        %2253 = vmatpush.bf16.msra.mxu0 %v2173
        %2254 = vmatpush.bf16.msra.mxu0 %v2172
        %2255 = vmatpush.bf16.msra.mxu0 %v2171
        %2256 = vmatpush.bf16.msra.mxu0 %v2170
        %2257 = vmatmul.bf16.gmra.mxu0 %v1949
        %v2258 = vpop.f32.mrf.mxu0
        %v2259 = vadd.f32 %v2246, %v2258
        %v2260 = vpop.f32.mrf.mxu0
        %2261 = vdwg.mxu0
        %v2262 = vmax.f32 %v2259, 0.0
        %v2263 = vpack.c.bf16 %v2262, %v2262
        %v2264 = vld [vmem:[#allocation13] sm:$0xf]
        %v2265 = vld [vmem:[#allocation13 + $0x4] sm:$0xf]
        %v2266 = vld [vmem:[#allocation13 + $0x8] sm:$0xf]
        %v2267 = vld [vmem:[#allocation13 + $0xc] sm:$0xf]
        %v2268 = vld [vmem:[#allocation13 + $0x10] sm:$0xf]
        %v2269 = vld [vmem:[#allocation13 + $0x14] sm:$0xf]
        %v2270 = vld [vmem:[#allocation13 + $0x18] sm:$0xf]
        %v2271 = vld [vmem:[#allocation13 + $0x1c] sm:$0xf]
        %v2272 = vld [vmem:[#allocation13 + $0x20] sm:$0xf]
        %v2273 = vld [vmem:[#allocation13 + $0x24] sm:$0xf]
        %v2274 = vld [vmem:[#allocation13 + $0x28] sm:$0xf]
        %v2275 = vld [vmem:[#allocation13 + $0x2c] sm:$0xf]
        %v2276 = vld [vmem:[#allocation13 + $0x30] sm:$0xf]
        %v2277 = vld [vmem:[#allocation13 + $0x34] sm:$0xf]
        %v2278 = vld [vmem:[#allocation13 + $0x38] sm:$0xf]
        %v2279 = vld [vmem:[#allocation13 + $0x3c] sm:$0xf]
        %v2280 = vld [vmem:[%s8] sm:$0x1]
        %v2282 = vperm.slane %v2280, 0
        %v2300 = vunpack.c.l.b16 %v2264
        %v2301 = vunpack.c.l.b16 %v2265
        %v2302 = vunpack.c.l.b16 %v2266
        %v2303 = vunpack.c.l.b16 %v2267
        %v2304 = vunpack.c.l.b16 %v2268
        %v2305 = vunpack.c.l.b16 %v2269
        %v2306 = vunpack.c.l.b16 %v2270
        %v2307 = vunpack.c.l.b16 %v2271
        %v2308 = vunpack.c.l.b16 %v2272
        %v2309 = vunpack.c.l.b16 %v2273
        %v2310 = vunpack.c.l.b16 %v2274
        %v2311 = vunpack.c.l.b16 %v2275
        %v2312 = vunpack.c.l.b16 %v2276
        %v2313 = vunpack.c.l.b16 %v2277
        %v2314 = vunpack.c.l.b16 %v2278
        %v2315 = vunpack.c.l.b16 %v2279
        %v2316 = vpack.c.b16 %v2301, %v2300
        %v2317 = vpack.c.b16 %v2303, %v2302
        %v2318 = vpack.c.b16 %v2305, %v2304
        %v2319 = vpack.c.b16 %v2307, %v2306
        %v2320 = vpack.c.b16 %v2309, %v2308
        %v2321 = vpack.c.b16 %v2311, %v2310
        %v2322 = vpack.c.b16 %v2313, %v2312
        %v2323 = vpack.c.b16 %v2315, %v2314
        %2332 = vmatpush.bf16.msra.mxu0 %v2323
        %2333 = vmatpush.bf16.msra.mxu0 %v2322
        %2334 = vmatpush.bf16.msra.mxu0 %v2321
        %2335 = vmatpush.bf16.msra.mxu0 %v2320
        %2336 = vmatpush.bf16.msra.mxu0 %v2319
        %2337 = vmatpush.bf16.msra.mxu0 %v2318
        %2338 = vmatpush.bf16.msra.mxu0 %v2317
        %2339 = vmatpush.bf16.msra.mxu0 %v2316
        %2340 = vmatmul.bf16.gmra.mxu0 %v2263
        %v2341 = vpop.f32.mrf.mxu0
        %v2342 = vadd.f32 %v2282, %v2341
        %v2343 = vpop.f32.mrf.mxu0
        %2344 = vdwg.mxu0
        %2345 = vst [vmem:[%s445] sm:$0xff] %v2342
        %s2346 = sand.u32 %s231, 1
        %s2347 = scalar_lea.sflag [#allocation4], %s2346
        %s2348 = sand.u32 %s231, 1
        %s2349 = smul.addr %s2348, 8
        %s2350 = scalar_lea.vmem [#allocation14], %s2349
        // Predicated region
        $region85: #{tpu_custom_call.1} parent=55 // pred_check
          %p2351 = pneg %p241
        $region86: #{tpu_custom_call.1} parent=55 // pred_check_branch
          %2353 = sbr.rel (%p2351) target = $region88
        $region87: #{tpu_custom_call.1} parent=55 // pred_region
          %2355 = vsyncadd %s2347, 0
          %s2356 = smul.addr %s29, 8
          %s2357 = scalar_lea.hbm %s9, %s2356
          %s2359 = sshll.u32 %s2350, 4
          %s2360 = int_to_ptr.vmem [resolvable:$true] %s2359
          %s2361 = sshll.u32 %s2357, 4
          %s2362 = int_to_ptr.hbm [resolvable:$true] %s2361
          %2364 = dma.vmem_to_hbm [thread:$0]  %s2360, 128, %s2362, %s2347
        $region88: #{tpu_custom_call.1} parent=55 // pred_fallthru
          _
      $region56: #{tpu_custom_call.1} parent=5 // pred_fallthru
        _
      %p2365 = scmp.le.s32.totalorder 2, %s24
      // Predicated region
      $region89: #{tpu_custom_call.1} parent=5 // pred_check
        %p2366 = pneg %p2365
      $region90: #{tpu_custom_call.1} parent=5 // pred_check_branch
        %2368 = sbr.rel (%p2366) target = $region92
      $region91: #{tpu_custom_call.1} parent=5 // pred_region
        %s2369 = ssub.s32 %s24, 2
        // Predicated region
        $region93: #{tpu_custom_call.1} parent=91 // pred_check
          %p2370 = pneg %p247
        $region94: #{tpu_custom_call.1} parent=91 // pred_check_branch
          %2372 = sbr.rel (%p2370) target = $region96
        $region95: #{tpu_custom_call.1} parent=91 // pred_region
          %s2373 = sand.u32 %s232, 1
          %s2374 = scalar_lea.sflag [#allocation4], %s2373
          %s2375 = sand.u32 %s232, 1
          %s2376 = smul.addr %s2375, 8
          %s2377 = scalar_lea.vmem [#allocation14], %s2376
          %2379 = dma.done %s2374, 128
        $region96: #{tpu_custom_call.1} parent=91 // pred_fallthru
          _
      $region92: #{tpu_custom_call.1} parent=5 // pred_fallthru
        _
    $region6: #{tpu_custom_call.1} parent=1 // loop_footer
      %s28 = sadd.s32 1, %s24
    $region7: #{tpu_custom_call.1} parent=1 // loop_footer_branch
      %23 = sbr.rel target = $region3
    $region8: #{tpu_custom_call.1} parent=1 // loop_exit
      _
    %2380 = vsyncpa [#allocation3], 1
    %s2381 = scalar_lea.sflag [#allocation3], 1
    %2382 = vsyncpa %s2381, 1
    %2383 = vsyncpa [#allocation6], 1
    %2384 = vsyncpa [#allocation9], 1
    %2385 = vsyncpa [#allocation12], 1
    %2386 = vsyncpa [#allocation4], 1
    %s2387 = scalar_lea.sflag [#allocation4], 1
    %2388 = vsyncpa %s2387, 1

// kernel: tpu_custom_call.1
$region0: #{tpu_custom_call.1}
  #allocation0 [shape = 'u32[]', space=smem, size = 0x4, offset = 0x4, fixed_abs, tag = 'smem constant byte address 0x4 - core index']
  #allocation1 [shape = 'u32[72,128]{1,0:T(1,128)}', space=vmem, size = 0x9000, scoped, tag = 'internal scratch']
  %s0 = inlined_call_operand.hbm [shape: f32[16,256], index: 0, kind: input, shape index: {}]
  %s1 = inlined_call_operand.hbm [shape: bf16[256,512], index: 1, kind: input, shape index: {}]
  %s2 = inlined_call_operand.hbm [shape: f32[1,512], index: 2, kind: input, shape index: {}]
  %s3 = inlined_call_operand.hbm [shape: bf16[512,512], index: 3, kind: input, shape index: {}]
  %s4 = inlined_call_operand.hbm [shape: f32[1,512], index: 4, kind: input, shape index: {}]
  %s5 = inlined_call_operand.hbm [shape: bf16[512,128], index: 5, kind: input, shape index: {}]
  %s6 = inlined_call_operand.vmem [shape: f32[1,128], index: 6, kind: input, shape index: {}]
  %s7 = inlined_call_operand.hbm [shape: bf16[128,128], index: 7, kind: input, shape index: {}]
  %s8 = inlined_call_operand.vmem [shape: f32[1,128], index: 8, kind: input, shape index: {}]
  %s9 = inlined_call_operand.hbm [shape: f32[16,128], index: 9, kind: output, shape index: {}]
  %s10 = sld [smem:[#allocation0]]
  $region97: #{tpu_custom_call.1} parent=0
    _
  %s12 = ssub.s32 1, %s10
  %s13 = scalar_select 0, %s12, %s10
  $region1: #{tpu_custom_call.1} parent=0
    #allocation2 [shape = 'u8[16384]{0}', space=vmem, size = 0x4000, scoped, tag = 'input window, operand 0']
    #allocation3 [shape = 's32[2]{0}', space=sflag, size = 0x8, scoped, tag = 'scoped memory for tpu_custom_call.1']
    #allocation4 [shape = 's32[2]{0}', space=sflag, size = 0x8, scoped, tag = 'scoped memory for tpu_custom_call.1']
    #allocation5 [shape = 'u8[262144]{0}', space=vmem, size = 0x40000, scoped, tag = 'input window, operand 1, single buffered']
    #allocation6 [shape = 's32[1]{0}', space=sflag, size = 0x4, scoped, tag = 'scoped memory for tpu_custom_call.1']
    #allocation7 [shape = 'u8[2048]{0}', space=vmem, size = 0x800, scoped, tag = 'input window, operand 2, single buffered']
    #allocation8 [shape = 'u8[524288]{0}', space=vmem, size = 0x80000, scoped, tag = 'input window, operand 3, single buffered']
    #allocation9 [shape = 's32[1]{0}', space=sflag, size = 0x4, scoped, tag = 'scoped memory for tpu_custom_call.1']
    #allocation10 [shape = 'u8[2048]{0}', space=vmem, size = 0x800, scoped, tag = 'input window, operand 4, single buffered']
    #allocation11 [shape = 'u8[131072]{0}', space=vmem, size = 0x20000, scoped, tag = 'input window, operand 5, single buffered']
    #allocation12 [shape = 's32[1]{0}', space=sflag, size = 0x4, scoped, tag = 'scoped memory for tpu_custom_call.1']
    #allocation13 [shape = 'u8[32768]{0}', space=vmem, size = 0x8000, scoped, tag = 'input window, operand 7, single buffered']
    #allocation14 [shape = 'u8[8192]{0}', space=vmem, size = 0x2000, scoped, tag = 'output window, operand 0']
    %14 = vsyncpa [#allocation3], 0
    %s15 = scalar_lea.sflag [#allocation3], 1
    %16 = vsyncpa %s15, 0
    %17 = vsyncpa [#allocation6], 0
    %18 = vsyncpa [#allocation9], 0
    %19 = vsyncpa [#allocation12], 0
    %20 = vsyncpa [#allocation4], 0
    %s21 = scalar_lea.sflag [#allocation4], 1
    %22 = vsyncpa %s21, 0
    loop: start=0, step=1, limit=4
    $region2: #{tpu_custom_call.1} parent=1 // loop_pre_header
      _
    $region3: #{tpu_custom_call.1} parent=1 // loop_header
      %s24 = sphi 0, %s28
      %p25 = scmp.ge.s32.totalorder %s24, 4
      %s34 = sphi 0, %s36
      %s37 = sphi 0, %s34
      %s38 = sphi 0, %s37
      %s54 = sphi 0, %s38
      %s58 = sphi 0, %s58
      %s60 = sphi 0, %s58
      %s61 = sphi 0, %s60
      %s75 = sphi 0, %s61
      %s79 = sphi 0, %s79
      %s81 = sphi 0, %s79
      %s82 = sphi 0, %s81
      %s96 = sphi 0, %s82
      %s100 = sphi 0, %s100
      %s102 = sphi 0, %s100
      %s103 = sphi 0, %s102
      %s117 = sphi 0, %s103
      %s121 = sphi 0, %s121
      %s123 = sphi 0, %s121
      %s124 = sphi 0, %s123
      %s138 = sphi 0, %s124
      %s142 = sphi 0, %s142
      %s144 = sphi 0, %s142
      %s145 = sphi 0, %s144
      %s159 = sphi 0, %s145
      %s163 = sphi 0, %s163
      %s165 = sphi 0, %s163
      %s166 = sphi 0, %s165
      %s180 = sphi 0, %s166
      %s184 = sphi 0, %s184
      %s186 = sphi 0, %s184
      %s187 = sphi 0, %s186
      %s201 = sphi 0, %s187
      %s205 = sphi 0, %s205
      %s207 = sphi 0, %s205
      %s208 = sphi 0, %s207
      %s222 = sphi 0, %s208
      %s228 = sphi 0, %s230
      %s231 = sphi 0, %s228
      %s232 = sphi 0, %s231
      %s248 = sphi 0, %s232
    $region4: #{tpu_custom_call.1} parent=1 // loop_header_branch
      %27 = sbr.rel (%p25) target = $region8
    $region5: #{tpu_custom_call.1} parent=1 // loop_body
      %s29 = ssub.s32 %s24, 1
      %s30 = ssub.s32 %s24, 2
      %s31 = sadd.s32 %s24, 1
      %s32 = ssub.s32 %s24, %s31
      %p33 = scmp.eq.s32.totalorder %s32, 0
      %s35 = sadd.s32 %s34, 1
      %s36 = scalar_select %p33, %s34, %s35
      %p39 = pneg %p33
      %p40 = scmp.eq.s32.totalorder %s24, 1
      %p41 = por %p39, %p40
      %p42 = scmp.ne.s32.totalorder %s34, %s37
      %p43 = scmp.eq.s32.totalorder %s24, 0
      %p44 = por %p42, %p43
      %p45 = scmp.ne.s32.totalorder %s34, %s37
      %p46 = scmp.eq.s32.totalorder %s29, 1
      %p47 = por %p45, %p46
      %p48 = scmp.ne.s32.totalorder %s37, %s38
      %p49 = scmp.eq.s32.totalorder %s29, 0
      %p50 = por %p48, %p49
      %p51 = scmp.ne.s32.totalorder %s37, %s38
      %p52 = scmp.eq.s32.totalorder %s30, 1
      %p53 = por %p51, %p52
      %p55 = scmp.ne.s32.totalorder %s38, %s54
      %p56 = scmp.eq.s32.totalorder %s30, 0
      %p57 = por %p55, %p56
      %s59 = sadd.s32 %s58, 1
      %p62 = scmp.eq.s32.totalorder %s24, 1
      %p63 = scmp.ne.s32.totalorder %s58, %s60
      %p64 = scmp.eq.s32.totalorder %s24, 0
      %p65 = por %p63, %p64
      %p66 = scmp.ne.s32.totalorder %s58, %s60
      %p67 = scmp.eq.s32.totalorder %s29, 1
      %p68 = por %p66, %p67
      %p69 = scmp.ne.s32.totalorder %s60, %s61
      %p70 = scmp.eq.s32.totalorder %s29, 0
      %p71 = por %p69, %p70
      %p72 = scmp.ne.s32.totalorder %s60, %s61
      %p73 = scmp.eq.s32.totalorder %s30, 1
      %p74 = por %p72, %p73
      %p76 = scmp.ne.s32.totalorder %s61, %s75
      %p77 = scmp.eq.s32.totalorder %s30, 0
      %p78 = por %p76, %p77
      %s80 = sadd.s32 %s79, 1
      %p83 = scmp.eq.s32.totalorder %s24, 1
      %p84 = scmp.ne.s32.totalorder %s79, %s81
      %p85 = scmp.eq.s32.totalorder %s24, 0
      %p86 = por %p84, %p85
      %p87 = scmp.ne.s32.totalorder %s79, %s81
      %p88 = scmp.eq.s32.totalorder %s29, 1
      %p89 = por %p87, %p88
      %p90 = scmp.ne.s32.totalorder %s81, %s82
      %p91 = scmp.eq.s32.totalorder %s29, 0
      %p92 = por %p90, %p91
      %p93 = scmp.ne.s32.totalorder %s81, %s82
      %p94 = scmp.eq.s32.totalorder %s30, 1
      %p95 = por %p93, %p94
      %p97 = scmp.ne.s32.totalorder %s82, %s96
      %p98 = scmp.eq.s32.totalorder %s30, 0
      %p99 = por %p97, %p98
      %s101 = sadd.s32 %s100, 1
      %p104 = scmp.eq.s32.totalorder %s24, 1
      %p105 = scmp.ne.s32.totalorder %s100, %s102
      %p106 = scmp.eq.s32.totalorder %s24, 0
      %p107 = por %p105, %p106
      %p108 = scmp.ne.s32.totalorder %s100, %s102
      %p109 = scmp.eq.s32.totalorder %s29, 1
      %p110 = por %p108, %p109
      %p111 = scmp.ne.s32.totalorder %s102, %s103
      %p112 = scmp.eq.s32.totalorder %s29, 0
      %p113 = por %p111, %p112
      %p114 = scmp.ne.s32.totalorder %s102, %s103
      %p115 = scmp.eq.s32.totalorder %s30, 1
      %p116 = por %p114, %p115
      %p118 = scmp.ne.s32.totalorder %s103, %s117
      %p119 = scmp.eq.s32.totalorder %s30, 0
      %p120 = por %p118, %p119
      %s122 = sadd.s32 %s121, 1
      %p125 = scmp.eq.s32.totalorder %s24, 1
      %p126 = scmp.ne.s32.totalorder %s121, %s123
      %p127 = scmp.eq.s32.totalorder %s24, 0
      %p128 = por %p126, %p127
      %p129 = scmp.ne.s32.totalorder %s121, %s123
      %p130 = scmp.eq.s32.totalorder %s29, 1
      %p131 = por %p129, %p130
      %p132 = scmp.ne.s32.totalorder %s123, %s124
      %p133 = scmp.eq.s32.totalorder %s29, 0
      %p134 = por %p132, %p133
      %p135 = scmp.ne.s32.totalorder %s123, %s124
      %p136 = scmp.eq.s32.totalorder %s30, 1
      %p137 = por %p135, %p136
      %p139 = scmp.ne.s32.totalorder %s124, %s138
      %p140 = scmp.eq.s32.totalorder %s30, 0
      %p141 = por %p139, %p140
      %s143 = sadd.s32 %s142, 1
      %p146 = scmp.eq.s32.totalorder %s24, 1
      %p147 = scmp.ne.s32.totalorder %s142, %s144
      %p148 = scmp.eq.s32.totalorder %s24, 0
      %p149 = por %p147, %p148
      %p150 = scmp.ne.s32.totalorder %s142, %s144
      %p151 = scmp.eq.s32.totalorder %s29, 1
      %p152 = por %p150, %p151
      %p153 = scmp.ne.s32.totalorder %s144, %s145
      %p154 = scmp.eq.s32.totalorder %s29, 0
      %p155 = por %p153, %p154
      %p156 = scmp.ne.s32.totalorder %s144, %s145
      %p157 = scmp.eq.s32.totalorder %s30, 1
      %p158 = por %p156, %p157
      %p160 = scmp.ne.s32.totalorder %s145, %s159
      %p161 = scmp.eq.s32.totalorder %s30, 0
      %p162 = por %p160, %p161
      %s164 = sadd.s32 %s163, 1
      %p167 = scmp.eq.s32.totalorder %s24, 1
      %p168 = scmp.ne.s32.totalorder %s163, %s165
      %p169 = scmp.eq.s32.totalorder %s24, 0
      %p170 = por %p168, %p169
      %p171 = scmp.ne.s32.totalorder %s163, %s165
      %p172 = scmp.eq.s32.totalorder %s29, 1
      %p173 = por %p171, %p172
      %p174 = scmp.ne.s32.totalorder %s165, %s166
      %p175 = scmp.eq.s32.totalorder %s29, 0
      %p176 = por %p174, %p175
      %p177 = scmp.ne.s32.totalorder %s165, %s166
      %p178 = scmp.eq.s32.totalorder %s30, 1
      %p179 = por %p177, %p178
      %p181 = scmp.ne.s32.totalorder %s166, %s180
      %p182 = scmp.eq.s32.totalorder %s30, 0
      %p183 = por %p181, %p182
      %s185 = sadd.s32 %s184, 1
      %p188 = scmp.eq.s32.totalorder %s24, 1
      %p189 = scmp.ne.s32.totalorder %s184, %s186
      %p190 = scmp.eq.s32.totalorder %s24, 0
      %p191 = por %p189, %p190
      %p192 = scmp.ne.s32.totalorder %s184, %s186
      %p193 = scmp.eq.s32.totalorder %s29, 1
      %p194 = por %p192, %p193
      %p195 = scmp.ne.s32.totalorder %s186, %s187
      %p196 = scmp.eq.s32.totalorder %s29, 0
      %p197 = por %p195, %p196
      %p198 = scmp.ne.s32.totalorder %s186, %s187
      %p199 = scmp.eq.s32.totalorder %s30, 1
      %p200 = por %p198, %p199
      %p202 = scmp.ne.s32.totalorder %s187, %s201
      %p203 = scmp.eq.s32.totalorder %s30, 0
      %p204 = por %p202, %p203
      %s206 = sadd.s32 %s205, 1
      %p209 = scmp.eq.s32.totalorder %s24, 1
      %p210 = scmp.ne.s32.totalorder %s205, %s207
      %p211 = scmp.eq.s32.totalorder %s24, 0
      %p212 = por %p210, %p211
      %p213 = scmp.ne.s32.totalorder %s205, %s207
      %p214 = scmp.eq.s32.totalorder %s29, 1
      %p215 = por %p213, %p214
      %p216 = scmp.ne.s32.totalorder %s207, %s208
      %p217 = scmp.eq.s32.totalorder %s29, 0
      %p218 = por %p216, %p217
      %p219 = scmp.ne.s32.totalorder %s207, %s208
      %p220 = scmp.eq.s32.totalorder %s30, 1
      %p221 = por %p219, %p220
      %p223 = scmp.ne.s32.totalorder %s208, %s222
      %p224 = scmp.eq.s32.totalorder %s30, 0
      %p225 = por %p223, %p224
      %s226 = ssub.s32 %s24, %s31
      %p227 = scmp.eq.s32.totalorder %s226, 0
      %s229 = sadd.s32 %s228, 1
      %s230 = scalar_select %p227, %s228, %s229
      %p233 = pneg %p227
      %p234 = scmp.eq.s32.totalorder %s24, 1
      %p235 = por %p233, %p234
      %p236 = scmp.ne.s32.totalorder %s228, %s231
      %p237 = scmp.eq.s32.totalorder %s24, 0
      %p238 = por %p236, %p237
      %p239 = scmp.ne.s32.totalorder %s228, %s231
      %p240 = scmp.eq.s32.totalorder %s29, 1
      %p241 = por %p239, %p240
      %p242 = scmp.ne.s32.totalorder %s231, %s232
      %p243 = scmp.eq.s32.totalorder %s29, 0
      %p244 = por %p242, %p243
      %p245 = scmp.ne.s32.totalorder %s231, %s232
      %p246 = scmp.eq.s32.totalorder %s30, 1
      %p247 = por %p245, %p246
      %p249 = scmp.ne.s32.totalorder %s232, %s248
      %p250 = scmp.eq.s32.totalorder %s30, 0
      %p251 = por %p249, %p250
      %p252 = scmp.le.s32.totalorder 1, %s24
      %p253 = scmp.lt.s32.totalorder %s24, 3
      %p254 = pnand %p252, %p253
      %p255 = pneg %p254
      // Predicated region
      $region9: #{tpu_custom_call.1} parent=5 // pred_check
        _
      $region10: #{tpu_custom_call.1} parent=5 // pred_check_branch
        %257 = sbr.rel (%p254) target = $region12
      $region11: #{tpu_custom_call.1} parent=5 // pred_region
        %s258 = ssub.s32 %s24, 1
        // Predicated region
        $region13: #{tpu_custom_call.1} parent=11 // pred_check
          %p259 = pneg %p71
        $region14: #{tpu_custom_call.1} parent=11 // pred_check_branch
          %261 = sbr.rel (%p259) target = $region16
        $region15: #{tpu_custom_call.1} parent=11 // pred_region
          %263 = vsyncadd [#allocation6], 0
          %s264 = sshll.u32 %s1, 4
          %s265 = int_to_ptr.hbm [resolvable:$true] %s264
          %s266 = sshll.u32 [#allocation5], 4
          %s267 = int_to_ptr.vmem [resolvable:$true] %s266
          %272 = dma.hbm_to_vmem [thread:$0]  %s265, 8192, %s267, [#allocation6], 256, 256, 16
        $region16: #{tpu_custom_call.1} parent=11 // pred_fallthru
          _
        // Predicated region
        $region17: #{tpu_custom_call.1} parent=11 // pred_check
          %p273 = pneg %p92
        $region18: #{tpu_custom_call.1} parent=11 // pred_check_branch
          %275 = sbr.rel (%p273) target = $region20
        $region19: #{tpu_custom_call.1} parent=11 // pred_region
          %277 = vsyncadd [#allocation6], 0
          %s279 = sshll.u32 %s2, 4
          %s280 = int_to_ptr.hbm [resolvable:$true] %s279
          %s281 = sshll.u32 [#allocation7], 4
          %s282 = int_to_ptr.vmem [resolvable:$true] %s281
          %284 = dma.hbm_to_vmem [thread:$0]  %s280, 64, %s282, [#allocation6]
        $region20: #{tpu_custom_call.1} parent=11 // pred_fallthru
          _
        // Predicated region
        $region21: #{tpu_custom_call.1} parent=11 // pred_check
          %p285 = pneg %p113
        $region22: #{tpu_custom_call.1} parent=11 // pred_check_branch
          %287 = sbr.rel (%p285) target = $region24
        $region23: #{tpu_custom_call.1} parent=11 // pred_region
          %289 = vsyncadd [#allocation9], 0
          %s290 = sshll.u32 %s3, 4
          %s291 = int_to_ptr.hbm [resolvable:$true] %s290
          %s292 = sshll.u32 [#allocation8], 4
          %s293 = int_to_ptr.vmem [resolvable:$true] %s292
          %298 = dma.hbm_to_vmem [thread:$0]  %s291, 16384, %s293, [#allocation9], 256, 256, 16
        $region24: #{tpu_custom_call.1} parent=11 // pred_fallthru
          _
        // Predicated region
        $region25: #{tpu_custom_call.1} parent=11 // pred_check
          %p299 = pneg %p134
        $region26: #{tpu_custom_call.1} parent=11 // pred_check_branch
          %301 = sbr.rel (%p299) target = $region28
        $region27: #{tpu_custom_call.1} parent=11 // pred_region
          %303 = vsyncadd [#allocation9], 0
          %s305 = sshll.u32 %s4, 4
          %s306 = int_to_ptr.hbm [resolvable:$true] %s305
          %s307 = sshll.u32 [#allocation10], 4
          %s308 = int_to_ptr.vmem [resolvable:$true] %s307
          %310 = dma.hbm_to_vmem [thread:$0]  %s306, 64, %s308, [#allocation9]
        $region28: #{tpu_custom_call.1} parent=11 // pred_fallthru
          _
        // Predicated region
        $region29: #{tpu_custom_call.1} parent=11 // pred_check
          %p311 = pneg %p155
        $region30: #{tpu_custom_call.1} parent=11 // pred_check_branch
          %313 = sbr.rel (%p311) target = $region32
        $region31: #{tpu_custom_call.1} parent=11 // pred_region
          %315 = vsyncadd [#allocation12], 0
          %s316 = sshll.u32 %s5, 4
          %s317 = int_to_ptr.hbm [resolvable:$true] %s316
          %s318 = sshll.u32 [#allocation11], 4
          %s319 = int_to_ptr.vmem [resolvable:$true] %s318
          %324 = dma.hbm_to_vmem [thread:$0]  %s317, 4096, %s319, [#allocation12], 64, 64, 4
        $region32: #{tpu_custom_call.1} parent=11 // pred_fallthru
          _
        // Predicated region
        $region33: #{tpu_custom_call.1} parent=11 // pred_check
          %p325 = pneg %p176
        $region34: #{tpu_custom_call.1} parent=11 // pred_check_branch
          %327 = sbr.rel (%p325) target = $region36
        $region35: #{tpu_custom_call.1} parent=11 // pred_region
          _
        $region36: #{tpu_custom_call.1} parent=11 // pred_fallthru
          _
        // Predicated region
        $region37: #{tpu_custom_call.1} parent=11 // pred_check
          %p328 = pneg %p197
        $region38: #{tpu_custom_call.1} parent=11 // pred_check_branch
          %330 = sbr.rel (%p328) target = $region40
        $region39: #{tpu_custom_call.1} parent=11 // pred_region
          %332 = vsyncadd [#allocation12], 0
          %s333 = sshll.u32 %s7, 4
          %s334 = int_to_ptr.hbm [resolvable:$true] %s333
          %s335 = sshll.u32 [#allocation13], 4
          %s336 = int_to_ptr.vmem [resolvable:$true] %s335
          %341 = dma.hbm_to_vmem [thread:$0]  %s334, 1024, %s336, [#allocation12], 64, 64, 4
        $region40: #{tpu_custom_call.1} parent=11 // pred_fallthru
          _
        // Predicated region
        $region41: #{tpu_custom_call.1} parent=11 // pred_check
          %p342 = pneg %p218
        $region42: #{tpu_custom_call.1} parent=11 // pred_check_branch
          %344 = sbr.rel (%p342) target = $region44
        $region43: #{tpu_custom_call.1} parent=11 // pred_region
          _
        $region44: #{tpu_custom_call.1} parent=11 // pred_fallthru
          _
      $region12: #{tpu_custom_call.1} parent=5 // pred_fallthru
        _
      %p345 = scmp.lt.s32.totalorder %s24, 2
      // Predicated region
      $region45: #{tpu_custom_call.1} parent=5 // pred_check
        %p346 = pneg %p345
      $region46: #{tpu_custom_call.1} parent=5 // pred_check_branch
        %348 = sbr.rel (%p346) target = $region48
      $region47: #{tpu_custom_call.1} parent=5 // pred_region
        // Predicated region
        $region49: #{tpu_custom_call.1} parent=47 // pred_check
          %p349 = pneg %p44
        $region50: #{tpu_custom_call.1} parent=47 // pred_check_branch
          %351 = sbr.rel (%p349) target = $region52
        $region51: #{tpu_custom_call.1} parent=47 // pred_region
          %s352 = sand.u32 %s34, 1
          %s353 = scalar_lea.sflag [#allocation3], %s352
          %s354 = sand.u32 %s34, 1
          %s355 = smul.addr %s354, 16
          %s356 = scalar_lea.vmem [#allocation2], %s355
          %358 = vsyncadd %s353, 0
          %s359 = smul.addr %s24, 2
          %s360 = smul.addr %s359, 8
          %s361 = scalar_lea.hbm %s0, %s360
          %s363 = sshll.u32 %s361, 4
          %s364 = int_to_ptr.hbm [resolvable:$true] %s363
          %s365 = sshll.u32 %s356, 4
          %s366 = int_to_ptr.vmem [resolvable:$true] %s365
          %368 = dma.hbm_to_vmem [thread:$0]  %s364, 256, %s366, %s353
        $region52: #{tpu_custom_call.1} parent=47 // pred_fallthru
          _
      $region48: #{tpu_custom_call.1} parent=5 // pred_fallthru
        _
      %p369 = scmp.le.s32.totalorder 1, %s24
      %p370 = scmp.lt.s32.totalorder %s24, 3
      %p371 = pnand %p369, %p370
      %p372 = pneg %p371
      // Predicated region
      $region53: #{tpu_custom_call.1} parent=5 // pred_check
        _
      $region54: #{tpu_custom_call.1} parent=5 // pred_check_branch
        %374 = sbr.rel (%p371) target = $region56
      $region55: #{tpu_custom_call.1} parent=5 // pred_region
        %s375 = ssub.s32 %s24, 1
        %s376 = sand.u32 %s37, 1
        %s377 = scalar_lea.sflag [#allocation3], %s376
        %s378 = sand.u32 %s37, 1
        %s379 = smul.addr %s378, 16
        %s380 = scalar_lea.vmem [#allocation2], %s379
        // Predicated region
        $region57: #{tpu_custom_call.1} parent=55 // pred_check
          %p381 = pneg %p50
        $region58: #{tpu_custom_call.1} parent=55 // pred_check_branch
          %383 = sbr.rel (%p381) target = $region60
        $region59: #{tpu_custom_call.1} parent=55 // pred_region
          %385 = dma.done %s377, 256
        $region60: #{tpu_custom_call.1} parent=55 // pred_fallthru
          _
        // Predicated region
        $region61: #{tpu_custom_call.1} parent=55 // pred_check
          %p386 = pneg %p71
        $region62: #{tpu_custom_call.1} parent=55 // pred_check_branch
          %388 = sbr.rel (%p386) target = $region64
        $region63: #{tpu_custom_call.1} parent=55 // pred_region
          %390 = dma.done [#allocation6], 8192
        $region64: #{tpu_custom_call.1} parent=55 // pred_fallthru
          _
        // Predicated region
        $region65: #{tpu_custom_call.1} parent=55 // pred_check
          %p391 = pneg %p92
        $region66: #{tpu_custom_call.1} parent=55 // pred_check_branch
          %393 = sbr.rel (%p391) target = $region68
        $region67: #{tpu_custom_call.1} parent=55 // pred_region
          %395 = dma.done [#allocation6], 64
        $region68: #{tpu_custom_call.1} parent=55 // pred_fallthru
          _
        // Predicated region
        $region69: #{tpu_custom_call.1} parent=55 // pred_check
          %p396 = pneg %p113
        $region70: #{tpu_custom_call.1} parent=55 // pred_check_branch
          %398 = sbr.rel (%p396) target = $region72
        $region71: #{tpu_custom_call.1} parent=55 // pred_region
          %400 = dma.done [#allocation9], 16384
        $region72: #{tpu_custom_call.1} parent=55 // pred_fallthru
          _
        // Predicated region
        $region73: #{tpu_custom_call.1} parent=55 // pred_check
          %p401 = pneg %p134
        $region74: #{tpu_custom_call.1} parent=55 // pred_check_branch
          %403 = sbr.rel (%p401) target = $region76
        $region75: #{tpu_custom_call.1} parent=55 // pred_region
          %405 = dma.done [#allocation9], 64
        $region76: #{tpu_custom_call.1} parent=55 // pred_fallthru
          _
        // Predicated region
        $region77: #{tpu_custom_call.1} parent=55 // pred_check
          %p406 = pneg %p155
        $region78: #{tpu_custom_call.1} parent=55 // pred_check_branch
          %408 = sbr.rel (%p406) target = $region80
        $region79: #{tpu_custom_call.1} parent=55 // pred_region
          %410 = dma.done [#allocation12], 4096
        $region80: #{tpu_custom_call.1} parent=55 // pred_fallthru
          _
        // Predicated region
        $region81: #{tpu_custom_call.1} parent=55 // pred_check
          %p411 = pneg %p197
        $region82: #{tpu_custom_call.1} parent=55 // pred_check_branch
          %413 = sbr.rel (%p411) target = $region84
        $region83: #{tpu_custom_call.1} parent=55 // pred_region
          %415 = dma.done [#allocation12], 1024
        $region84: #{tpu_custom_call.1} parent=55 // pred_fallthru
          _
        %s416 = sand.u32 %s37, 1
        %s417 = scalar_lea.sflag [#allocation3], %s416
        %s418 = sand.u32 %s37, 1
        %s419 = smul.addr %s418, 16
        %s420 = scalar_lea.vmem [#allocation2], %s419
        %p421 = pneg %p50
        %p422 = pneg %p47
        %p423 = pneg %p71
        %p424 = pneg %p68
        %p425 = pneg %p92
        %p426 = pneg %p89
        %p427 = pneg %p113
        %p428 = pneg %p110
        %p429 = pneg %p134
        %p430 = pneg %p131
        %p431 = pneg %p155
        %p432 = pneg %p152
        %p433 = pneg %p176
        %p434 = pneg %p173
        %p435 = pneg %p197
        %p436 = pneg %p194
        %p437 = pneg %p218
        %p438 = pneg %p215
        %p439 = pneg %p244
        %p440 = pneg %p241
        %s441 = sand.u32 %s231, 1
        %s442 = scalar_lea.sflag [#allocation4], %s441
        %s443 = sand.u32 %s231, 1
        %s444 = smul.addr %s443, 8
        %s445 = scalar_lea.vmem [#allocation14], %s444
        %v446 = vld [vmem:[%s380] sm:$0xff]
        %v447 = vld [vmem:[%s380 + $0x8] sm:$0xff]
        %v448 = vpack.c.bf16 %v446, %v446
        %v449 = vpack.c.bf16 %v447, %v447
        %v450 = vld [vmem:[#allocation5] sm:$0xff]
        %v451 = vld [vmem:[#allocation5 + $0x8] sm:$0xff]
        %v452 = vld [vmem:[#allocation5 + $0x10] sm:$0xff]
        %v453 = vld [vmem:[#allocation5 + $0x18] sm:$0xff]
        %v454 = vld [vmem:[#allocation5 + $0x20] sm:$0xff]
        %v455 = vld [vmem:[#allocation5 + $0x28] sm:$0xff]
        %v456 = vld [vmem:[#allocation5 + $0x30] sm:$0xff]
        %v457 = vld [vmem:[#allocation5 + $0x38] sm:$0xff]
        %v458 = vld [vmem:[#allocation5 + $0x40] sm:$0xff]
        %v459 = vld [vmem:[#allocation5 + $0x48] sm:$0xff]
        %v460 = vld [vmem:[#allocation5 + $0x50] sm:$0xff]
        %v461 = vld [vmem:[#allocation5 + $0x58] sm:$0xff]
        %v462 = vld [vmem:[#allocation5 + $0x60] sm:$0xff]
        %v463 = vld [vmem:[#allocation5 + $0x68] sm:$0xff]
        %v464 = vld [vmem:[#allocation5 + $0x70] sm:$0xff]
        %v465 = vld [vmem:[#allocation5 + $0x78] sm:$0xff]
        %v466 = vld [vmem:[#allocation5 + $0x80] sm:$0xff]
        %v467 = vld [vmem:[#allocation5 + $0x88] sm:$0xff]
        %v468 = vld [vmem:[#allocation5 + $0x90] sm:$0xff]
        %v469 = vld [vmem:[#allocation5 + $0x98] sm:$0xff]
        %v470 = vld [vmem:[#allocation5 + $0xa0] sm:$0xff]
        %v471 = vld [vmem:[#allocation5 + $0xa8] sm:$0xff]
        %v472 = vld [vmem:[#allocation5 + $0xb0] sm:$0xff]
        %v473 = vld [vmem:[#allocation5 + $0xb8] sm:$0xff]
        %v474 = vld [vmem:[#allocation5 + $0xc0] sm:$0xff]
        %v475 = vld [vmem:[#allocation5 + $0xc8] sm:$0xff]
        %v476 = vld [vmem:[#allocation5 + $0xd0] sm:$0xff]
        %v477 = vld [vmem:[#allocation5 + $0xd8] sm:$0xff]
        %v478 = vld [vmem:[#allocation5 + $0xe0] sm:$0xff]
        %v479 = vld [vmem:[#allocation5 + $0xe8] sm:$0xff]
        %v480 = vld [vmem:[#allocation5 + $0xf0] sm:$0xff]
        %v481 = vld [vmem:[#allocation5 + $0xf8] sm:$0xff]
        %v482 = vld [vmem:[#allocation5 + $0x100] sm:$0xff]
        %v483 = vld [vmem:[#allocation5 + $0x108] sm:$0xff]
        %v484 = vld [vmem:[#allocation5 + $0x110] sm:$0xff]
        %v485 = vld [vmem:[#allocation5 + $0x118] sm:$0xff]
        %v486 = vld [vmem:[#allocation5 + $0x120] sm:$0xff]
        %v487 = vld [vmem:[#allocation5 + $0x128] sm:$0xff]
        %v488 = vld [vmem:[#allocation5 + $0x130] sm:$0xff]
        %v489 = vld [vmem:[#allocation5 + $0x138] sm:$0xff]
        %v490 = vld [vmem:[#allocation5 + $0x140] sm:$0xff]
        %v491 = vld [vmem:[#allocation5 + $0x148] sm:$0xff]
        %v492 = vld [vmem:[#allocation5 + $0x150] sm:$0xff]
        %v493 = vld [vmem:[#allocation5 + $0x158] sm:$0xff]
        %v494 = vld [vmem:[#allocation5 + $0x160] sm:$0xff]
        %v495 = vld [vmem:[#allocation5 + $0x168] sm:$0xff]
        %v496 = vld [vmem:[#allocation5 + $0x170] sm:$0xff]
        %v497 = vld [vmem:[#allocation5 + $0x178] sm:$0xff]
        %v498 = vld [vmem:[#allocation5 + $0x180] sm:$0xff]
        %v499 = vld [vmem:[#allocation5 + $0x188] sm:$0xff]
        %v500 = vld [vmem:[#allocation5 + $0x190] sm:$0xff]
        %v501 = vld [vmem:[#allocation5 + $0x198] sm:$0xff]
        %v502 = vld [vmem:[#allocation5 + $0x1a0] sm:$0xff]
        %v503 = vld [vmem:[#allocation5 + $0x1a8] sm:$0xff]
        %v504 = vld [vmem:[#allocation5 + $0x1b0] sm:$0xff]
        %v505 = vld [vmem:[#allocation5 + $0x1b8] sm:$0xff]
        %v506 = vld [vmem:[#allocation5 + $0x1c0] sm:$0xff]
        %v507 = vld [vmem:[#allocation5 + $0x1c8] sm:$0xff]
        %v508 = vld [vmem:[#allocation5 + $0x1d0] sm:$0xff]
        %v509 = vld [vmem:[#allocation5 + $0x1d8] sm:$0xff]
        %v510 = vld [vmem:[#allocation5 + $0x1e0] sm:$0xff]
        %v511 = vld [vmem:[#allocation5 + $0x1e8] sm:$0xff]
        %v512 = vld [vmem:[#allocation5 + $0x1f0] sm:$0xff]
        %v513 = vld [vmem:[#allocation5 + $0x1f8] sm:$0xff]
        %v514 = vld [vmem:[#allocation7] sm:$0xf]
        %v516 = vperm.slane %v514, 0
        %v517 = vperm.slane %v514, 1
        %v518 = vperm.slane %v514, 2
        %v519 = vperm.slane %v514, 3
        %v588 = vunpack.c.l.b16 %v450
        %v589 = vunpack.c.h.b16 %v450
        %v590 = vunpack.c.l.b16 %v451
        %v591 = vunpack.c.h.b16 %v451
        %v592 = vunpack.c.l.b16 %v452
        %v593 = vunpack.c.h.b16 %v452
        %v594 = vunpack.c.l.b16 %v453
        %v595 = vunpack.c.h.b16 %v453
        %v596 = vunpack.c.l.b16 %v454
        %v597 = vunpack.c.h.b16 %v454
        %v598 = vunpack.c.l.b16 %v455
        %v599 = vunpack.c.h.b16 %v455
        %v600 = vunpack.c.l.b16 %v456
        %v601 = vunpack.c.h.b16 %v456
        %v602 = vunpack.c.l.b16 %v457
        %v603 = vunpack.c.h.b16 %v457
        %v604 = vunpack.c.l.b16 %v458
        %v605 = vunpack.c.h.b16 %v458
        %v606 = vunpack.c.l.b16 %v459
        %v607 = vunpack.c.h.b16 %v459
        %v608 = vunpack.c.l.b16 %v460
        %v609 = vunpack.c.h.b16 %v460
        %v610 = vunpack.c.l.b16 %v461
        %v611 = vunpack.c.h.b16 %v461
        %v612 = vunpack.c.l.b16 %v462
        %v613 = vunpack.c.h.b16 %v462
        %v614 = vunpack.c.l.b16 %v463
        %v615 = vunpack.c.h.b16 %v463
        %v616 = vunpack.c.l.b16 %v464
        %v617 = vunpack.c.h.b16 %v464
        %v618 = vunpack.c.l.b16 %v465
        %v619 = vunpack.c.h.b16 %v465
        %v620 = vunpack.c.l.b16 %v466
        %v621 = vunpack.c.h.b16 %v466
        %v622 = vunpack.c.l.b16 %v467
        %v623 = vunpack.c.h.b16 %v467
        %v624 = vunpack.c.l.b16 %v468
        %v625 = vunpack.c.h.b16 %v468
        %v626 = vunpack.c.l.b16 %v469
        %v627 = vunpack.c.h.b16 %v469
        %v628 = vunpack.c.l.b16 %v470
        %v629 = vunpack.c.h.b16 %v470
        %v630 = vunpack.c.l.b16 %v471
        %v631 = vunpack.c.h.b16 %v471
        %v632 = vunpack.c.l.b16 %v472
        %v633 = vunpack.c.h.b16 %v472
        %v634 = vunpack.c.l.b16 %v473
        %v635 = vunpack.c.h.b16 %v473
        %v636 = vunpack.c.l.b16 %v474
        %v637 = vunpack.c.h.b16 %v474
        %v638 = vunpack.c.l.b16 %v475
        %v639 = vunpack.c.h.b16 %v475
        %v640 = vunpack.c.l.b16 %v476
        %v641 = vunpack.c.h.b16 %v476
        %v642 = vunpack.c.l.b16 %v477
        %v643 = vunpack.c.h.b16 %v477
        %v644 = vunpack.c.l.b16 %v478
        %v645 = vunpack.c.h.b16 %v478
        %v646 = vunpack.c.l.b16 %v479
        %v647 = vunpack.c.h.b16 %v479
        %v648 = vunpack.c.l.b16 %v480
        %v649 = vunpack.c.h.b16 %v480
        %v650 = vunpack.c.l.b16 %v481
        %v651 = vunpack.c.h.b16 %v481
        %v652 = vunpack.c.l.b16 %v482
        %v653 = vunpack.c.h.b16 %v482
        %v654 = vunpack.c.l.b16 %v483
        %v655 = vunpack.c.h.b16 %v483
        %v656 = vunpack.c.l.b16 %v484
        %v657 = vunpack.c.h.b16 %v484
        %v658 = vunpack.c.l.b16 %v485
        %v659 = vunpack.c.h.b16 %v485
        %v660 = vunpack.c.l.b16 %v486
        %v661 = vunpack.c.h.b16 %v486
        %v662 = vunpack.c.l.b16 %v487
        %v663 = vunpack.c.h.b16 %v487
        %v664 = vunpack.c.l.b16 %v488
        %v665 = vunpack.c.h.b16 %v488
        %v666 = vunpack.c.l.b16 %v489
        %v667 = vunpack.c.h.b16 %v489
        %v668 = vunpack.c.l.b16 %v490
        %v669 = vunpack.c.h.b16 %v490
        %v670 = vunpack.c.l.b16 %v491
        %v671 = vunpack.c.h.b16 %v491
        %v672 = vunpack.c.l.b16 %v492
        %v673 = vunpack.c.h.b16 %v492
        %v674 = vunpack.c.l.b16 %v493
        %v675 = vunpack.c.h.b16 %v493
        %v676 = vunpack.c.l.b16 %v494
        %v677 = vunpack.c.h.b16 %v494
        %v678 = vunpack.c.l.b16 %v495
        %v679 = vunpack.c.h.b16 %v495
        %v680 = vunpack.c.l.b16 %v496
        %v681 = vunpack.c.h.b16 %v496
        %v682 = vunpack.c.l.b16 %v497
        %v683 = vunpack.c.h.b16 %v497
        %v684 = vunpack.c.l.b16 %v498
        %v685 = vunpack.c.h.b16 %v498
        %v686 = vunpack.c.l.b16 %v499
        %v687 = vunpack.c.h.b16 %v499
        %v688 = vunpack.c.l.b16 %v500
        %v689 = vunpack.c.h.b16 %v500
        %v690 = vunpack.c.l.b16 %v501
        %v691 = vunpack.c.h.b16 %v501
        %v692 = vunpack.c.l.b16 %v502
        %v693 = vunpack.c.h.b16 %v502
        %v694 = vunpack.c.l.b16 %v503
        %v695 = vunpack.c.h.b16 %v503
        %v696 = vunpack.c.l.b16 %v504
        %v697 = vunpack.c.h.b16 %v504
        %v698 = vunpack.c.l.b16 %v505
        %v699 = vunpack.c.h.b16 %v505
        %v700 = vunpack.c.l.b16 %v506
        %v701 = vunpack.c.h.b16 %v506
        %v702 = vunpack.c.l.b16 %v507
        %v703 = vunpack.c.h.b16 %v507
        %v704 = vunpack.c.l.b16 %v508
        %v705 = vunpack.c.h.b16 %v508
        %v706 = vunpack.c.l.b16 %v509
        %v707 = vunpack.c.h.b16 %v509
        %v708 = vunpack.c.l.b16 %v510
        %v709 = vunpack.c.h.b16 %v510
        %v710 = vunpack.c.l.b16 %v511
        %v711 = vunpack.c.h.b16 %v511
        %v712 = vunpack.c.l.b16 %v512
        %v713 = vunpack.c.h.b16 %v512
        %v714 = vunpack.c.l.b16 %v513
        %v715 = vunpack.c.h.b16 %v513
        %v716 = vpack.c.b16 %v592, %v588
        %v717 = vpack.c.b16 %v593, %v589
        %v718 = vpack.c.b16 %v594, %v590
        %v719 = vpack.c.b16 %v595, %v591
        %v720 = vpack.c.b16 %v600, %v596
        %v721 = vpack.c.b16 %v601, %v597
        %v722 = vpack.c.b16 %v602, %v598
        %v723 = vpack.c.b16 %v603, %v599
        %v724 = vpack.c.b16 %v608, %v604
        %v725 = vpack.c.b16 %v609, %v605
        %v726 = vpack.c.b16 %v610, %v606
        %v727 = vpack.c.b16 %v611, %v607
        %v728 = vpack.c.b16 %v616, %v612
        %v729 = vpack.c.b16 %v617, %v613
        %v730 = vpack.c.b16 %v618, %v614
        %v731 = vpack.c.b16 %v619, %v615
        %v732 = vpack.c.b16 %v624, %v620
        %v733 = vpack.c.b16 %v625, %v621
        %v734 = vpack.c.b16 %v626, %v622
        %v735 = vpack.c.b16 %v627, %v623
        %v736 = vpack.c.b16 %v632, %v628
        %v737 = vpack.c.b16 %v633, %v629
        %v738 = vpack.c.b16 %v634, %v630
        %v739 = vpack.c.b16 %v635, %v631
        %v740 = vpack.c.b16 %v640, %v636
        %v741 = vpack.c.b16 %v641, %v637
        %v742 = vpack.c.b16 %v642, %v638
        %v743 = vpack.c.b16 %v643, %v639
        %v744 = vpack.c.b16 %v648, %v644
        %v745 = vpack.c.b16 %v649, %v645
        %v746 = vpack.c.b16 %v650, %v646
        %v747 = vpack.c.b16 %v651, %v647
        %v748 = vpack.c.b16 %v656, %v652
        %v749 = vpack.c.b16 %v657, %v653
        %v750 = vpack.c.b16 %v658, %v654
        %v751 = vpack.c.b16 %v659, %v655
        %v752 = vpack.c.b16 %v664, %v660
        %v753 = vpack.c.b16 %v665, %v661
        %v754 = vpack.c.b16 %v666, %v662
        %v755 = vpack.c.b16 %v667, %v663
        %v756 = vpack.c.b16 %v672, %v668
        %v757 = vpack.c.b16 %v673, %v669
        %v758 = vpack.c.b16 %v674, %v670
        %v759 = vpack.c.b16 %v675, %v671
        %v760 = vpack.c.b16 %v680, %v676
        %v761 = vpack.c.b16 %v681, %v677
        %v762 = vpack.c.b16 %v682, %v678
        %v763 = vpack.c.b16 %v683, %v679
        %v764 = vpack.c.b16 %v688, %v684
        %v765 = vpack.c.b16 %v689, %v685
        %v766 = vpack.c.b16 %v690, %v686
        %v767 = vpack.c.b16 %v691, %v687
        %v768 = vpack.c.b16 %v696, %v692
        %v769 = vpack.c.b16 %v697, %v693
        %v770 = vpack.c.b16 %v698, %v694
        %v771 = vpack.c.b16 %v699, %v695
        %v772 = vpack.c.b16 %v704, %v700
        %v773 = vpack.c.b16 %v705, %v701
        %v774 = vpack.c.b16 %v706, %v702
        %v775 = vpack.c.b16 %v707, %v703
        %v776 = vpack.c.b16 %v712, %v708
        %v777 = vpack.c.b16 %v713, %v709
        %v778 = vpack.c.b16 %v714, %v710
        %v779 = vpack.c.b16 %v715, %v711
        %844 = vmatpush.bf16.msra.mxu0 %v744
        %845 = vmatpush.bf16.msra.mxu0 %v740
        %846 = vmatpush.bf16.msra.mxu0 %v736
        %847 = vmatpush.bf16.msra.mxu0 %v732
        %848 = vmatpush.bf16.msra.mxu0 %v728
        %849 = vmatpush.bf16.msra.mxu0 %v724
        %850 = vmatpush.bf16.msra.mxu0 %v720
        %851 = vmatpush.bf16.msra.mxu0 %v716
        %852 = vmatmul.bf16.gmra.mxu0 %v448
        %v853 = vpop.f32.mrf.mxu0
        %v854 = vadd.f32 %v516, %v853
        %v855 = vpop.f32.mrf.mxu0
        %856 = vdwg.mxu0
        %857 = vmatpush.bf16.msra.mxu0 %v776
        %858 = vmatpush.bf16.msra.mxu0 %v772
        %859 = vmatpush.bf16.msra.mxu0 %v768
        %860 = vmatpush.bf16.msra.mxu0 %v764
        %861 = vmatpush.bf16.msra.mxu0 %v760
        %862 = vmatpush.bf16.msra.mxu0 %v756
        %863 = vmatpush.bf16.msra.mxu0 %v752
        %864 = vmatpush.bf16.msra.mxu0 %v748
        %865 = vmatmul.bf16.gmra.mxu0 %v449
        %v866 = vpop.f32.mrf.mxu0
        %v867 = vadd.f32 %v854, %v866
        %v868 = vpop.f32.mrf.mxu0
        %869 = vdwg.mxu0
        %870 = vmatpush.bf16.msra.mxu0 %v745
        %871 = vmatpush.bf16.msra.mxu0 %v741
        %872 = vmatpush.bf16.msra.mxu0 %v737
        %873 = vmatpush.bf16.msra.mxu0 %v733
        %874 = vmatpush.bf16.msra.mxu0 %v729
        %875 = vmatpush.bf16.msra.mxu0 %v725
        %876 = vmatpush.bf16.msra.mxu0 %v721
        %877 = vmatpush.bf16.msra.mxu0 %v717
        %878 = vmatmul.bf16.gmra.mxu0 %v448
        %v879 = vpop.f32.mrf.mxu0
        %v880 = vadd.f32 %v517, %v879
        %v881 = vpop.f32.mrf.mxu0
        %882 = vdwg.mxu0
        %883 = vmatpush.bf16.msra.mxu0 %v777
        %884 = vmatpush.bf16.msra.mxu0 %v773
        %885 = vmatpush.bf16.msra.mxu0 %v769
        %886 = vmatpush.bf16.msra.mxu0 %v765
        %887 = vmatpush.bf16.msra.mxu0 %v761
        %888 = vmatpush.bf16.msra.mxu0 %v757
        %889 = vmatpush.bf16.msra.mxu0 %v753
        %890 = vmatpush.bf16.msra.mxu0 %v749
        %891 = vmatmul.bf16.gmra.mxu0 %v449
        %v892 = vpop.f32.mrf.mxu0
        %v893 = vadd.f32 %v880, %v892
        %v894 = vpop.f32.mrf.mxu0
        %895 = vdwg.mxu0
        %896 = vmatpush.bf16.msra.mxu0 %v746
        %897 = vmatpush.bf16.msra.mxu0 %v742
        %898 = vmatpush.bf16.msra.mxu0 %v738
        %899 = vmatpush.bf16.msra.mxu0 %v734
        %900 = vmatpush.bf16.msra.mxu0 %v730
        %901 = vmatpush.bf16.msra.mxu0 %v726
        %902 = vmatpush.bf16.msra.mxu0 %v722
        %903 = vmatpush.bf16.msra.mxu0 %v718
        %904 = vmatmul.bf16.gmra.mxu0 %v448
        %v905 = vpop.f32.mrf.mxu0
        %v906 = vadd.f32 %v518, %v905
        %v907 = vpop.f32.mrf.mxu0
        %908 = vdwg.mxu0
        %909 = vmatpush.bf16.msra.mxu0 %v778
        %910 = vmatpush.bf16.msra.mxu0 %v774
        %911 = vmatpush.bf16.msra.mxu0 %v770
        %912 = vmatpush.bf16.msra.mxu0 %v766
        %913 = vmatpush.bf16.msra.mxu0 %v762
        %914 = vmatpush.bf16.msra.mxu0 %v758
        %915 = vmatpush.bf16.msra.mxu0 %v754
        %916 = vmatpush.bf16.msra.mxu0 %v750
        %917 = vmatmul.bf16.gmra.mxu0 %v449
        %v918 = vpop.f32.mrf.mxu0
        %v919 = vadd.f32 %v906, %v918
        %v920 = vpop.f32.mrf.mxu0
        %921 = vdwg.mxu0
        %922 = vmatpush.bf16.msra.mxu0 %v747
        %923 = vmatpush.bf16.msra.mxu0 %v743
        %924 = vmatpush.bf16.msra.mxu0 %v739
        %925 = vmatpush.bf16.msra.mxu0 %v735
        %926 = vmatpush.bf16.msra.mxu0 %v731
        %927 = vmatpush.bf16.msra.mxu0 %v727
        %928 = vmatpush.bf16.msra.mxu0 %v723
        %929 = vmatpush.bf16.msra.mxu0 %v719
        %930 = vmatmul.bf16.gmra.mxu0 %v448
        %v931 = vpop.f32.mrf.mxu0
        %v932 = vadd.f32 %v519, %v931
        %v933 = vpop.f32.mrf.mxu0
        %934 = vdwg.mxu0
        %935 = vmatpush.bf16.msra.mxu0 %v779
        %936 = vmatpush.bf16.msra.mxu0 %v775
        %937 = vmatpush.bf16.msra.mxu0 %v771
        %938 = vmatpush.bf16.msra.mxu0 %v767
        %939 = vmatpush.bf16.msra.mxu0 %v763
        %940 = vmatpush.bf16.msra.mxu0 %v759
        %941 = vmatpush.bf16.msra.mxu0 %v755
        %942 = vmatpush.bf16.msra.mxu0 %v751
        %943 = vmatmul.bf16.gmra.mxu0 %v449
        %v944 = vpop.f32.mrf.mxu0
        %v945 = vadd.f32 %v932, %v944
        %v946 = vpop.f32.mrf.mxu0
        %947 = vdwg.mxu0
        %v948 = vmax.f32 %v867, 0.0
        %v949 = vmax.f32 %v893, 0.0
        %v950 = vmax.f32 %v919, 0.0
        %v951 = vmax.f32 %v945, 0.0
        %v952 = vpack.c.bf16 %v948, %v948
        %v953 = vpack.c.bf16 %v949, %v949
        %v954 = vpack.c.bf16 %v950, %v950
        %v955 = vpack.c.bf16 %v951, %v951
        %v956 = vld [vmem:[#allocation8] sm:$0xff]
        %v957 = vld [vmem:[#allocation8 + $0x8] sm:$0xff]
        %v958 = vld [vmem:[#allocation8 + $0x10] sm:$0xff]
        %v959 = vld [vmem:[#allocation8 + $0x18] sm:$0xff]
        %v960 = vld [vmem:[#allocation8 + $0x20] sm:$0xff]
        %v961 = vld [vmem:[#allocation8 + $0x28] sm:$0xff]
        %v962 = vld [vmem:[#allocation8 + $0x30] sm:$0xff]
        %v963 = vld [vmem:[#allocation8 + $0x38] sm:$0xff]
        %v964 = vld [vmem:[#allocation8 + $0x40] sm:$0xff]
        %v965 = vld [vmem:[#allocation8 + $0x48] sm:$0xff]
        %v966 = vld [vmem:[#allocation8 + $0x50] sm:$0xff]
        %v967 = vld [vmem:[#allocation8 + $0x58] sm:$0xff]
        %v968 = vld [vmem:[#allocation8 + $0x60] sm:$0xff]
        %v969 = vld [vmem:[#allocation8 + $0x68] sm:$0xff]
        %v970 = vld [vmem:[#allocation8 + $0x70] sm:$0xff]
        %v971 = vld [vmem:[#allocation8 + $0x78] sm:$0xff]
        %v972 = vld [vmem:[#allocation8 + $0x80] sm:$0xff]
        %v973 = vld [vmem:[#allocation8 + $0x88] sm:$0xff]
        %v974 = vld [vmem:[#allocation8 + $0x90] sm:$0xff]
        %v975 = vld [vmem:[#allocation8 + $0x98] sm:$0xff]
        %v976 = vld [vmem:[#allocation8 + $0xa0] sm:$0xff]
        %v977 = vld [vmem:[#allocation8 + $0xa8] sm:$0xff]
        %v978 = vld [vmem:[#allocation8 + $0xb0] sm:$0xff]
        %v979 = vld [vmem:[#allocation8 + $0xb8] sm:$0xff]
        %v980 = vld [vmem:[#allocation8 + $0xc0] sm:$0xff]
        %v981 = vld [vmem:[#allocation8 + $0xc8] sm:$0xff]
        %v982 = vld [vmem:[#allocation8 + $0xd0] sm:$0xff]
        %v983 = vld [vmem:[#allocation8 + $0xd8] sm:$0xff]
        %v984 = vld [vmem:[#allocation8 + $0xe0] sm:$0xff]
        %v985 = vld [vmem:[#allocation8 + $0xe8] sm:$0xff]
        %v986 = vld [vmem:[#allocation8 + $0xf0] sm:$0xff]
        %v987 = vld [vmem:[#allocation8 + $0xf8] sm:$0xff]
        %v988 = vld [vmem:[#allocation8 + $0x100] sm:$0xff]
        %v989 = vld [vmem:[#allocation8 + $0x108] sm:$0xff]
        %v990 = vld [vmem:[#allocation8 + $0x110] sm:$0xff]
        %v991 = vld [vmem:[#allocation8 + $0x118] sm:$0xff]
        %v992 = vld [vmem:[#allocation8 + $0x120] sm:$0xff]
        %v993 = vld [vmem:[#allocation8 + $0x128] sm:$0xff]
        %v994 = vld [vmem:[#allocation8 + $0x130] sm:$0xff]
        %v995 = vld [vmem:[#allocation8 + $0x138] sm:$0xff]
        %v996 = vld [vmem:[#allocation8 + $0x140] sm:$0xff]
        %v997 = vld [vmem:[#allocation8 + $0x148] sm:$0xff]
        %v998 = vld [vmem:[#allocation8 + $0x150] sm:$0xff]
        %v999 = vld [vmem:[#allocation8 + $0x158] sm:$0xff]
        %v1000 = vld [vmem:[#allocation8 + $0x160] sm:$0xff]
        %v1001 = vld [vmem:[#allocation8 + $0x168] sm:$0xff]
        %v1002 = vld [vmem:[#allocation8 + $0x170] sm:$0xff]
        %v1003 = vld [vmem:[#allocation8 + $0x178] sm:$0xff]
        %v1004 = vld [vmem:[#allocation8 + $0x180] sm:$0xff]
        %v1005 = vld [vmem:[#allocation8 + $0x188] sm:$0xff]
        %v1006 = vld [vmem:[#allocation8 + $0x190] sm:$0xff]
        %v1007 = vld [vmem:[#allocation8 + $0x198] sm:$0xff]
        %v1008 = vld [vmem:[#allocation8 + $0x1a0] sm:$0xff]
        %v1009 = vld [vmem:[#allocation8 + $0x1a8] sm:$0xff]
        %v1010 = vld [vmem:[#allocation8 + $0x1b0] sm:$0xff]
        %v1011 = vld [vmem:[#allocation8 + $0x1b8] sm:$0xff]
        %v1012 = vld [vmem:[#allocation8 + $0x1c0] sm:$0xff]
        %v1013 = vld [vmem:[#allocation8 + $0x1c8] sm:$0xff]
        %v1014 = vld [vmem:[#allocation8 + $0x1d0] sm:$0xff]
        %v1015 = vld [vmem:[#allocation8 + $0x1d8] sm:$0xff]
        %v1016 = vld [vmem:[#allocation8 + $0x1e0] sm:$0xff]
        %v1017 = vld [vmem:[#allocation8 + $0x1e8] sm:$0xff]
        %v1018 = vld [vmem:[#allocation8 + $0x1f0] sm:$0xff]
        %v1019 = vld [vmem:[#allocation8 + $0x1f8] sm:$0xff]
        %v1020 = vld [vmem:[#allocation8 + $0x200] sm:$0xff]
        %v1021 = vld [vmem:[#allocation8 + $0x208] sm:$0xff]
        %v1022 = vld [vmem:[#allocation8 + $0x210] sm:$0xff]
        %v1023 = vld [vmem:[#allocation8 + $0x218] sm:$0xff]
        %v1024 = vld [vmem:[#allocation8 + $0x220] sm:$0xff]
        %v1025 = vld [vmem:[#allocation8 + $0x228] sm:$0xff]
        %v1026 = vld [vmem:[#allocation8 + $0x230] sm:$0xff]
        %v1027 = vld [vmem:[#allocation8 + $0x238] sm:$0xff]
        %v1028 = vld [vmem:[#allocation8 + $0x240] sm:$0xff]
        %v1029 = vld [vmem:[#allocation8 + $0x248] sm:$0xff]
        %v1030 = vld [vmem:[#allocation8 + $0x250] sm:$0xff]
        %v1031 = vld [vmem:[#allocation8 + $0x258] sm:$0xff]
        %v1032 = vld [vmem:[#allocation8 + $0x260] sm:$0xff]
        %v1033 = vld [vmem:[#allocation8 + $0x268] sm:$0xff]
        %v1034 = vld [vmem:[#allocation8 + $0x270] sm:$0xff]
        %v1035 = vld [vmem:[#allocation8 + $0x278] sm:$0xff]
        %v1036 = vld [vmem:[#allocation8 + $0x280] sm:$0xff]
        %v1037 = vld [vmem:[#allocation8 + $0x288] sm:$0xff]
        %v1038 = vld [vmem:[#allocation8 + $0x290] sm:$0xff]
        %v1039 = vld [vmem:[#allocation8 + $0x298] sm:$0xff]
        %v1040 = vld [vmem:[#allocation8 + $0x2a0] sm:$0xff]
        %v1041 = vld [vmem:[#allocation8 + $0x2a8] sm:$0xff]
        %v1042 = vld [vmem:[#allocation8 + $0x2b0] sm:$0xff]
        %v1043 = vld [vmem:[#allocation8 + $0x2b8] sm:$0xff]
        %v1044 = vld [vmem:[#allocation8 + $0x2c0] sm:$0xff]
        %v1045 = vld [vmem:[#allocation8 + $0x2c8] sm:$0xff]
        %v1046 = vld [vmem:[#allocation8 + $0x2d0] sm:$0xff]
        %v1047 = vld [vmem:[#allocation8 + $0x2d8] sm:$0xff]
        %v1048 = vld [vmem:[#allocation8 + $0x2e0] sm:$0xff]
        %v1049 = vld [vmem:[#allocation8 + $0x2e8] sm:$0xff]
        %v1050 = vld [vmem:[#allocation8 + $0x2f0] sm:$0xff]
        %v1051 = vld [vmem:[#allocation8 + $0x2f8] sm:$0xff]
        %v1052 = vld [vmem:[#allocation8 + $0x300] sm:$0xff]
        %v1053 = vld [vmem:[#allocation8 + $0x308] sm:$0xff]
        %v1054 = vld [vmem:[#allocation8 + $0x310] sm:$0xff]
        %v1055 = vld [vmem:[#allocation8 + $0x318] sm:$0xff]
        %v1056 = vld [vmem:[#allocation8 + $0x320] sm:$0xff]
        %v1057 = vld [vmem:[#allocation8 + $0x328] sm:$0xff]
        %v1058 = vld [vmem:[#allocation8 + $0x330] sm:$0xff]
        %v1059 = vld [vmem:[#allocation8 + $0x338] sm:$0xff]
        %v1060 = vld [vmem:[#allocation8 + $0x340] sm:$0xff]
        %v1061 = vld [vmem:[#allocation8 + $0x348] sm:$0xff]
        %v1062 = vld [vmem:[#allocation8 + $0x350] sm:$0xff]
        %v1063 = vld [vmem:[#allocation8 + $0x358] sm:$0xff]
        %v1064 = vld [vmem:[#allocation8 + $0x360] sm:$0xff]
        %v1065 = vld [vmem:[#allocation8 + $0x368] sm:$0xff]
        %v1066 = vld [vmem:[#allocation8 + $0x370] sm:$0xff]
        %v1067 = vld [vmem:[#allocation8 + $0x378] sm:$0xff]
        %v1068 = vld [vmem:[#allocation8 + $0x380] sm:$0xff]
        %v1069 = vld [vmem:[#allocation8 + $0x388] sm:$0xff]
        %v1070 = vld [vmem:[#allocation8 + $0x390] sm:$0xff]
        %v1071 = vld [vmem:[#allocation8 + $0x398] sm:$0xff]
        %v1072 = vld [vmem:[#allocation8 + $0x3a0] sm:$0xff]
        %v1073 = vld [vmem:[#allocation8 + $0x3a8] sm:$0xff]
        %v1074 = vld [vmem:[#allocation8 + $0x3b0] sm:$0xff]
        %v1075 = vld [vmem:[#allocation8 + $0x3b8] sm:$0xff]
        %v1076 = vld [vmem:[#allocation8 + $0x3c0] sm:$0xff]
        %v1077 = vld [vmem:[#allocation8 + $0x3c8] sm:$0xff]
        %v1078 = vld [vmem:[#allocation8 + $0x3d0] sm:$0xff]
        %v1079 = vld [vmem:[#allocation8 + $0x3d8] sm:$0xff]
        %v1080 = vld [vmem:[#allocation8 + $0x3e0] sm:$0xff]
        %v1081 = vld [vmem:[#allocation8 + $0x3e8] sm:$0xff]
        %v1082 = vld [vmem:[#allocation8 + $0x3f0] sm:$0xff]
        %v1083 = vld [vmem:[#allocation8 + $0x3f8] sm:$0xff]
        %v1084 = vld [vmem:[#allocation10] sm:$0xf]
        %v1086 = vperm.slane %v1084, 0
        %v1087 = vperm.slane %v1084, 1
        %v1088 = vperm.slane %v1084, 2
        %v1089 = vperm.slane %v1084, 3
        %v1222 = vunpack.c.l.b16 %v956
        %v1223 = vunpack.c.h.b16 %v956
        %v1224 = vunpack.c.l.b16 %v957
        %v1225 = vunpack.c.h.b16 %v957
        %v1226 = vunpack.c.l.b16 %v958
        %v1227 = vunpack.c.h.b16 %v958
        %v1228 = vunpack.c.l.b16 %v959
        %v1229 = vunpack.c.h.b16 %v959
        %v1230 = vunpack.c.l.b16 %v960
        %v1231 = vunpack.c.h.b16 %v960
        %v1232 = vunpack.c.l.b16 %v961
        %v1233 = vunpack.c.h.b16 %v961
        %v1234 = vunpack.c.l.b16 %v962
        %v1235 = vunpack.c.h.b16 %v962
        %v1236 = vunpack.c.l.b16 %v963
        %v1237 = vunpack.c.h.b16 %v963
        %v1238 = vunpack.c.l.b16 %v964
        %v1239 = vunpack.c.h.b16 %v964
        %v1240 = vunpack.c.l.b16 %v965
        %v1241 = vunpack.c.h.b16 %v965
        %v1242 = vunpack.c.l.b16 %v966
        %v1243 = vunpack.c.h.b16 %v966
        %v1244 = vunpack.c.l.b16 %v967
        %v1245 = vunpack.c.h.b16 %v967
        %v1246 = vunpack.c.l.b16 %v968
        %v1247 = vunpack.c.h.b16 %v968
        %v1248 = vunpack.c.l.b16 %v969
        %v1249 = vunpack.c.h.b16 %v969
        %v1250 = vunpack.c.l.b16 %v970
        %v1251 = vunpack.c.h.b16 %v970
        %v1252 = vunpack.c.l.b16 %v971
        %v1253 = vunpack.c.h.b16 %v971
        %v1254 = vunpack.c.l.b16 %v972
        %v1255 = vunpack.c.h.b16 %v972
        %v1256 = vunpack.c.l.b16 %v973
        %v1257 = vunpack.c.h.b16 %v973
        %v1258 = vunpack.c.l.b16 %v974
        %v1259 = vunpack.c.h.b16 %v974
        %v1260 = vunpack.c.l.b16 %v975
        %v1261 = vunpack.c.h.b16 %v975
        %v1262 = vunpack.c.l.b16 %v976
        %v1263 = vunpack.c.h.b16 %v976
        %v1264 = vunpack.c.l.b16 %v977
        %v1265 = vunpack.c.h.b16 %v977
        %v1266 = vunpack.c.l.b16 %v978
        %v1267 = vunpack.c.h.b16 %v978
        %v1268 = vunpack.c.l.b16 %v979
        %v1269 = vunpack.c.h.b16 %v979
        %v1270 = vunpack.c.l.b16 %v980
        %v1271 = vunpack.c.h.b16 %v980
        %v1272 = vunpack.c.l.b16 %v981
        %v1273 = vunpack.c.h.b16 %v981
        %v1274 = vunpack.c.l.b16 %v982
        %v1275 = vunpack.c.h.b16 %v982
        %v1276 = vunpack.c.l.b16 %v983
        %v1277 = vunpack.c.h.b16 %v983
        %v1278 = vunpack.c.l.b16 %v984
        %v1279 = vunpack.c.h.b16 %v984
        %v1280 = vunpack.c.l.b16 %v985
        %v1281 = vunpack.c.h.b16 %v985
        %v1282 = vunpack.c.l.b16 %v986
        %v1283 = vunpack.c.h.b16 %v986
        %v1284 = vunpack.c.l.b16 %v987
        %v1285 = vunpack.c.h.b16 %v987
        %v1286 = vunpack.c.l.b16 %v988
        %v1287 = vunpack.c.h.b16 %v988
        %v1288 = vunpack.c.l.b16 %v989
        %v1289 = vunpack.c.h.b16 %v989
        %v1290 = vunpack.c.l.b16 %v990
        %v1291 = vunpack.c.h.b16 %v990
        %v1292 = vunpack.c.l.b16 %v991
        %v1293 = vunpack.c.h.b16 %v991
        %v1294 = vunpack.c.l.b16 %v992
        %v1295 = vunpack.c.h.b16 %v992
        %v1296 = vunpack.c.l.b16 %v993
        %v1297 = vunpack.c.h.b16 %v993
        %v1298 = vunpack.c.l.b16 %v994
        %v1299 = vunpack.c.h.b16 %v994
        %v1300 = vunpack.c.l.b16 %v995
        %v1301 = vunpack.c.h.b16 %v995
        %v1302 = vunpack.c.l.b16 %v996
        %v1303 = vunpack.c.h.b16 %v996
        %v1304 = vunpack.c.l.b16 %v997
        %v1305 = vunpack.c.h.b16 %v997
        %v1306 = vunpack.c.l.b16 %v998
        %v1307 = vunpack.c.h.b16 %v998
        %v1308 = vunpack.c.l.b16 %v999
        %v1309 = vunpack.c.h.b16 %v999
        %v1310 = vunpack.c.l.b16 %v1000
        %v1311 = vunpack.c.h.b16 %v1000
        %v1312 = vunpack.c.l.b16 %v1001
        %v1313 = vunpack.c.h.b16 %v1001
        %v1314 = vunpack.c.l.b16 %v1002
        %v1315 = vunpack.c.h.b16 %v1002
        %v1316 = vunpack.c.l.b16 %v1003
        %v1317 = vunpack.c.h.b16 %v1003
        %v1318 = vunpack.c.l.b16 %v1004
        %v1319 = vunpack.c.h.b16 %v1004
        %v1320 = vunpack.c.l.b16 %v1005
        %v1321 = vunpack.c.h.b16 %v1005
        %v1322 = vunpack.c.l.b16 %v1006
        %v1323 = vunpack.c.h.b16 %v1006
        %v1324 = vunpack.c.l.b16 %v1007
        %v1325 = vunpack.c.h.b16 %v1007
        %v1326 = vunpack.c.l.b16 %v1008
        %v1327 = vunpack.c.h.b16 %v1008
        %v1328 = vunpack.c.l.b16 %v1009
        %v1329 = vunpack.c.h.b16 %v1009
        %v1330 = vunpack.c.l.b16 %v1010
        %v1331 = vunpack.c.h.b16 %v1010
        %v1332 = vunpack.c.l.b16 %v1011
        %v1333 = vunpack.c.h.b16 %v1011
        %v1334 = vunpack.c.l.b16 %v1012
        %v1335 = vunpack.c.h.b16 %v1012
        %v1336 = vunpack.c.l.b16 %v1013
        %v1337 = vunpack.c.h.b16 %v1013
        %v1338 = vunpack.c.l.b16 %v1014
        %v1339 = vunpack.c.h.b16 %v1014
        %v1340 = vunpack.c.l.b16 %v1015
        %v1341 = vunpack.c.h.b16 %v1015
        %v1342 = vunpack.c.l.b16 %v1016
        %v1343 = vunpack.c.h.b16 %v1016
        %v1344 = vunpack.c.l.b16 %v1017
        %v1345 = vunpack.c.h.b16 %v1017
        %v1346 = vunpack.c.l.b16 %v1018
        %v1347 = vunpack.c.h.b16 %v1018
        %v1348 = vunpack.c.l.b16 %v1019
        %v1349 = vunpack.c.h.b16 %v1019
        %v1350 = vunpack.c.l.b16 %v1020
        %v1351 = vunpack.c.h.b16 %v1020
        %v1352 = vunpack.c.l.b16 %v1021
        %v1353 = vunpack.c.h.b16 %v1021
        %v1354 = vunpack.c.l.b16 %v1022
        %v1355 = vunpack.c.h.b16 %v1022
        %v1356 = vunpack.c.l.b16 %v1023
        %v1357 = vunpack.c.h.b16 %v1023
        %v1358 = vunpack.c.l.b16 %v1024
        %v1359 = vunpack.c.h.b16 %v1024
        %v1360 = vunpack.c.l.b16 %v1025
        %v1361 = vunpack.c.h.b16 %v1025
        %v1362 = vunpack.c.l.b16 %v1026
        %v1363 = vunpack.c.h.b16 %v1026
        %v1364 = vunpack.c.l.b16 %v1027
        %v1365 = vunpack.c.h.b16 %v1027
        %v1366 = vunpack.c.l.b16 %v1028
        %v1367 = vunpack.c.h.b16 %v1028
        %v1368 = vunpack.c.l.b16 %v1029
        %v1369 = vunpack.c.h.b16 %v1029
        %v1370 = vunpack.c.l.b16 %v1030
        %v1371 = vunpack.c.h.b16 %v1030
        %v1372 = vunpack.c.l.b16 %v1031
        %v1373 = vunpack.c.h.b16 %v1031
        %v1374 = vunpack.c.l.b16 %v1032
        %v1375 = vunpack.c.h.b16 %v1032
        %v1376 = vunpack.c.l.b16 %v1033
        %v1377 = vunpack.c.h.b16 %v1033
        %v1378 = vunpack.c.l.b16 %v1034
        %v1379 = vunpack.c.h.b16 %v1034
        %v1380 = vunpack.c.l.b16 %v1035
        %v1381 = vunpack.c.h.b16 %v1035
        %v1382 = vunpack.c.l.b16 %v1036
        %v1383 = vunpack.c.h.b16 %v1036
        %v1384 = vunpack.c.l.b16 %v1037
        %v1385 = vunpack.c.h.b16 %v1037
        %v1386 = vunpack.c.l.b16 %v1038
        %v1387 = vunpack.c.h.b16 %v1038
        %v1388 = vunpack.c.l.b16 %v1039
        %v1389 = vunpack.c.h.b16 %v1039
        %v1390 = vunpack.c.l.b16 %v1040
        %v1391 = vunpack.c.h.b16 %v1040
        %v1392 = vunpack.c.l.b16 %v1041
        %v1393 = vunpack.c.h.b16 %v1041
        %v1394 = vunpack.c.l.b16 %v1042
        %v1395 = vunpack.c.h.b16 %v1042
        %v1396 = vunpack.c.l.b16 %v1043
        %v1397 = vunpack.c.h.b16 %v1043
        %v1398 = vunpack.c.l.b16 %v1044
        %v1399 = vunpack.c.h.b16 %v1044
        %v1400 = vunpack.c.l.b16 %v1045
        %v1401 = vunpack.c.h.b16 %v1045
        %v1402 = vunpack.c.l.b16 %v1046
        %v1403 = vunpack.c.h.b16 %v1046
        %v1404 = vunpack.c.l.b16 %v1047
        %v1405 = vunpack.c.h.b16 %v1047
        %v1406 = vunpack.c.l.b16 %v1048
        %v1407 = vunpack.c.h.b16 %v1048
        %v1408 = vunpack.c.l.b16 %v1049
        %v1409 = vunpack.c.h.b16 %v1049
        %v1410 = vunpack.c.l.b16 %v1050
        %v1411 = vunpack.c.h.b16 %v1050
        %v1412 = vunpack.c.l.b16 %v1051
        %v1413 = vunpack.c.h.b16 %v1051
        %v1414 = vunpack.c.l.b16 %v1052
        %v1415 = vunpack.c.h.b16 %v1052
        %v1416 = vunpack.c.l.b16 %v1053
        %v1417 = vunpack.c.h.b16 %v1053
        %v1418 = vunpack.c.l.b16 %v1054
        %v1419 = vunpack.c.h.b16 %v1054
        %v1420 = vunpack.c.l.b16 %v1055
        %v1421 = vunpack.c.h.b16 %v1055
        %v1422 = vunpack.c.l.b16 %v1056
        %v1423 = vunpack.c.h.b16 %v1056
        %v1424 = vunpack.c.l.b16 %v1057
        %v1425 = vunpack.c.h.b16 %v1057
        %v1426 = vunpack.c.l.b16 %v1058
        %v1427 = vunpack.c.h.b16 %v1058
        %v1428 = vunpack.c.l.b16 %v1059
        %v1429 = vunpack.c.h.b16 %v1059
        %v1430 = vunpack.c.l.b16 %v1060
        %v1431 = vunpack.c.h.b16 %v1060
        %v1432 = vunpack.c.l.b16 %v1061
        %v1433 = vunpack.c.h.b16 %v1061
        %v1434 = vunpack.c.l.b16 %v1062
        %v1435 = vunpack.c.h.b16 %v1062
        %v1436 = vunpack.c.l.b16 %v1063
        %v1437 = vunpack.c.h.b16 %v1063
        %v1438 = vunpack.c.l.b16 %v1064
        %v1439 = vunpack.c.h.b16 %v1064
        %v1440 = vunpack.c.l.b16 %v1065
        %v1441 = vunpack.c.h.b16 %v1065
        %v1442 = vunpack.c.l.b16 %v1066
        %v1443 = vunpack.c.h.b16 %v1066
        %v1444 = vunpack.c.l.b16 %v1067
        %v1445 = vunpack.c.h.b16 %v1067
        %v1446 = vunpack.c.l.b16 %v1068
        %v1447 = vunpack.c.h.b16 %v1068
        %v1448 = vunpack.c.l.b16 %v1069
        %v1449 = vunpack.c.h.b16 %v1069
        %v1450 = vunpack.c.l.b16 %v1070
        %v1451 = vunpack.c.h.b16 %v1070
        %v1452 = vunpack.c.l.b16 %v1071
        %v1453 = vunpack.c.h.b16 %v1071
        %v1454 = vunpack.c.l.b16 %v1072
        %v1455 = vunpack.c.h.b16 %v1072
        %v1456 = vunpack.c.l.b16 %v1073
        %v1457 = vunpack.c.h.b16 %v1073
        %v1458 = vunpack.c.l.b16 %v1074
        %v1459 = vunpack.c.h.b16 %v1074
        %v1460 = vunpack.c.l.b16 %v1075
        %v1461 = vunpack.c.h.b16 %v1075
        %v1462 = vunpack.c.l.b16 %v1076
        %v1463 = vunpack.c.h.b16 %v1076
        %v1464 = vunpack.c.l.b16 %v1077
        %v1465 = vunpack.c.h.b16 %v1077
        %v1466 = vunpack.c.l.b16 %v1078
        %v1467 = vunpack.c.h.b16 %v1078
        %v1468 = vunpack.c.l.b16 %v1079
        %v1469 = vunpack.c.h.b16 %v1079
        %v1470 = vunpack.c.l.b16 %v1080
        %v1471 = vunpack.c.h.b16 %v1080
        %v1472 = vunpack.c.l.b16 %v1081
        %v1473 = vunpack.c.h.b16 %v1081
        %v1474 = vunpack.c.l.b16 %v1082
        %v1475 = vunpack.c.h.b16 %v1082
        %v1476 = vunpack.c.l.b16 %v1083
        %v1477 = vunpack.c.h.b16 %v1083
        %v1478 = vpack.c.b16 %v1226, %v1222
        %v1479 = vpack.c.b16 %v1227, %v1223
        %v1480 = vpack.c.b16 %v1228, %v1224
        %v1481 = vpack.c.b16 %v1229, %v1225
        %v1482 = vpack.c.b16 %v1234, %v1230
        %v1483 = vpack.c.b16 %v1235, %v1231
        %v1484 = vpack.c.b16 %v1236, %v1232
        %v1485 = vpack.c.b16 %v1237, %v1233
        %v1486 = vpack.c.b16 %v1242, %v1238
        %v1487 = vpack.c.b16 %v1243, %v1239
        %v1488 = vpack.c.b16 %v1244, %v1240
        %v1489 = vpack.c.b16 %v1245, %v1241
        %v1490 = vpack.c.b16 %v1250, %v1246
        %v1491 = vpack.c.b16 %v1251, %v1247
        %v1492 = vpack.c.b16 %v1252, %v1248
        %v1493 = vpack.c.b16 %v1253, %v1249
        %v1494 = vpack.c.b16 %v1258, %v1254
        %v1495 = vpack.c.b16 %v1259, %v1255
        %v1496 = vpack.c.b16 %v1260, %v1256
        %v1497 = vpack.c.b16 %v1261, %v1257
        %v1498 = vpack.c.b16 %v1266, %v1262
        %v1499 = vpack.c.b16 %v1267, %v1263
        %v1500 = vpack.c.b16 %v1268, %v1264
        %v1501 = vpack.c.b16 %v1269, %v1265
        %v1502 = vpack.c.b16 %v1274, %v1270
        %v1503 = vpack.c.b16 %v1275, %v1271
        %v1504 = vpack.c.b16 %v1276, %v1272
        %v1505 = vpack.c.b16 %v1277, %v1273
        %v1506 = vpack.c.b16 %v1282, %v1278
        %v1507 = vpack.c.b16 %v1283, %v1279
        %v1508 = vpack.c.b16 %v1284, %v1280
        %v1509 = vpack.c.b16 %v1285, %v1281
        %v1510 = vpack.c.b16 %v1290, %v1286
        %v1511 = vpack.c.b16 %v1291, %v1287
        %v1512 = vpack.c.b16 %v1292, %v1288
        %v1513 = vpack.c.b16 %v1293, %v1289
        %v1514 = vpack.c.b16 %v1298, %v1294
        %v1515 = vpack.c.b16 %v1299, %v1295
        %v1516 = vpack.c.b16 %v1300, %v1296
        %v1517 = vpack.c.b16 %v1301, %v1297
        %v1518 = vpack.c.b16 %v1306, %v1302
        %v1519 = vpack.c.b16 %v1307, %v1303
        %v1520 = vpack.c.b16 %v1308, %v1304
        %v1521 = vpack.c.b16 %v1309, %v1305
        %v1522 = vpack.c.b16 %v1314, %v1310
        %v1523 = vpack.c.b16 %v1315, %v1311
        %v1524 = vpack.c.b16 %v1316, %v1312
        %v1525 = vpack.c.b16 %v1317, %v1313
        %v1526 = vpack.c.b16 %v1322, %v1318
        %v1527 = vpack.c.b16 %v1323, %v1319
        %v1528 = vpack.c.b16 %v1324, %v1320
        %v1529 = vpack.c.b16 %v1325, %v1321
        %v1530 = vpack.c.b16 %v1330, %v1326
        %v1531 = vpack.c.b16 %v1331, %v1327
        %v1532 = vpack.c.b16 %v1332, %v1328
        %v1533 = vpack.c.b16 %v1333, %v1329
        %v1534 = vpack.c.b16 %v1338, %v1334
        %v1535 = vpack.c.b16 %v1339, %v1335
        %v1536 = vpack.c.b16 %v1340, %v1336
        %v1537 = vpack.c.b16 %v1341, %v1337
        %v1538 = vpack.c.b16 %v1346, %v1342
        %v1539 = vpack.c.b16 %v1347, %v1343
        %v1540 = vpack.c.b16 %v1348, %v1344
        %v1541 = vpack.c.b16 %v1349, %v1345
        %v1542 = vpack.c.b16 %v1354, %v1350
        %v1543 = vpack.c.b16 %v1355, %v1351
        %v1544 = vpack.c.b16 %v1356, %v1352
        %v1545 = vpack.c.b16 %v1357, %v1353
        %v1546 = vpack.c.b16 %v1362, %v1358
        %v1547 = vpack.c.b16 %v1363, %v1359
        %v1548 = vpack.c.b16 %v1364, %v1360
        %v1549 = vpack.c.b16 %v1365, %v1361
        %v1550 = vpack.c.b16 %v1370, %v1366
        %v1551 = vpack.c.b16 %v1371, %v1367
        %v1552 = vpack.c.b16 %v1372, %v1368
        %v1553 = vpack.c.b16 %v1373, %v1369
        %v1554 = vpack.c.b16 %v1378, %v1374
        %v1555 = vpack.c.b16 %v1379, %v1375
        %v1556 = vpack.c.b16 %v1380, %v1376
        %v1557 = vpack.c.b16 %v1381, %v1377
        %v1558 = vpack.c.b16 %v1386, %v1382
        %v1559 = vpack.c.b16 %v1387, %v1383
        %v1560 = vpack.c.b16 %v1388, %v1384
        %v1561 = vpack.c.b16 %v1389, %v1385
        %v1562 = vpack.c.b16 %v1394, %v1390
        %v1563 = vpack.c.b16 %v1395, %v1391
        %v1564 = vpack.c.b16 %v1396, %v1392
        %v1565 = vpack.c.b16 %v1397, %v1393
        %v1566 = vpack.c.b16 %v1402, %v1398
        %v1567 = vpack.c.b16 %v1403, %v1399
        %v1568 = vpack.c.b16 %v1404, %v1400
        %v1569 = vpack.c.b16 %v1405, %v1401
        %v1570 = vpack.c.b16 %v1410, %v1406
        %v1571 = vpack.c.b16 %v1411, %v1407
        %v1572 = vpack.c.b16 %v1412, %v1408
        %v1573 = vpack.c.b16 %v1413, %v1409
        %v1574 = vpack.c.b16 %v1418, %v1414
        %v1575 = vpack.c.b16 %v1419, %v1415
        %v1576 = vpack.c.b16 %v1420, %v1416
        %v1577 = vpack.c.b16 %v1421, %v1417
        %v1578 = vpack.c.b16 %v1426, %v1422
        %v1579 = vpack.c.b16 %v1427, %v1423
        %v1580 = vpack.c.b16 %v1428, %v1424
        %v1581 = vpack.c.b16 %v1429, %v1425
        %v1582 = vpack.c.b16 %v1434, %v1430
        %v1583 = vpack.c.b16 %v1435, %v1431
        %v1584 = vpack.c.b16 %v1436, %v1432
        %v1585 = vpack.c.b16 %v1437, %v1433
        %v1586 = vpack.c.b16 %v1442, %v1438
        %v1587 = vpack.c.b16 %v1443, %v1439
        %v1588 = vpack.c.b16 %v1444, %v1440
        %v1589 = vpack.c.b16 %v1445, %v1441
        %v1590 = vpack.c.b16 %v1450, %v1446
        %v1591 = vpack.c.b16 %v1451, %v1447
        %v1592 = vpack.c.b16 %v1452, %v1448
        %v1593 = vpack.c.b16 %v1453, %v1449
        %v1594 = vpack.c.b16 %v1458, %v1454
        %v1595 = vpack.c.b16 %v1459, %v1455
        %v1596 = vpack.c.b16 %v1460, %v1456
        %v1597 = vpack.c.b16 %v1461, %v1457
        %v1598 = vpack.c.b16 %v1466, %v1462
        %v1599 = vpack.c.b16 %v1467, %v1463
        %v1600 = vpack.c.b16 %v1468, %v1464
        %v1601 = vpack.c.b16 %v1469, %v1465
        %v1602 = vpack.c.b16 %v1474, %v1470
        %v1603 = vpack.c.b16 %v1475, %v1471
        %v1604 = vpack.c.b16 %v1476, %v1472
        %v1605 = vpack.c.b16 %v1477, %v1473
        %1734 = vmatpush.bf16.msra.mxu0 %v1506
        %1735 = vmatpush.bf16.msra.mxu0 %v1502
        %1736 = vmatpush.bf16.msra.mxu0 %v1498
        %1737 = vmatpush.bf16.msra.mxu0 %v1494
        %1738 = vmatpush.bf16.msra.mxu0 %v1490
        %1739 = vmatpush.bf16.msra.mxu0 %v1486
        %1740 = vmatpush.bf16.msra.mxu0 %v1482
        %1741 = vmatpush.bf16.msra.mxu0 %v1478
        %1742 = vmatmul.bf16.gmra.mxu0 %v952
        %v1743 = vpop.f32.mrf.mxu0
        %v1744 = vadd.f32 %v1086, %v1743
        %v1745 = vpop.f32.mrf.mxu0
        %1746 = vdwg.mxu0
        %1747 = vmatpush.bf16.msra.mxu0 %v1538
        %1748 = vmatpush.bf16.msra.mxu0 %v1534
        %1749 = vmatpush.bf16.msra.mxu0 %v1530
        %1750 = vmatpush.bf16.msra.mxu0 %v1526
        %1751 = vmatpush.bf16.msra.mxu0 %v1522
        %1752 = vmatpush.bf16.msra.mxu0 %v1518
        %1753 = vmatpush.bf16.msra.mxu0 %v1514
        %1754 = vmatpush.bf16.msra.mxu0 %v1510
        %1755 = vmatmul.bf16.gmra.mxu0 %v953
        %v1756 = vpop.f32.mrf.mxu0
        %v1757 = vadd.f32 %v1744, %v1756
        %v1758 = vpop.f32.mrf.mxu0
        %1759 = vdwg.mxu0
        %1760 = vmatpush.bf16.msra.mxu0 %v1570
        %1761 = vmatpush.bf16.msra.mxu0 %v1566
        %1762 = vmatpush.bf16.msra.mxu0 %v1562
        %1763 = vmatpush.bf16.msra.mxu0 %v1558
        %1764 = vmatpush.bf16.msra.mxu0 %v1554
        %1765 = vmatpush.bf16.msra.mxu0 %v1550
        %1766 = vmatpush.bf16.msra.mxu0 %v1546
        %1767 = vmatpush.bf16.msra.mxu0 %v1542
        %1768 = vmatmul.bf16.gmra.mxu0 %v954
        %v1769 = vpop.f32.mrf.mxu0
        %v1770 = vadd.f32 %v1757, %v1769
        %v1771 = vpop.f32.mrf.mxu0
        %1772 = vdwg.mxu0
        %1773 = vmatpush.bf16.msra.mxu0 %v1602
        %1774 = vmatpush.bf16.msra.mxu0 %v1598
        %1775 = vmatpush.bf16.msra.mxu0 %v1594
        %1776 = vmatpush.bf16.msra.mxu0 %v1590
        %1777 = vmatpush.bf16.msra.mxu0 %v1586
        %1778 = vmatpush.bf16.msra.mxu0 %v1582
        %1779 = vmatpush.bf16.msra.mxu0 %v1578
        %1780 = vmatpush.bf16.msra.mxu0 %v1574
        %1781 = vmatmul.bf16.gmra.mxu0 %v955
        %v1782 = vpop.f32.mrf.mxu0
        %v1783 = vadd.f32 %v1770, %v1782
        %v1784 = vpop.f32.mrf.mxu0
        %1785 = vdwg.mxu0
        %1786 = vmatpush.bf16.msra.mxu0 %v1507
        %1787 = vmatpush.bf16.msra.mxu0 %v1503
        %1788 = vmatpush.bf16.msra.mxu0 %v1499
        %1789 = vmatpush.bf16.msra.mxu0 %v1495
        %1790 = vmatpush.bf16.msra.mxu0 %v1491
        %1791 = vmatpush.bf16.msra.mxu0 %v1487
        %1792 = vmatpush.bf16.msra.mxu0 %v1483
        %1793 = vmatpush.bf16.msra.mxu0 %v1479
        %1794 = vmatmul.bf16.gmra.mxu0 %v952
        %v1795 = vpop.f32.mrf.mxu0
        %v1796 = vadd.f32 %v1087, %v1795
        %v1797 = vpop.f32.mrf.mxu0
        %1798 = vdwg.mxu0
        %1799 = vmatpush.bf16.msra.mxu0 %v1539
        %1800 = vmatpush.bf16.msra.mxu0 %v1535
        %1801 = vmatpush.bf16.msra.mxu0 %v1531
        %1802 = vmatpush.bf16.msra.mxu0 %v1527
        %1803 = vmatpush.bf16.msra.mxu0 %v1523
        %1804 = vmatpush.bf16.msra.mxu0 %v1519
        %1805 = vmatpush.bf16.msra.mxu0 %v1515
        %1806 = vmatpush.bf16.msra.mxu0 %v1511
        %1807 = vmatmul.bf16.gmra.mxu0 %v953
        %v1808 = vpop.f32.mrf.mxu0
        %v1809 = vadd.f32 %v1796, %v1808
        %v1810 = vpop.f32.mrf.mxu0
        %1811 = vdwg.mxu0
        %1812 = vmatpush.bf16.msra.mxu0 %v1571
        %1813 = vmatpush.bf16.msra.mxu0 %v1567
        %1814 = vmatpush.bf16.msra.mxu0 %v1563
        %1815 = vmatpush.bf16.msra.mxu0 %v1559
        %1816 = vmatpush.bf16.msra.mxu0 %v1555
        %1817 = vmatpush.bf16.msra.mxu0 %v1551
        %1818 = vmatpush.bf16.msra.mxu0 %v1547
        %1819 = vmatpush.bf16.msra.mxu0 %v1543
        %1820 = vmatmul.bf16.gmra.mxu0 %v954
        %v1821 = vpop.f32.mrf.mxu0
        %v1822 = vadd.f32 %v1809, %v1821
        %v1823 = vpop.f32.mrf.mxu0
        %1824 = vdwg.mxu0
        %1825 = vmatpush.bf16.msra.mxu0 %v1603
        %1826 = vmatpush.bf16.msra.mxu0 %v1599
        %1827 = vmatpush.bf16.msra.mxu0 %v1595
        %1828 = vmatpush.bf16.msra.mxu0 %v1591
        %1829 = vmatpush.bf16.msra.mxu0 %v1587
        %1830 = vmatpush.bf16.msra.mxu0 %v1583
        %1831 = vmatpush.bf16.msra.mxu0 %v1579
        %1832 = vmatpush.bf16.msra.mxu0 %v1575
        %1833 = vmatmul.bf16.gmra.mxu0 %v955
        %v1834 = vpop.f32.mrf.mxu0
        %v1835 = vadd.f32 %v1822, %v1834
        %v1836 = vpop.f32.mrf.mxu0
        %1837 = vdwg.mxu0
        %1838 = vmatpush.bf16.msra.mxu0 %v1508
        %1839 = vmatpush.bf16.msra.mxu0 %v1504
        %1840 = vmatpush.bf16.msra.mxu0 %v1500
        %1841 = vmatpush.bf16.msra.mxu0 %v1496
        %1842 = vmatpush.bf16.msra.mxu0 %v1492
        %1843 = vmatpush.bf16.msra.mxu0 %v1488
        %1844 = vmatpush.bf16.msra.mxu0 %v1484
        %1845 = vmatpush.bf16.msra.mxu0 %v1480
        %1846 = vmatmul.bf16.gmra.mxu0 %v952
        %v1847 = vpop.f32.mrf.mxu0
        %v1848 = vadd.f32 %v1088, %v1847
        %v1849 = vpop.f32.mrf.mxu0
        %1850 = vdwg.mxu0
        %1851 = vmatpush.bf16.msra.mxu0 %v1540
        %1852 = vmatpush.bf16.msra.mxu0 %v1536
        %1853 = vmatpush.bf16.msra.mxu0 %v1532
        %1854 = vmatpush.bf16.msra.mxu0 %v1528
        %1855 = vmatpush.bf16.msra.mxu0 %v1524
        %1856 = vmatpush.bf16.msra.mxu0 %v1520
        %1857 = vmatpush.bf16.msra.mxu0 %v1516
        %1858 = vmatpush.bf16.msra.mxu0 %v1512
        %1859 = vmatmul.bf16.gmra.mxu0 %v953
        %v1860 = vpop.f32.mrf.mxu0
        %v1861 = vadd.f32 %v1848, %v1860
        %v1862 = vpop.f32.mrf.mxu0
        %1863 = vdwg.mxu0
        %1864 = vmatpush.bf16.msra.mxu0 %v1572
        %1865 = vmatpush.bf16.msra.mxu0 %v1568
        %1866 = vmatpush.bf16.msra.mxu0 %v1564
        %1867 = vmatpush.bf16.msra.mxu0 %v1560
        %1868 = vmatpush.bf16.msra.mxu0 %v1556
        %1869 = vmatpush.bf16.msra.mxu0 %v1552
        %1870 = vmatpush.bf16.msra.mxu0 %v1548
        %1871 = vmatpush.bf16.msra.mxu0 %v1544
        %1872 = vmatmul.bf16.gmra.mxu0 %v954
        %v1873 = vpop.f32.mrf.mxu0
        %v1874 = vadd.f32 %v1861, %v1873
        %v1875 = vpop.f32.mrf.mxu0
        %1876 = vdwg.mxu0
        %1877 = vmatpush.bf16.msra.mxu0 %v1604
        %1878 = vmatpush.bf16.msra.mxu0 %v1600
        %1879 = vmatpush.bf16.msra.mxu0 %v1596
        %1880 = vmatpush.bf16.msra.mxu0 %v1592
        %1881 = vmatpush.bf16.msra.mxu0 %v1588
        %1882 = vmatpush.bf16.msra.mxu0 %v1584
        %1883 = vmatpush.bf16.msra.mxu0 %v1580
        %1884 = vmatpush.bf16.msra.mxu0 %v1576
        %1885 = vmatmul.bf16.gmra.mxu0 %v955
        %v1886 = vpop.f32.mrf.mxu0
        %v1887 = vadd.f32 %v1874, %v1886
        %v1888 = vpop.f32.mrf.mxu0
        %1889 = vdwg.mxu0
        %1890 = vmatpush.bf16.msra.mxu0 %v1509
        %1891 = vmatpush.bf16.msra.mxu0 %v1505
        %1892 = vmatpush.bf16.msra.mxu0 %v1501
        %1893 = vmatpush.bf16.msra.mxu0 %v1497
        %1894 = vmatpush.bf16.msra.mxu0 %v1493
        %1895 = vmatpush.bf16.msra.mxu0 %v1489
        %1896 = vmatpush.bf16.msra.mxu0 %v1485
        %1897 = vmatpush.bf16.msra.mxu0 %v1481
        %1898 = vmatmul.bf16.gmra.mxu0 %v952
        %v1899 = vpop.f32.mrf.mxu0
        %v1900 = vadd.f32 %v1089, %v1899
        %v1901 = vpop.f32.mrf.mxu0
        %1902 = vdwg.mxu0
        %1903 = vmatpush.bf16.msra.mxu0 %v1541
        %1904 = vmatpush.bf16.msra.mxu0 %v1537
        %1905 = vmatpush.bf16.msra.mxu0 %v1533
        %1906 = vmatpush.bf16.msra.mxu0 %v1529
        %1907 = vmatpush.bf16.msra.mxu0 %v1525
        %1908 = vmatpush.bf16.msra.mxu0 %v1521
        %1909 = vmatpush.bf16.msra.mxu0 %v1517
        %1910 = vmatpush.bf16.msra.mxu0 %v1513
        %1911 = vmatmul.bf16.gmra.mxu0 %v953
        %v1912 = vpop.f32.mrf.mxu0
        %v1913 = vadd.f32 %v1900, %v1912
        %v1914 = vpop.f32.mrf.mxu0
        %1915 = vdwg.mxu0
        %1916 = vmatpush.bf16.msra.mxu0 %v1573
        %1917 = vmatpush.bf16.msra.mxu0 %v1569
        %1918 = vmatpush.bf16.msra.mxu0 %v1565
        %1919 = vmatpush.bf16.msra.mxu0 %v1561
        %1920 = vmatpush.bf16.msra.mxu0 %v1557
        %1921 = vmatpush.bf16.msra.mxu0 %v1553
        %1922 = vmatpush.bf16.msra.mxu0 %v1549
        %1923 = vmatpush.bf16.msra.mxu0 %v1545
        %1924 = vmatmul.bf16.gmra.mxu0 %v954
        %v1925 = vpop.f32.mrf.mxu0
        %v1926 = vadd.f32 %v1913, %v1925
        %v1927 = vpop.f32.mrf.mxu0
        %1928 = vdwg.mxu0
        %1929 = vmatpush.bf16.msra.mxu0 %v1605
        %1930 = vmatpush.bf16.msra.mxu0 %v1601
        %1931 = vmatpush.bf16.msra.mxu0 %v1597
        %1932 = vmatpush.bf16.msra.mxu0 %v1593
        %1933 = vmatpush.bf16.msra.mxu0 %v1589
        %1934 = vmatpush.bf16.msra.mxu0 %v1585
        %1935 = vmatpush.bf16.msra.mxu0 %v1581
        %1936 = vmatpush.bf16.msra.mxu0 %v1577
        %1937 = vmatmul.bf16.gmra.mxu0 %v955
        %v1938 = vpop.f32.mrf.mxu0
        %v1939 = vadd.f32 %v1926, %v1938
        %v1940 = vpop.f32.mrf.mxu0
        %1941 = vdwg.mxu0
        %v1942 = vmax.f32 %v1783, 0.0
        %v1943 = vmax.f32 %v1835, 0.0
        %v1944 = vmax.f32 %v1887, 0.0
        %v1945 = vmax.f32 %v1939, 0.0
        %v1946 = vpack.c.bf16 %v1942, %v1942
        %v1947 = vpack.c.bf16 %v1943, %v1943
        %v1948 = vpack.c.bf16 %v1944, %v1944
        %v1949 = vpack.c.bf16 %v1945, %v1945
        %v1950 = vld [vmem:[#allocation11] sm:$0xf]
        %v1951 = vld [vmem:[#allocation11 + $0x4] sm:$0xf]
        %v1952 = vld [vmem:[#allocation11 + $0x8] sm:$0xf]
        %v1953 = vld [vmem:[#allocation11 + $0xc] sm:$0xf]
        %v1954 = vld [vmem:[#allocation11 + $0x10] sm:$0xf]
        %v1955 = vld [vmem:[#allocation11 + $0x14] sm:$0xf]
        %v1956 = vld [vmem:[#allocation11 + $0x18] sm:$0xf]
        %v1957 = vld [vmem:[#allocation11 + $0x1c] sm:$0xf]
        %v1958 = vld [vmem:[#allocation11 + $0x20] sm:$0xf]
        %v1959 = vld [vmem:[#allocation11 + $0x24] sm:$0xf]
        %v1960 = vld [vmem:[#allocation11 + $0x28] sm:$0xf]
        %v1961 = vld [vmem:[#allocation11 + $0x2c] sm:$0xf]
        %v1962 = vld [vmem:[#allocation11 + $0x30] sm:$0xf]
        %v1963 = vld [vmem:[#allocation11 + $0x34] sm:$0xf]
        %v1964 = vld [vmem:[#allocation11 + $0x38] sm:$0xf]
        %v1965 = vld [vmem:[#allocation11 + $0x3c] sm:$0xf]
        %v1966 = vld [vmem:[#allocation11 + $0x40] sm:$0xf]
        %v1967 = vld [vmem:[#allocation11 + $0x44] sm:$0xf]
        %v1968 = vld [vmem:[#allocation11 + $0x48] sm:$0xf]
        %v1969 = vld [vmem:[#allocation11 + $0x4c] sm:$0xf]
        %v1970 = vld [vmem:[#allocation11 + $0x50] sm:$0xf]
        %v1971 = vld [vmem:[#allocation11 + $0x54] sm:$0xf]
        %v1972 = vld [vmem:[#allocation11 + $0x58] sm:$0xf]
        %v1973 = vld [vmem:[#allocation11 + $0x5c] sm:$0xf]
        %v1974 = vld [vmem:[#allocation11 + $0x60] sm:$0xf]
        %v1975 = vld [vmem:[#allocation11 + $0x64] sm:$0xf]
        %v1976 = vld [vmem:[#allocation11 + $0x68] sm:$0xf]
        %v1977 = vld [vmem:[#allocation11 + $0x6c] sm:$0xf]
        %v1978 = vld [vmem:[#allocation11 + $0x70] sm:$0xf]
        %v1979 = vld [vmem:[#allocation11 + $0x74] sm:$0xf]
        %v1980 = vld [vmem:[#allocation11 + $0x78] sm:$0xf]
        %v1981 = vld [vmem:[#allocation11 + $0x7c] sm:$0xf]
        %v1982 = vld [vmem:[#allocation11 + $0x80] sm:$0xf]
        %v1983 = vld [vmem:[#allocation11 + $0x84] sm:$0xf]
        %v1984 = vld [vmem:[#allocation11 + $0x88] sm:$0xf]
        %v1985 = vld [vmem:[#allocation11 + $0x8c] sm:$0xf]
        %v1986 = vld [vmem:[#allocation11 + $0x90] sm:$0xf]
        %v1987 = vld [vmem:[#allocation11 + $0x94] sm:$0xf]
        %v1988 = vld [vmem:[#allocation11 + $0x98] sm:$0xf]
        %v1989 = vld [vmem:[#allocation11 + $0x9c] sm:$0xf]
        %v1990 = vld [vmem:[#allocation11 + $0xa0] sm:$0xf]
        %v1991 = vld [vmem:[#allocation11 + $0xa4] sm:$0xf]
        %v1992 = vld [vmem:[#allocation11 + $0xa8] sm:$0xf]
        %v1993 = vld [vmem:[#allocation11 + $0xac] sm:$0xf]
        %v1994 = vld [vmem:[#allocation11 + $0xb0] sm:$0xf]
        %v1995 = vld [vmem:[#allocation11 + $0xb4] sm:$0xf]
        %v1996 = vld [vmem:[#allocation11 + $0xb8] sm:$0xf]
        %v1997 = vld [vmem:[#allocation11 + $0xbc] sm:$0xf]
        %v1998 = vld [vmem:[#allocation11 + $0xc0] sm:$0xf]
        %v1999 = vld [vmem:[#allocation11 + $0xc4] sm:$0xf]
        %v2000 = vld [vmem:[#allocation11 + $0xc8] sm:$0xf]
        %v2001 = vld [vmem:[#allocation11 + $0xcc] sm:$0xf]
        %v2002 = vld [vmem:[#allocation11 + $0xd0] sm:$0xf]
        %v2003 = vld [vmem:[#allocation11 + $0xd4] sm:$0xf]
        %v2004 = vld [vmem:[#allocation11 + $0xd8] sm:$0xf]
        %v2005 = vld [vmem:[#allocation11 + $0xdc] sm:$0xf]
        %v2006 = vld [vmem:[#allocation11 + $0xe0] sm:$0xf]
        %v2007 = vld [vmem:[#allocation11 + $0xe4] sm:$0xf]
        %v2008 = vld [vmem:[#allocation11 + $0xe8] sm:$0xf]
        %v2009 = vld [vmem:[#allocation11 + $0xec] sm:$0xf]
        %v2010 = vld [vmem:[#allocation11 + $0xf0] sm:$0xf]
        %v2011 = vld [vmem:[#allocation11 + $0xf4] sm:$0xf]
        %v2012 = vld [vmem:[#allocation11 + $0xf8] sm:$0xf]
        %v2013 = vld [vmem:[#allocation11 + $0xfc] sm:$0xf]
        %v2014 = vld [vmem:[%s6] sm:$0x1]
        %v2016 = vperm.slane %v2014, 0
        %v2082 = vunpack.c.l.b16 %v1950
        %v2083 = vunpack.c.l.b16 %v1951
        %v2084 = vunpack.c.l.b16 %v1952
        %v2085 = vunpack.c.l.b16 %v1953
        %v2086 = vunpack.c.l.b16 %v1954
        %v2087 = vunpack.c.l.b16 %v1955
        %v2088 = vunpack.c.l.b16 %v1956
        %v2089 = vunpack.c.l.b16 %v1957
        %v2090 = vunpack.c.l.b16 %v1958
        %v2091 = vunpack.c.l.b16 %v1959
        %v2092 = vunpack.c.l.b16 %v1960
        %v2093 = vunpack.c.l.b16 %v1961
        %v2094 = vunpack.c.l.b16 %v1962
        %v2095 = vunpack.c.l.b16 %v1963
        %v2096 = vunpack.c.l.b16 %v1964
        %v2097 = vunpack.c.l.b16 %v1965
        %v2098 = vunpack.c.l.b16 %v1966
        %v2099 = vunpack.c.l.b16 %v1967
        %v2100 = vunpack.c.l.b16 %v1968
        %v2101 = vunpack.c.l.b16 %v1969
        %v2102 = vunpack.c.l.b16 %v1970
        %v2103 = vunpack.c.l.b16 %v1971
        %v2104 = vunpack.c.l.b16 %v1972
        %v2105 = vunpack.c.l.b16 %v1973
        %v2106 = vunpack.c.l.b16 %v1974
        %v2107 = vunpack.c.l.b16 %v1975
        %v2108 = vunpack.c.l.b16 %v1976
        %v2109 = vunpack.c.l.b16 %v1977
        %v2110 = vunpack.c.l.b16 %v1978
        %v2111 = vunpack.c.l.b16 %v1979
        %v2112 = vunpack.c.l.b16 %v1980
        %v2113 = vunpack.c.l.b16 %v1981
        %v2114 = vunpack.c.l.b16 %v1982
        %v2115 = vunpack.c.l.b16 %v1983
        %v2116 = vunpack.c.l.b16 %v1984
        %v2117 = vunpack.c.l.b16 %v1985
        %v2118 = vunpack.c.l.b16 %v1986
        %v2119 = vunpack.c.l.b16 %v1987
        %v2120 = vunpack.c.l.b16 %v1988
        %v2121 = vunpack.c.l.b16 %v1989
        %v2122 = vunpack.c.l.b16 %v1990
        %v2123 = vunpack.c.l.b16 %v1991
        %v2124 = vunpack.c.l.b16 %v1992
        %v2125 = vunpack.c.l.b16 %v1993
        %v2126 = vunpack.c.l.b16 %v1994
        %v2127 = vunpack.c.l.b16 %v1995
        %v2128 = vunpack.c.l.b16 %v1996
        %v2129 = vunpack.c.l.b16 %v1997
        %v2130 = vunpack.c.l.b16 %v1998
        %v2131 = vunpack.c.l.b16 %v1999
        %v2132 = vunpack.c.l.b16 %v2000
        %v2133 = vunpack.c.l.b16 %v2001
        %v2134 = vunpack.c.l.b16 %v2002
        %v2135 = vunpack.c.l.b16 %v2003
        %v2136 = vunpack.c.l.b16 %v2004
        %v2137 = vunpack.c.l.b16 %v2005
        %v2138 = vunpack.c.l.b16 %v2006
        %v2139 = vunpack.c.l.b16 %v2007
        %v2140 = vunpack.c.l.b16 %v2008
        %v2141 = vunpack.c.l.b16 %v2009
        %v2142 = vunpack.c.l.b16 %v2010
        %v2143 = vunpack.c.l.b16 %v2011
        %v2144 = vunpack.c.l.b16 %v2012
        %v2145 = vunpack.c.l.b16 %v2013
        %v2146 = vpack.c.b16 %v2083, %v2082
        %v2147 = vpack.c.b16 %v2085, %v2084
        %v2148 = vpack.c.b16 %v2087, %v2086
        %v2149 = vpack.c.b16 %v2089, %v2088
        %v2150 = vpack.c.b16 %v2091, %v2090
        %v2151 = vpack.c.b16 %v2093, %v2092
        %v2152 = vpack.c.b16 %v2095, %v2094
        %v2153 = vpack.c.b16 %v2097, %v2096
        %v2154 = vpack.c.b16 %v2099, %v2098
        %v2155 = vpack.c.b16 %v2101, %v2100
        %v2156 = vpack.c.b16 %v2103, %v2102
        %v2157 = vpack.c.b16 %v2105, %v2104
        %v2158 = vpack.c.b16 %v2107, %v2106
        %v2159 = vpack.c.b16 %v2109, %v2108
        %v2160 = vpack.c.b16 %v2111, %v2110
        %v2161 = vpack.c.b16 %v2113, %v2112
        %v2162 = vpack.c.b16 %v2115, %v2114
        %v2163 = vpack.c.b16 %v2117, %v2116
        %v2164 = vpack.c.b16 %v2119, %v2118
        %v2165 = vpack.c.b16 %v2121, %v2120
        %v2166 = vpack.c.b16 %v2123, %v2122
        %v2167 = vpack.c.b16 %v2125, %v2124
        %v2168 = vpack.c.b16 %v2127, %v2126
        %v2169 = vpack.c.b16 %v2129, %v2128
        %v2170 = vpack.c.b16 %v2131, %v2130
        %v2171 = vpack.c.b16 %v2133, %v2132
        %v2172 = vpack.c.b16 %v2135, %v2134
        %v2173 = vpack.c.b16 %v2137, %v2136
        %v2174 = vpack.c.b16 %v2139, %v2138
        %v2175 = vpack.c.b16 %v2141, %v2140
        %v2176 = vpack.c.b16 %v2143, %v2142
        %v2177 = vpack.c.b16 %v2145, %v2144
        %2210 = vmatpush.bf16.msra.mxu0 %v2153
        %2211 = vmatpush.bf16.msra.mxu0 %v2152
        %2212 = vmatpush.bf16.msra.mxu0 %v2151
        %2213 = vmatpush.bf16.msra.mxu0 %v2150
        %2214 = vmatpush.bf16.msra.mxu0 %v2149
        %2215 = vmatpush.bf16.msra.mxu0 %v2148
        %2216 = vmatpush.bf16.msra.mxu0 %v2147
        %2217 = vmatpush.bf16.msra.mxu0 %v2146
        %2218 = vmatmul.bf16.gmra.mxu0 %v1946
        %v2219 = vpop.f32.mrf.mxu0
        %v2220 = vadd.f32 %v2016, %v2219
        %v2221 = vpop.f32.mrf.mxu0
        %2222 = vdwg.mxu0
        %2223 = vmatpush.bf16.msra.mxu0 %v2161
        %2224 = vmatpush.bf16.msra.mxu0 %v2160
        %2225 = vmatpush.bf16.msra.mxu0 %v2159
        %2226 = vmatpush.bf16.msra.mxu0 %v2158
        %2227 = vmatpush.bf16.msra.mxu0 %v2157
        %2228 = vmatpush.bf16.msra.mxu0 %v2156
        %2229 = vmatpush.bf16.msra.mxu0 %v2155
        %2230 = vmatpush.bf16.msra.mxu0 %v2154
        %2231 = vmatmul.bf16.gmra.mxu0 %v1947
        %v2232 = vpop.f32.mrf.mxu0
        %v2233 = vadd.f32 %v2220, %v2232
        %v2234 = vpop.f32.mrf.mxu0
        %2235 = vdwg.mxu0
        %2236 = vmatpush.bf16.msra.mxu0 %v2169
        %2237 = vmatpush.bf16.msra.mxu0 %v2168
        %2238 = vmatpush.bf16.msra.mxu0 %v2167
        %2239 = vmatpush.bf16.msra.mxu0 %v2166
        %2240 = vmatpush.bf16.msra.mxu0 %v2165
        %2241 = vmatpush.bf16.msra.mxu0 %v2164
        %2242 = vmatpush.bf16.msra.mxu0 %v2163
        %2243 = vmatpush.bf16.msra.mxu0 %v2162
        %2244 = vmatmul.bf16.gmra.mxu0 %v1948
        %v2245 = vpop.f32.mrf.mxu0
        %v2246 = vadd.f32 %v2233, %v2245
        %v2247 = vpop.f32.mrf.mxu0
        %2248 = vdwg.mxu0
        %2249 = vmatpush.bf16.msra.mxu0 %v2177
        %2250 = vmatpush.bf16.msra.mxu0 %v2176
        %2251 = vmatpush.bf16.msra.mxu0 %v2175
        %2252 = vmatpush.bf16.msra.mxu0 %v2174
        %2253 = vmatpush.bf16.msra.mxu0 %v2173
        %2254 = vmatpush.bf16.msra.mxu0 %v2172
        %2255 = vmatpush.bf16.msra.mxu0 %v2171
        %2256 = vmatpush.bf16.msra.mxu0 %v2170
        %2257 = vmatmul.bf16.gmra.mxu0 %v1949
        %v2258 = vpop.f32.mrf.mxu0
        %v2259 = vadd.f32 %v2246, %v2258
        %v2260 = vpop.f32.mrf.mxu0
        %2261 = vdwg.mxu0
        %v2262 = vmax.f32 %v2259, 0.0
        %v2263 = vpack.c.bf16 %v2262, %v2262
        %v2264 = vld [vmem:[#allocation13] sm:$0xf]
        %v2265 = vld [vmem:[#allocation13 + $0x4] sm:$0xf]
        %v2266 = vld [vmem:[#allocation13 + $0x8] sm:$0xf]
        %v2267 = vld [vmem:[#allocation13 + $0xc] sm:$0xf]
        %v2268 = vld [vmem:[#allocation13 + $0x10] sm:$0xf]
        %v2269 = vld [vmem:[#allocation13 + $0x14] sm:$0xf]
        %v2270 = vld [vmem:[#allocation13 + $0x18] sm:$0xf]
        %v2271 = vld [vmem:[#allocation13 + $0x1c] sm:$0xf]
        %v2272 = vld [vmem:[#allocation13 + $0x20] sm:$0xf]
        %v2273 = vld [vmem:[#allocation13 + $0x24] sm:$0xf]
        %v2274 = vld [vmem:[#allocation13 + $0x28] sm:$0xf]
        %v2275 = vld [vmem:[#allocation13 + $0x2c] sm:$0xf]
        %v2276 = vld [vmem:[#allocation13 + $0x30] sm:$0xf]
        %v2277 = vld [vmem:[#allocation13 + $0x34] sm:$0xf]
        %v2278 = vld [vmem:[#allocation13 + $0x38] sm:$0xf]
        %v2279 = vld [vmem:[#allocation13 + $0x3c] sm:$0xf]
        %v2280 = vld [vmem:[%s8] sm:$0x1]
        %v2282 = vperm.slane %v2280, 0
        %v2300 = vunpack.c.l.b16 %v2264
        %v2301 = vunpack.c.l.b16 %v2265
        %v2302 = vunpack.c.l.b16 %v2266
        %v2303 = vunpack.c.l.b16 %v2267
        %v2304 = vunpack.c.l.b16 %v2268
        %v2305 = vunpack.c.l.b16 %v2269
        %v2306 = vunpack.c.l.b16 %v2270
        %v2307 = vunpack.c.l.b16 %v2271
        %v2308 = vunpack.c.l.b16 %v2272
        %v2309 = vunpack.c.l.b16 %v2273
        %v2310 = vunpack.c.l.b16 %v2274
        %v2311 = vunpack.c.l.b16 %v2275
        %v2312 = vunpack.c.l.b16 %v2276
        %v2313 = vunpack.c.l.b16 %v2277
        %v2314 = vunpack.c.l.b16 %v2278
        %v2315 = vunpack.c.l.b16 %v2279
        %v2316 = vpack.c.b16 %v2301, %v2300
        %v2317 = vpack.c.b16 %v2303, %v2302
        %v2318 = vpack.c.b16 %v2305, %v2304
        %v2319 = vpack.c.b16 %v2307, %v2306
        %v2320 = vpack.c.b16 %v2309, %v2308
        %v2321 = vpack.c.b16 %v2311, %v2310
        %v2322 = vpack.c.b16 %v2313, %v2312
        %v2323 = vpack.c.b16 %v2315, %v2314
        %2332 = vmatpush.bf16.msra.mxu0 %v2323
        %2333 = vmatpush.bf16.msra.mxu0 %v2322
        %2334 = vmatpush.bf16.msra.mxu0 %v2321
        %2335 = vmatpush.bf16.msra.mxu0 %v2320
        %2336 = vmatpush.bf16.msra.mxu0 %v2319
        %2337 = vmatpush.bf16.msra.mxu0 %v2318
        %2338 = vmatpush.bf16.msra.mxu0 %v2317
        %2339 = vmatpush.bf16.msra.mxu0 %v2316
        %2340 = vmatmul.bf16.gmra.mxu0 %v2263
        %v2341 = vpop.f32.mrf.mxu0
        %v2342 = vadd.f32 %v2282, %v2341
        %v2343 = vpop.f32.mrf.mxu0
        %2344 = vdwg.mxu0
        %2345 = vst [vmem:[%s445] sm:$0xff] %v2342
        %s2346 = sand.u32 %s231, 1
        %s2347 = scalar_lea.sflag [#allocation4], %s2346
        %s2348 = sand.u32 %s231, 1
        %s2349 = smul.addr %s2348, 8
        %s2350 = scalar_lea.vmem [#allocation14], %s2349
        // Predicated region
        $region85: #{tpu_custom_call.1} parent=55 // pred_check
          %p2351 = pneg %p241
        $region86: #{tpu_custom_call.1} parent=55 // pred_check_branch
          %2353 = sbr.rel (%p2351) target = $region88
        $region87: #{tpu_custom_call.1} parent=55 // pred_region
          %2355 = vsyncadd %s2347, 0
          %s2356 = smul.addr %s29, 8
          %s2357 = scalar_lea.hbm %s9, %s2356
          %s2359 = sshll.u32 %s2350, 4
          %s2360 = int_to_ptr.vmem [resolvable:$true] %s2359
          %s2361 = sshll.u32 %s2357, 4
          %s2362 = int_to_ptr.hbm [resolvable:$true] %s2361
          %2364 = dma.vmem_to_hbm [thread:$0]  %s2360, 128, %s2362, %s2347
        $region88: #{tpu_custom_call.1} parent=55 // pred_fallthru
          _
      $region56: #{tpu_custom_call.1} parent=5 // pred_fallthru
        _
      %p2365 = scmp.le.s32.totalorder 2, %s24
      // Predicated region
      $region89: #{tpu_custom_call.1} parent=5 // pred_check
        %p2366 = pneg %p2365
      $region90: #{tpu_custom_call.1} parent=5 // pred_check_branch
        %2368 = sbr.rel (%p2366) target = $region92
      $region91: #{tpu_custom_call.1} parent=5 // pred_region
        %s2369 = ssub.s32 %s24, 2
        // Predicated region
        $region93: #{tpu_custom_call.1} parent=91 // pred_check
          %p2370 = pneg %p247
        $region94: #{tpu_custom_call.1} parent=91 // pred_check_branch
          %2372 = sbr.rel (%p2370) target = $region96
        $region95: #{tpu_custom_call.1} parent=91 // pred_region
          %s2373 = sand.u32 %s232, 1
          %s2374 = scalar_lea.sflag [#allocation4], %s2373
          %s2375 = sand.u32 %s232, 1
          %s2376 = smul.addr %s2375, 8
          %s2377 = scalar_lea.vmem [#allocation14], %s2376
          %2379 = dma.done %s2374, 128
        $region96: #{tpu_custom_call.1} parent=91 // pred_fallthru
          _
      $region92: #{tpu_custom_call.1} parent=5 // pred_fallthru
        _
    $region6: #{tpu_custom_call.1} parent=1 // loop_footer
      %s28 = sadd.s32 1, %s24
    $region7: #{tpu_custom_call.1} parent=1 // loop_footer_branch
      %23 = sbr.rel target = $region3
    $region8: #{tpu_custom_call.1} parent=1 // loop_exit
      _
    %2380 = vsyncpa [#allocation3], 1
    %s2381 = scalar_lea.sflag [#allocation3], 1
    %2382 = vsyncpa %s2381, 1
    %2383 = vsyncpa [#allocation6], 1
    %2384 = vsyncpa [#allocation9], 1
    %2385 = vsyncpa [#allocation12], 1
    %2386 = vsyncpa [#allocation4], 1
    %s2387 = scalar_lea.sflag [#allocation4], 1
    %2388 = vsyncpa %s2387, 1

</llo_original>
